<compile_context>
chip_gen: v7x
topology: tpu7x:2x2x1
jax: 0.10.0
libtpu: 0.0.40
codegen_flags: <defaults>
</compile_context>

<pallas_src>
import functools

import numpy as np
import jax
import jax.numpy as jnp
from jax.experimental import pallas as pl
from jax.experimental.pallas import tpu as pltpu


# ------------------------------ Pallas kernel ------------------------------

def _conv3x3_tap_acc(groups, masks_ref, *, W, L):
    """Same-padded 3x3 conv on lane-dense (C, L) activations by tap accumulation.

    groups: sequence of (a32, w_ref) where a32 is an f32 (Cin_g, L) activation and
    w_ref a (9, Cout, Cin_g) bf16 weight ref.  For every tap the activation is
    lane-rotated (XLU), border/seam masked in f32 (VPU, skipped for the centre tap),
    cast to bf16 only at the MXU boundary and accumulated in f32 -- no im2col
    scratch round trip, no VMEM re-read.
    """
    acc = None
    for a32, w_ref in groups:
        t = 0
        for dy in (-1, 0, 1):
            for dx in (-1, 0, 1):
                off = dy * W + dx                       # flat lane shift of this tap
                if off == 0:
                    tap = a32                           # centre tap: mask is all ones
                else:
                    tap = pltpu.roll(a32, (-off) % L, axis=1) * masks_ref[t]
                contrib = jnp.dot(w_ref[t], tap.astype(jnp.bfloat16),
                                  preferred_element_type=jnp.float32)
                acc = contrib if acc is None else acc + contrib
                t += 1
    return acc


def _decoder_kernel(up_ref, xb_ref, masks_ref, w1u_ref, w1b_ref, w2_ref, w3_ref,
                    o_ref, *, W, L):
    # bf16 inputs -> f32 working values (exact upcast); elementwise stays f32.
    up32 = up_ref[...].astype(jnp.float32)              # (C_x,  L)
    xb32 = xb_ref[...].astype(jnp.float32)              # (C_big, L)

    # conv1 over the *virtual* concat [up, x_big]: two channel groups, one accumulator.
    h0 = jnp.maximum(
        _conv3x3_tap_acc([(up32, w1u_ref), (xb32, w1b_ref)], masks_ref, W=W, L=L), 0.0)
    h1 = jnp.maximum(_conv3x3_tap_acc([(h0, w2_ref)], masks_ref, W=W, L=L), 0.0)
    h2 = _conv3x3_tap_acc([(h1, w3_ref)], masks_ref, W=W, L=L)
    o_ref[...] = jnp.maximum(h2 + h0, 0.0).astype(o_ref.dtype)   # residual + ReLU


# ------------------------- host-side constant helpers -----------------------

def _bilinear_matrix(out_size, in_size):
    """(out_size, in_size) 1-D interp matrix, PyTorch bilinear align_corners=False."""
    scale = in_size / out_size
    src = np.maximum((np.arange(out_size) + 0.5) * scale - 0.5, 0.0)
    i0 = np.minimum(np.floor(src).astype(np.int64), in_size - 1)
    i1 = np.minimum(i0 + 1, in_size - 1)
    frac = src - i0
    m = np.zeros((out_size, in_size), np.float32)
    m[np.arange(out_size), i0] += (1.0 - frac)
    m[np.arange(out_size), i1] += frac
    return m


def _upsample_separable(x, H, W):
    """Bilinear upsample (align_corners=False) as two tiny separable matmuls."""
    _, _, h, w = x.shape
    ry = jnp.asarray(_bilinear_matrix(H, h))             # (H, h)
    rx = jnp.asarray(_bilinear_matrix(W, w))             # (W, w)
    t = jnp.einsum("ncij,Xj->nciX", x.astype(jnp.float32), rx,
                   precision=jax.lax.Precision.HIGHEST)
    return jnp.einsum("Yi,nciX->ncYX", ry, t, precision=jax.lax.Precision.HIGHEST)


def _border_masks(H, W, images_per_step):
    """(9, 1, nb*H*W) f32 0/1 masks: validity of tap (dy, dx) at each output pixel.

    Tiled per image so that lane rolls that wrap across image seams (batch folded
    onto the lane axis) are zeroed exactly like out-of-image taps.
    """
    p = np.arange(H * W)
    y, x = p // W, p % W
    rows = []
    for dy in (-1, 0, 1):
        for dx in (-1, 0, 1):
            ok = (y + dy >= 0) & (y + dy < H) & (x + dx >= 0) & (x + dx < W)
            rows.append(ok.astype(np.float32))
    m = np.tile(np.stack(rows, 0)[:, None, :], (1, 1, images_per_step))
    return jnp.asarray(m)


def _pick_images_per_step(N, HW, lane_cap=16384):
    """Fold batch onto lanes, but keep >=2 grid steps (v7x megacore) when possible."""
    divisors = [d for d in range(1, N + 1) if N % d == 0]
    ok = [d for d in divisors
          if (d == N or (d * HW) % 128 == 0) and d * HW <= lane_cap]
    if not ok:
        return N                                         # full fold: block == array
    multi_step = [d for d in ok if N // d >= 2]
    return max(multi_step) if multi_step else max(ok)


# --------------------------------- wrapper ----------------------------------

def res_stack_decoder_forward(params, x_big, x, *, images_per_step=None):
    """x_big: (N, C_big, H, W); x: (N, C_x, h, w). Returns (N, Cy, H, W)."""
    N, c_big, H, W = x_big.shape
    _, c_x, h, w = x.shape
    cy = params["w1"].shape[0]
    HW = H * W

    nb = images_per_step if images_per_step is not None else _pick_images_per_step(N, HW)
    assert N % nb == 0
    L = nb * HW

    # Separable bilinear upsample (replaces the dense (h*w, H*W) kron matrix).
    up = _upsample_separable(x, H, W)                    # (N, C_x, H, W) f32

    # Channel-major, lane-dense layout (C, N*H*W), lanes ordered (image, y, x);
    # matmul operands shipped as bf16 (half the DMA, 2x MXU).
    up_cm = jnp.transpose(up, (1, 0, 2, 3)).reshape(c_x, N * HW).astype(jnp.bfloat16)
    xb_cm = jnp.transpose(x_big, (1, 0, 2, 3)).reshape(c_big, N * HW).astype(jnp.bfloat16)

    masks = _border_masks(H, W, nb)                      # (9, 1, L) f32

    # OIHW conv weights -> (9, Cout, Cin) bf16, tap index = kh*3 + kw (matches loop).
    def to_taps(w_oihw):
        o, i = w_oihw.shape[:2]
        return jnp.transpose(w_oihw, (2, 3, 0, 1)).reshape(9, o, i).astype(jnp.bfloat16)

    w1u = to_taps(params["w1"][:, :c_x])                 # concat order: [up, x_big]
    w1b = to_taps(params["w1"][:, c_x:])
    w2t = to_taps(params["w2"])
    w3t = to_taps(params["w3"])

    kernel = functools.partial(_decoder_kernel, W=W, L=L)
    out_cm = pl.pallas_call(
        kernel,
        out_shape=jax.ShapeDtypeStruct((cy, N * HW), jnp.float32),
        grid=(N // nb,),
        in_specs=[
            pl.BlockSpec((c_x, L), lambda g: (0, g)),
            pl.BlockSpec((c_big, L), lambda g: (0, g)),
            pl.BlockSpec((9, 1, L), lambda g: (0, 0, 0)),
            pl.BlockSpec((9, cy, c_x), lambda g: (0, 0, 0)),
            pl.BlockSpec((9, cy, c_big), lambda g: (0, 0, 0)),
            pl.BlockSpec((9, cy, cy), lambda g: (0, 0, 0)),
            pl.BlockSpec((9, cy, cy), lambda g: (0, 0, 0)),
        ],
        out_specs=pl.BlockSpec((cy, L), lambda g: (0, g)),   # lane-dense f32 output
        compiler_params=pltpu.CompilerParams(
            dimension_semantics=("parallel",),               # batch axis -> both TCs
            vmem_limit_bytes=32 * 1024 * 1024),
    )(up_cm, xb_cm, masks, w1u, w1b, w2t, w3t)

    out = jnp.transpose(out_cm.reshape(cy, N, H, W), (1, 0, 2, 3))
    return out.astype(x_big.dtype)


def init_params(key, x_big_channels, x_channels, y_channels, dtype=jnp.float32):
    """Synthetic OIHW conv weights matching nn.Conv2d shapes (bias=False)."""
    k1, k2, k3 = jax.random.split(key, 3)

    def conv_w(k, cin, cout):
        fan_in = cin * 9
        return jax.random.normal(k, (cout, cin, 3, 3), dtype) * (2.0 / fan_in) ** 0.5

    cin1 = x_big_channels + x_channels
    return {"w1": conv_w(k1, cin1, y_channels),
            "w2": conv_w(k2, y_channels, y_channels),
            "w3": conv_w(k3, y_channels, y_channels)}


# ----------------------------- pure-JAX references ---------------------------

def _bilinear_upsample_ref(x, out_h, out_w):
    """PyTorch F.interpolate(mode='bilinear', align_corners=False) semantics."""
    _, _, h, w = x.shape
    sy = np.maximum((np.arange(out_h) + 0.5) * (h / out_h) - 0.5, 0.0)
    sx = np.maximum((np.arange(out_w) + 0.5) * (w / out_w) - 0.5, 0.0)
    y0 = np.minimum(np.floor(sy).astype(np.int32), h - 1)
    x0 = np.minimum(np.floor(sx).astype(np.int32), w - 1)
    y1 = np.minimum(y0 + 1, h - 1)
    x1 = np.minimum(x0 + 1, w - 1)
    wy = jnp.asarray((sy - y0)[None, None, :, None], jnp.float32)
    wx = jnp.asarray((sx - x0)[None, None, None, :], jnp.float32)
    g = lambda yi, xi: x[:, :, yi, :][:, :, :, xi]
    return (g(y0, x0) * (1 - wy) * (1 - wx) + g(y0, x1) * (1 - wy) * wx
            + g(y1, x0) * wy * (1 - wx) + g(y1, x1) * wy * wx)


def _ref_decode(up, x_big, params, *, bf16_operands):
    cat = jnp.concatenate([up, x_big], axis=1)
    op_dtype = jnp.bfloat16 if bf16_operands else jnp.float32
    prec = None if bf16_operands else jax.lax.Precision.HIGHEST

    def conv(z, wgt):
        return jax.lax.conv_general_dilated(
            z.astype(op_dtype), wgt.astype(op_dtype),
            window_strides=(1, 1), padding=((1, 1), (1, 1)),
            dimension_numbers=("NCHW", "OIHW", "NCHW"),
            preferred_element_type=jnp.float32, precision=prec)

    h0 = jax.nn.relu(conv(cat, params["w1"]))
    h1 = jax.nn.relu(conv(h0, params["w2"]))
    h2 = conv(h1, params["w3"])
    return jax.nn.relu(h2 + h0)


def ref_forward(params, x_big, x):
    """Fully independent f32 reference (gather-based bilinear + HIGHEST convs)."""
    _, _, H, W = x_big.shape
    return _ref_decode(_bilinear_upsample_ref(x, H, W), x_big, params,
                       bf16_operands=False)


def ref_forward_bf16_boundary(params, x_big, x):
    """Reference that mirrors the kernel's bf16-at-MXU-boundary casts (tight check)."""
    _, _, H, W = x_big.shape
    return _ref_decode(_upsample_separable(x, H, W), x_big, params,
                       bf16_operands=True)


# ---------------------------------- driver ----------------------------------

if __name__ == "__main__":
    key = jax.random.PRNGKey(0)
    k_big, k_small, k_par = jax.random.split(key, 3)

    N = 4                                   # folds to 2 images/step -> 2 grid steps
    x_big_channels, x_channels, y_channels = 4, 4, 8
    H, W = 16, 16
    h_in, w_in = 8, 8

    x_big = jax.random.normal(k_big, (N, x_big_channels, H, W), jnp.float32)
    x = jax.random.normal(k_small, (N, x_channels, h_in, w_in), jnp.float32)
    params = init_params(k_par, x_big_channels, x_channels, y_channels)

    out = jax.jit(res_stack_decoder_forward)(params, x_big, x)
    out = jax.block_until_ready(out)
    assert out.shape == (N, y_channels, H, W)

    # Tight check vs a reference that performs the same bf16 casts at the MXU boundary
    # (expected diff ~1e-6 from accumulation order; 2e-2 is still ~25x below the ~0.5
    # error a single wrong/missing border tap would produce).
    ref16 = ref_forward_bf16_boundary(params, x_big, x)
    err16 = float(jnp.max(jnp.abs(out - ref16)))
    assert err16 < 2e-2, f"max abs error vs bf16-boundary reference too large: {err16}"

    # Sanity bound vs the fully independent f32 reference (covers bf16 rounding over
    # three chained K=72 contractions).
    ref32 = ref_forward(params, x_big, x)
    err32 = float(jnp.max(jnp.abs(out - ref32)))
    assert err32 < 1e-1, f"max abs error vs f32 reference too large: {err32}"

    print("KERNEL_OK")
</pallas_src>

<mosaic_0001>
module attributes {stable_mosaic.version = 11 : i64} {
  func.func @_decoder_kernel(%arg0: i32, %arg1: memref<4x512xbf16, #tpu.memory_space<vmem>>, %arg2: memref<4x512xbf16, #tpu.memory_space<vmem>>, %arg3: memref<9x1x512xf32, #tpu.memory_space<vmem>>, %arg4: memref<9x8x4xbf16, #tpu.memory_space<vmem>>, %arg5: memref<9x8x4xbf16, #tpu.memory_space<vmem>>, %arg6: memref<9x8x8xbf16, #tpu.memory_space<vmem>>, %arg7: memref<9x8x8xbf16, #tpu.memory_space<vmem>>, %arg8: memref<8x512xf32, #tpu.memory_space<vmem>>) attributes {dimension_semantics = [#tpu.dimension_semantics<parallel>], iteration_bounds = array<i64: 2>, scalar_prefetch = 0 : i64, scratch_operands = 0 : i64, tpu.core_type = #tpu.core_type<tc>, window_params = [{transform_indices = @transform_0, window_bounds = array<i64: 4, 512>}, {transform_indices = @transform_1, window_bounds = array<i64: 4, 512>}, {pipeline_mode = #tpu.pipeline_mode<synchronous>, transform_indices = @transform_2, window_bounds = array<i64: 9, 1, 512>}, {pipeline_mode = #tpu.pipeline_mode<synchronous>, transform_indices = @transform_3, window_bounds = array<i64: 9, 8, 4>}, {pipeline_mode = #tpu.pipeline_mode<synchronous>, transform_indices = @transform_4, window_bounds = array<i64: 9, 8, 4>}, {pipeline_mode = #tpu.pipeline_mode<synchronous>, transform_indices = @transform_5, window_bounds = array<i64: 9, 8, 8>}, {pipeline_mode = #tpu.pipeline_mode<synchronous>, transform_indices = @transform_6, window_bounds = array<i64: 9, 8, 8>}, {transform_indices = @transform_7, window_bounds = array<i64: 8, 512>}]} {
    %c0 = arith.constant 0 : index
    %c0_0 = arith.constant 0 : index
    %0 = vector.load %arg1[%c0, %c0_0] : memref<4x512xbf16, #tpu.memory_space<vmem>>, vector<4x512xbf16>
    %1 = arith.extf %0 : vector<4x512xbf16> to vector<4x512xf32>
    %c0_1 = arith.constant 0 : index
    %c0_2 = arith.constant 0 : index
    %2 = vector.load %arg2[%c0_1, %c0_2] : memref<4x512xbf16, #tpu.memory_space<vmem>>, vector<4x512xbf16>
    %3 = arith.extf %2 : vector<4x512xbf16> to vector<4x512xf32>
    %c17_i32 = arith.constant 17 : i32
    %4 = tpu.dynamic_rotate %1 by %c17_i32 dim 1 : vector<4x512xf32>, i32 -> vector<4x512xf32>
    %c0_3 = arith.constant 0 : index
    %c0_4 = arith.constant 0 : index
    %c0_5 = arith.constant 0 : index
    %5 = vector.load %arg3[%c0_3, %c0_4, %c0_5] : memref<9x1x512xf32, #tpu.memory_space<vmem>>, vector<1x1x512xf32>
    %6 = vector.shape_cast %5 : vector<1x1x512xf32> to vector<1x512xf32>
    %7 = vector.broadcast %6 : vector<1x512xf32> to vector<4x512xf32>
    %8 = arith.mulf %4, %7 : vector<4x512xf32>
    %c0_6 = arith.constant 0 : index
    %c0_7 = arith.constant 0 : index
    %c0_8 = arith.constant 0 : index
    %9 = vector.load %arg4[%c0_6, %c0_7, %c0_8] : memref<9x8x4xbf16, #tpu.memory_space<vmem>>, vector<1x8x4xbf16>
    %10 = vector.shape_cast %9 : vector<1x8x4xbf16> to vector<8x4xbf16>
    %11 = arith.truncf %8 : vector<4x512xf32> to vector<4x512xbf16>
    %cst = arith.constant dense<0.000000e+00> : vector<8x512xf32>
    %12 = tpu.matmul %10, %11, %cst {dimension_numbers = #tpu.dot_dimension_numbers<[1], [0], [0], [1], [0, 0, 1, 1], [], []>} : vector<8x4xbf16>, vector<4x512xbf16>, vector<8x512xf32> -> vector<8x512xf32>
    %c16_i32 = arith.constant 16 : i32
    %13 = tpu.dynamic_rotate %1 by %c16_i32 dim 1 : vector<4x512xf32>, i32 -> vector<4x512xf32>
    %c1 = arith.constant 1 : index
    %c0_9 = arith.constant 0 : index
    %c0_10 = arith.constant 0 : index
    %14 = vector.load %arg3[%c1, %c0_9, %c0_10] : memref<9x1x512xf32, #tpu.memory_space<vmem>>, vector<1x1x512xf32>
    %15 = vector.shape_cast %14 : vector<1x1x512xf32> to vector<1x512xf32>
    %16 = vector.broadcast %15 : vector<1x512xf32> to vector<4x512xf32>
    %17 = arith.mulf %13, %16 : vector<4x512xf32>
    %c1_11 = arith.constant 1 : index
    %c0_12 = arith.constant 0 : index
    %c0_13 = arith.constant 0 : index
    %18 = vector.load %arg4[%c1_11, %c0_12, %c0_13] : memref<9x8x4xbf16, #tpu.memory_space<vmem>>, vector<1x8x4xbf16>
    %19 = vector.shape_cast %18 : vector<1x8x4xbf16> to vector<8x4xbf16>
    %20 = arith.truncf %17 : vector<4x512xf32> to vector<4x512xbf16>
    %cst_14 = arith.constant dense<0.000000e+00> : vector<8x512xf32>
    %21 = tpu.matmul %19, %20, %cst_14 {dimension_numbers = #tpu.dot_dimension_numbers<[1], [0], [0], [1], [0, 0, 1, 1], [], []>} : vector<8x4xbf16>, vector<4x512xbf16>, vector<8x512xf32> -> vector<8x512xf32>
    %22 = arith.addf %12, %21 : vector<8x512xf32>
    %c15_i32 = arith.constant 15 : i32
    %23 = tpu.dynamic_rotate %1 by %c15_i32 dim 1 : vector<4x512xf32>, i32 -> vector<4x512xf32>
    %c2 = arith.constant 2 : index
    %c0_15 = arith.constant 0 : index
    %c0_16 = arith.constant 0 : index
    %24 = vector.load %arg3[%c2, %c0_15, %c0_16] : memref<9x1x512xf32, #tpu.memory_space<vmem>>, vector<1x1x512xf32>
    %25 = vector.shape_cast %24 : vector<1x1x512xf32> to vector<1x512xf32>
    %26 = vector.broadcast %25 : vector<1x512xf32> to vector<4x512xf32>
    %27 = arith.mulf %23, %26 : vector<4x512xf32>
    %c2_17 = arith.constant 2 : index
    %c0_18 = arith.constant 0 : index
    %c0_19 = arith.constant 0 : index
    %28 = vector.load %arg4[%c2_17, %c0_18, %c0_19] : memref<9x8x4xbf16, #tpu.memory_space<vmem>>, vector<1x8x4xbf16>
    %29 = vector.shape_cast %28 : vector<1x8x4xbf16> to vector<8x4xbf16>
    %30 = arith.truncf %27 : vector<4x512xf32> to vector<4x512xbf16>
    %cst_20 = arith.constant dense<0.000000e+00> : vector<8x512xf32>
    %31 = tpu.matmul %29, %30, %cst_20 {dimension_numbers = #tpu.dot_dimension_numbers<[1], [0], [0], [1], [0, 0, 1, 1], [], []>} : vector<8x4xbf16>, vector<4x512xbf16>, vector<8x512xf32> -> vector<8x512xf32>
    %32 = arith.addf %22, %31 : vector<8x512xf32>
    %c1_i32 = arith.constant 1 : i32
    %33 = tpu.dynamic_rotate %1 by %c1_i32 dim 1 : vector<4x512xf32>, i32 -> vector<4x512xf32>
    %c3 = arith.constant 3 : index
    %c0_21 = arith.constant 0 : index
    %c0_22 = arith.constant 0 : index
    %34 = vector.load %arg3[%c3, %c0_21, %c0_22] : memref<9x1x512xf32, #tpu.memory_space<vmem>>, vector<1x1x512xf32>
    %35 = vector.shape_cast %34 : vector<1x1x512xf32> to vector<1x512xf32>
    %36 = vector.broadcast %35 : vector<1x512xf32> to vector<4x512xf32>
    %37 = arith.mulf %33, %36 : vector<4x512xf32>
    %c3_23 = arith.constant 3 : index
    %c0_24 = arith.constant 0 : index
    %c0_25 = arith.constant 0 : index
    %38 = vector.load %arg4[%c3_23, %c0_24, %c0_25] : memref<9x8x4xbf16, #tpu.memory_space<vmem>>, vector<1x8x4xbf16>
    %39 = vector.shape_cast %38 : vector<1x8x4xbf16> to vector<8x4xbf16>
    %40 = arith.truncf %37 : vector<4x512xf32> to vector<4x512xbf16>
    %cst_26 = arith.constant dense<0.000000e+00> : vector<8x512xf32>
    %41 = tpu.matmul %39, %40, %cst_26 {dimension_numbers = #tpu.dot_dimension_numbers<[1], [0], [0], [1], [0, 0, 1, 1], [], []>} : vector<8x4xbf16>, vector<4x512xbf16>, vector<8x512xf32> -> vector<8x512xf32>
    %42 = arith.addf %32, %41 : vector<8x512xf32>
    %c4 = arith.constant 4 : index
    %c0_27 = arith.constant 0 : index
    %c0_28 = arith.constant 0 : index
    %43 = vector.load %arg4[%c4, %c0_27, %c0_28] : memref<9x8x4xbf16, #tpu.memory_space<vmem>>, vector<1x8x4xbf16>
    %44 = vector.shape_cast %43 : vector<1x8x4xbf16> to vector<8x4xbf16>
    %45 = arith.truncf %1 : vector<4x512xf32> to vector<4x512xbf16>
    %cst_29 = arith.constant dense<0.000000e+00> : vector<8x512xf32>
    %46 = tpu.matmul %44, %45, %cst_29 {dimension_numbers = #tpu.dot_dimension_numbers<[1], [0], [0], [1], [0, 0, 1, 1], [], []>} : vector<8x4xbf16>, vector<4x512xbf16>, vector<8x512xf32> -> vector<8x512xf32>
    %47 = arith.addf %42, %46 : vector<8x512xf32>
    %c511_i32 = arith.constant 511 : i32
    %48 = tpu.dynamic_rotate %1 by %c511_i32 dim 1 : vector<4x512xf32>, i32 -> vector<4x512xf32>
    %c5 = arith.constant 5 : index
    %c0_30 = arith.constant 0 : index
    %c0_31 = arith.constant 0 : index
    %49 = vector.load %arg3[%c5, %c0_30, %c0_31] : memref<9x1x512xf32, #tpu.memory_space<vmem>>, vector<1x1x512xf32>
    %50 = vector.shape_cast %49 : vector<1x1x512xf32> to vector<1x512xf32>
    %51 = vector.broadcast %50 : vector<1x512xf32> to vector<4x512xf32>
    %52 = arith.mulf %48, %51 : vector<4x512xf32>
    %c5_32 = arith.constant 5 : index
    %c0_33 = arith.constant 0 : index
    %c0_34 = arith.constant 0 : index
    %53 = vector.load %arg4[%c5_32, %c0_33, %c0_34] : memref<9x8x4xbf16, #tpu.memory_space<vmem>>, vector<1x8x4xbf16>
    %54 = vector.shape_cast %53 : vector<1x8x4xbf16> to vector<8x4xbf16>
    %55 = arith.truncf %52 : vector<4x512xf32> to vector<4x512xbf16>
    %cst_35 = arith.constant dense<0.000000e+00> : vector<8x512xf32>
    %56 = tpu.matmul %54, %55, %cst_35 {dimension_numbers = #tpu.dot_dimension_numbers<[1], [0], [0], [1], [0, 0, 1, 1], [], []>} : vector<8x4xbf16>, vector<4x512xbf16>, vector<8x512xf32> -> vector<8x512xf32>
    %57 = arith.addf %47, %56 : vector<8x512xf32>
    %c497_i32 = arith.constant 497 : i32
    %58 = tpu.dynamic_rotate %1 by %c497_i32 dim 1 : vector<4x512xf32>, i32 -> vector<4x512xf32>
    %c6 = arith.constant 6 : index
    %c0_36 = arith.constant 0 : index
    %c0_37 = arith.constant 0 : index
    %59 = vector.load %arg3[%c6, %c0_36, %c0_37] : memref<9x1x512xf32, #tpu.memory_space<vmem>>, vector<1x1x512xf32>
    %60 = vector.shape_cast %59 : vector<1x1x512xf32> to vector<1x512xf32>
    %61 = vector.broadcast %60 : vector<1x512xf32> to vector<4x512xf32>
    %62 = arith.mulf %58, %61 : vector<4x512xf32>
    %c6_38 = arith.constant 6 : index
    %c0_39 = arith.constant 0 : index
    %c0_40 = arith.constant 0 : index
    %63 = vector.load %arg4[%c6_38, %c0_39, %c0_40] : memref<9x8x4xbf16, #tpu.memory_space<vmem>>, vector<1x8x4xbf16>
    %64 = vector.shape_cast %63 : vector<1x8x4xbf16> to vector<8x4xbf16>
    %65 = arith.truncf %62 : vector<4x512xf32> to vector<4x512xbf16>
    %cst_41 = arith.constant dense<0.000000e+00> : vector<8x512xf32>
    %66 = tpu.matmul %64, %65, %cst_41 {dimension_numbers = #tpu.dot_dimension_numbers<[1], [0], [0], [1], [0, 0, 1, 1], [], []>} : vector<8x4xbf16>, vector<4x512xbf16>, vector<8x512xf32> -> vector<8x512xf32>
    %67 = arith.addf %57, %66 : vector<8x512xf32>
    %c496_i32 = arith.constant 496 : i32
    %68 = tpu.dynamic_rotate %1 by %c496_i32 dim 1 : vector<4x512xf32>, i32 -> vector<4x512xf32>
    %c7 = arith.constant 7 : index
    %c0_42 = arith.constant 0 : index
    %c0_43 = arith.constant 0 : index
    %69 = vector.load %arg3[%c7, %c0_42, %c0_43] : memref<9x1x512xf32, #tpu.memory_space<vmem>>, vector<1x1x512xf32>
    %70 = vector.shape_cast %69 : vector<1x1x512xf32> to vector<1x512xf32>
    %71 = vector.broadcast %70 : vector<1x512xf32> to vector<4x512xf32>
    %72 = arith.mulf %68, %71 : vector<4x512xf32>
    %c7_44 = arith.constant 7 : index
    %c0_45 = arith.constant 0 : index
    %c0_46 = arith.constant 0 : index
    %73 = vector.load %arg4[%c7_44, %c0_45, %c0_46] : memref<9x8x4xbf16, #tpu.memory_space<vmem>>, vector<1x8x4xbf16>
    %74 = vector.shape_cast %73 : vector<1x8x4xbf16> to vector<8x4xbf16>
    %75 = arith.truncf %72 : vector<4x512xf32> to vector<4x512xbf16>
    %cst_47 = arith.constant dense<0.000000e+00> : vector<8x512xf32>
    %76 = tpu.matmul %74, %75, %cst_47 {dimension_numbers = #tpu.dot_dimension_numbers<[1], [0], [0], [1], [0, 0, 1, 1], [], []>} : vector<8x4xbf16>, vector<4x512xbf16>, vector<8x512xf32> -> vector<8x512xf32>
    %77 = arith.addf %67, %76 : vector<8x512xf32>
    %c495_i32 = arith.constant 495 : i32
    %78 = tpu.dynamic_rotate %1 by %c495_i32 dim 1 : vector<4x512xf32>, i32 -> vector<4x512xf32>
    %c8 = arith.constant 8 : index
    %c0_48 = arith.constant 0 : index
    %c0_49 = arith.constant 0 : index
    %79 = vector.load %arg3[%c8, %c0_48, %c0_49] : memref<9x1x512xf32, #tpu.memory_space<vmem>>, vector<1x1x512xf32>
    %80 = vector.shape_cast %79 : vector<1x1x512xf32> to vector<1x512xf32>
    %81 = vector.broadcast %80 : vector<1x512xf32> to vector<4x512xf32>
    %82 = arith.mulf %78, %81 : vector<4x512xf32>
    %c8_50 = arith.constant 8 : index
    %c0_51 = arith.constant 0 : index
    %c0_52 = arith.constant 0 : index
    %83 = vector.load %arg4[%c8_50, %c0_51, %c0_52] : memref<9x8x4xbf16, #tpu.memory_space<vmem>>, vector<1x8x4xbf16>
    %84 = vector.shape_cast %83 : vector<1x8x4xbf16> to vector<8x4xbf16>
    %85 = arith.truncf %82 : vector<4x512xf32> to vector<4x512xbf16>
    %cst_53 = arith.constant dense<0.000000e+00> : vector<8x512xf32>
    %86 = tpu.matmul %84, %85, %cst_53 {dimension_numbers = #tpu.dot_dimension_numbers<[1], [0], [0], [1], [0, 0, 1, 1], [], []>} : vector<8x4xbf16>, vector<4x512xbf16>, vector<8x512xf32> -> vector<8x512xf32>
    %87 = arith.addf %77, %86 : vector<8x512xf32>
    %c17_i32_54 = arith.constant 17 : i32
    %88 = tpu.dynamic_rotate %3 by %c17_i32_54 dim 1 : vector<4x512xf32>, i32 -> vector<4x512xf32>
    %c0_55 = arith.constant 0 : index
    %c0_56 = arith.constant 0 : index
    %c0_57 = arith.constant 0 : index
    %89 = vector.load %arg3[%c0_55, %c0_56, %c0_57] : memref<9x1x512xf32, #tpu.memory_space<vmem>>, vector<1x1x512xf32>
    %90 = vector.shape_cast %89 : vector<1x1x512xf32> to vector<1x512xf32>
    %91 = vector.broadcast %90 : vector<1x512xf32> to vector<4x512xf32>
    %92 = arith.mulf %88, %91 : vector<4x512xf32>
    %c0_58 = arith.constant 0 : index
    %c0_59 = arith.constant 0 : index
    %c0_60 = arith.constant 0 : index
    %93 = vector.load %arg5[%c0_58, %c0_59, %c0_60] : memref<9x8x4xbf16, #tpu.memory_space<vmem>>, vector<1x8x4xbf16>
    %94 = vector.shape_cast %93 : vector<1x8x4xbf16> to vector<8x4xbf16>
    %95 = arith.truncf %92 : vector<4x512xf32> to vector<4x512xbf16>
    %cst_61 = arith.constant dense<0.000000e+00> : vector<8x512xf32>
    %96 = tpu.matmul %94, %95, %cst_61 {dimension_numbers = #tpu.dot_dimension_numbers<[1], [0], [0], [1], [0, 0, 1, 1], [], []>} : vector<8x4xbf16>, vector<4x512xbf16>, vector<8x512xf32> -> vector<8x512xf32>
    %97 = arith.addf %87, %96 : vector<8x512xf32>
    %c16_i32_62 = arith.constant 16 : i32
    %98 = tpu.dynamic_rotate %3 by %c16_i32_62 dim 1 : vector<4x512xf32>, i32 -> vector<4x512xf32>
    %c1_63 = arith.constant 1 : index
    %c0_64 = arith.constant 0 : index
    %c0_65 = arith.constant 0 : index
    %99 = vector.load %arg3[%c1_63, %c0_64, %c0_65] : memref<9x1x512xf32, #tpu.memory_space<vmem>>, vector<1x1x512xf32>
    %100 = vector.shape_cast %99 : vector<1x1x512xf32> to vector<1x512xf32>
    %101 = vector.broadcast %100 : vector<1x512xf32> to vector<4x512xf32>
    %102 = arith.mulf %98, %101 : vector<4x512xf32>
    %c1_66 = arith.constant 1 : index
    %c0_67 = arith.constant 0 : index
    %c0_68 = arith.constant 0 : index
    %103 = vector.load %arg5[%c1_66, %c0_67, %c0_68] : memref<9x8x4xbf16, #tpu.memory_space<vmem>>, vector<1x8x4xbf16>
    %104 = vector.shape_cast %103 : vector<1x8x4xbf16> to vector<8x4xbf16>
    %105 = arith.truncf %102 : vector<4x512xf32> to vector<4x512xbf16>
    %cst_69 = arith.constant dense<0.000000e+00> : vector<8x512xf32>
    %106 = tpu.matmul %104, %105, %cst_69 {dimension_numbers = #tpu.dot_dimension_numbers<[1], [0], [0], [1], [0, 0, 1, 1], [], []>} : vector<8x4xbf16>, vector<4x512xbf16>, vector<8x512xf32> -> vector<8x512xf32>
    %107 = arith.addf %97, %106 : vector<8x512xf32>
    %c15_i32_70 = arith.constant 15 : i32
    %108 = tpu.dynamic_rotate %3 by %c15_i32_70 dim 1 : vector<4x512xf32>, i32 -> vector<4x512xf32>
    %c2_71 = arith.constant 2 : index
    %c0_72 = arith.constant 0 : index
    %c0_73 = arith.constant 0 : index
    %109 = vector.load %arg3[%c2_71, %c0_72, %c0_73] : memref<9x1x512xf32, #tpu.memory_space<vmem>>, vector<1x1x512xf32>
    %110 = vector.shape_cast %109 : vector<1x1x512xf32> to vector<1x512xf32>
    %111 = vector.broadcast %110 : vector<1x512xf32> to vector<4x512xf32>
    %112 = arith.mulf %108, %111 : vector<4x512xf32>
    %c2_74 = arith.constant 2 : index
    %c0_75 = arith.constant 0 : index
    %c0_76 = arith.constant 0 : index
    %113 = vector.load %arg5[%c2_74, %c0_75, %c0_76] : memref<9x8x4xbf16, #tpu.memory_space<vmem>>, vector<1x8x4xbf16>
    %114 = vector.shape_cast %113 : vector<1x8x4xbf16> to vector<8x4xbf16>
    %115 = arith.truncf %112 : vector<4x512xf32> to vector<4x512xbf16>
    %cst_77 = arith.constant dense<0.000000e+00> : vector<8x512xf32>
    %116 = tpu.matmul %114, %115, %cst_77 {dimension_numbers = #tpu.dot_dimension_numbers<[1], [0], [0], [1], [0, 0, 1, 1], [], []>} : vector<8x4xbf16>, vector<4x512xbf16>, vector<8x512xf32> -> vector<8x512xf32>
    %117 = arith.addf %107, %116 : vector<8x512xf32>
    %c1_i32_78 = arith.constant 1 : i32
    %118 = tpu.dynamic_rotate %3 by %c1_i32_78 dim 1 : vector<4x512xf32>, i32 -> vector<4x512xf32>
    %c3_79 = arith.constant 3 : index
    %c0_80 = arith.constant 0 : index
    %c0_81 = arith.constant 0 : index
    %119 = vector.load %arg3[%c3_79, %c0_80, %c0_81] : memref<9x1x512xf32, #tpu.memory_space<vmem>>, vector<1x1x512xf32>
    %120 = vector.shape_cast %119 : vector<1x1x512xf32> to vector<1x512xf32>
    %121 = vector.broadcast %120 : vector<1x512xf32> to vector<4x512xf32>
    %122 = arith.mulf %118, %121 : vector<4x512xf32>
    %c3_82 = arith.constant 3 : index
    %c0_83 = arith.constant 0 : index
    %c0_84 = arith.constant 0 : index
    %123 = vector.load %arg5[%c3_82, %c0_83, %c0_84] : memref<9x8x4xbf16, #tpu.memory_space<vmem>>, vector<1x8x4xbf16>
    %124 = vector.shape_cast %123 : vector<1x8x4xbf16> to vector<8x4xbf16>
    %125 = arith.truncf %122 : vector<4x512xf32> to vector<4x512xbf16>
    %cst_85 = arith.constant dense<0.000000e+00> : vector<8x512xf32>
    %126 = tpu.matmul %124, %125, %cst_85 {dimension_numbers = #tpu.dot_dimension_numbers<[1], [0], [0], [1], [0, 0, 1, 1], [], []>} : vector<8x4xbf16>, vector<4x512xbf16>, vector<8x512xf32> -> vector<8x512xf32>
    %127 = arith.addf %117, %126 : vector<8x512xf32>
    %c4_86 = arith.constant 4 : index
    %c0_87 = arith.constant 0 : index
    %c0_88 = arith.constant 0 : index
    %128 = vector.load %arg5[%c4_86, %c0_87, %c0_88] : memref<9x8x4xbf16, #tpu.memory_space<vmem>>, vector<1x8x4xbf16>
    %129 = vector.shape_cast %128 : vector<1x8x4xbf16> to vector<8x4xbf16>
    %130 = arith.truncf %3 : vector<4x512xf32> to vector<4x512xbf16>
    %cst_89 = arith.constant dense<0.000000e+00> : vector<8x512xf32>
    %131 = tpu.matmul %129, %130, %cst_89 {dimension_numbers = #tpu.dot_dimension_numbers<[1], [0], [0], [1], [0, 0, 1, 1], [], []>} : vector<8x4xbf16>, vector<4x512xbf16>, vector<8x512xf32> -> vector<8x512xf32>
    %132 = arith.addf %127, %131 : vector<8x512xf32>
    %c511_i32_90 = arith.constant 511 : i32
    %133 = tpu.dynamic_rotate %3 by %c511_i32_90 dim 1 : vector<4x512xf32>, i32 -> vector<4x512xf32>
    %c5_91 = arith.constant 5 : index
    %c0_92 = arith.constant 0 : index
    %c0_93 = arith.constant 0 : index
    %134 = vector.load %arg3[%c5_91, %c0_92, %c0_93] : memref<9x1x512xf32, #tpu.memory_space<vmem>>, vector<1x1x512xf32>
    %135 = vector.shape_cast %134 : vector<1x1x512xf32> to vector<1x512xf32>
    %136 = vector.broadcast %135 : vector<1x512xf32> to vector<4x512xf32>
    %137 = arith.mulf %133, %136 : vector<4x512xf32>
    %c5_94 = arith.constant 5 : index
    %c0_95 = arith.constant 0 : index
    %c0_96 = arith.constant 0 : index
    %138 = vector.load %arg5[%c5_94, %c0_95, %c0_96] : memref<9x8x4xbf16, #tpu.memory_space<vmem>>, vector<1x8x4xbf16>
    %139 = vector.shape_cast %138 : vector<1x8x4xbf16> to vector<8x4xbf16>
    %140 = arith.truncf %137 : vector<4x512xf32> to vector<4x512xbf16>
    %cst_97 = arith.constant dense<0.000000e+00> : vector<8x512xf32>
    %141 = tpu.matmul %139, %140, %cst_97 {dimension_numbers = #tpu.dot_dimension_numbers<[1], [0], [0], [1], [0, 0, 1, 1], [], []>} : vector<8x4xbf16>, vector<4x512xbf16>, vector<8x512xf32> -> vector<8x512xf32>
    %142 = arith.addf %132, %141 : vector<8x512xf32>
    %c497_i32_98 = arith.constant 497 : i32
    %143 = tpu.dynamic_rotate %3 by %c497_i32_98 dim 1 : vector<4x512xf32>, i32 -> vector<4x512xf32>
    %c6_99 = arith.constant 6 : index
    %c0_100 = arith.constant 0 : index
    %c0_101 = arith.constant 0 : index
    %144 = vector.load %arg3[%c6_99, %c0_100, %c0_101] : memref<9x1x512xf32, #tpu.memory_space<vmem>>, vector<1x1x512xf32>
    %145 = vector.shape_cast %144 : vector<1x1x512xf32> to vector<1x512xf32>
    %146 = vector.broadcast %145 : vector<1x512xf32> to vector<4x512xf32>
    %147 = arith.mulf %143, %146 : vector<4x512xf32>
    %c6_102 = arith.constant 6 : index
    %c0_103 = arith.constant 0 : index
    %c0_104 = arith.constant 0 : index
    %148 = vector.load %arg5[%c6_102, %c0_103, %c0_104] : memref<9x8x4xbf16, #tpu.memory_space<vmem>>, vector<1x8x4xbf16>
    %149 = vector.shape_cast %148 : vector<1x8x4xbf16> to vector<8x4xbf16>
    %150 = arith.truncf %147 : vector<4x512xf32> to vector<4x512xbf16>
    %cst_105 = arith.constant dense<0.000000e+00> : vector<8x512xf32>
    %151 = tpu.matmul %149, %150, %cst_105 {dimension_numbers = #tpu.dot_dimension_numbers<[1], [0], [0], [1], [0, 0, 1, 1], [], []>} : vector<8x4xbf16>, vector<4x512xbf16>, vector<8x512xf32> -> vector<8x512xf32>
    %152 = arith.addf %142, %151 : vector<8x512xf32>
    %c496_i32_106 = arith.constant 496 : i32
    %153 = tpu.dynamic_rotate %3 by %c496_i32_106 dim 1 : vector<4x512xf32>, i32 -> vector<4x512xf32>
    %c7_107 = arith.constant 7 : index
    %c0_108 = arith.constant 0 : index
    %c0_109 = arith.constant 0 : index
    %154 = vector.load %arg3[%c7_107, %c0_108, %c0_109] : memref<9x1x512xf32, #tpu.memory_space<vmem>>, vector<1x1x512xf32>
    %155 = vector.shape_cast %154 : vector<1x1x512xf32> to vector<1x512xf32>
    %156 = vector.broadcast %155 : vector<1x512xf32> to vector<4x512xf32>
    %157 = arith.mulf %153, %156 : vector<4x512xf32>
    %c7_110 = arith.constant 7 : index
    %c0_111 = arith.constant 0 : index
    %c0_112 = arith.constant 0 : index
    %158 = vector.load %arg5[%c7_110, %c0_111, %c0_112] : memref<9x8x4xbf16, #tpu.memory_space<vmem>>, vector<1x8x4xbf16>
    %159 = vector.shape_cast %158 : vector<1x8x4xbf16> to vector<8x4xbf16>
    %160 = arith.truncf %157 : vector<4x512xf32> to vector<4x512xbf16>
    %cst_113 = arith.constant dense<0.000000e+00> : vector<8x512xf32>
    %161 = tpu.matmul %159, %160, %cst_113 {dimension_numbers = #tpu.dot_dimension_numbers<[1], [0], [0], [1], [0, 0, 1, 1], [], []>} : vector<8x4xbf16>, vector<4x512xbf16>, vector<8x512xf32> -> vector<8x512xf32>
    %162 = arith.addf %152, %161 : vector<8x512xf32>
    %c495_i32_114 = arith.constant 495 : i32
    %163 = tpu.dynamic_rotate %3 by %c495_i32_114 dim 1 : vector<4x512xf32>, i32 -> vector<4x512xf32>
    %c8_115 = arith.constant 8 : index
    %c0_116 = arith.constant 0 : index
    %c0_117 = arith.constant 0 : index
    %164 = vector.load %arg3[%c8_115, %c0_116, %c0_117] : memref<9x1x512xf32, #tpu.memory_space<vmem>>, vector<1x1x512xf32>
    %165 = vector.shape_cast %164 : vector<1x1x512xf32> to vector<1x512xf32>
    %166 = vector.broadcast %165 : vector<1x512xf32> to vector<4x512xf32>
    %167 = arith.mulf %163, %166 : vector<4x512xf32>
    %c8_118 = arith.constant 8 : index
    %c0_119 = arith.constant 0 : index
    %c0_120 = arith.constant 0 : index
    %168 = vector.load %arg5[%c8_118, %c0_119, %c0_120] : memref<9x8x4xbf16, #tpu.memory_space<vmem>>, vector<1x8x4xbf16>
    %169 = vector.shape_cast %168 : vector<1x8x4xbf16> to vector<8x4xbf16>
    %170 = arith.truncf %167 : vector<4x512xf32> to vector<4x512xbf16>
    %cst_121 = arith.constant dense<0.000000e+00> : vector<8x512xf32>
    %171 = tpu.matmul %169, %170, %cst_121 {dimension_numbers = #tpu.dot_dimension_numbers<[1], [0], [0], [1], [0, 0, 1, 1], [], []>} : vector<8x4xbf16>, vector<4x512xbf16>, vector<8x512xf32> -> vector<8x512xf32>
    %172 = arith.addf %162, %171 : vector<8x512xf32>
    %cst_122 = arith.constant 0.000000e+00 : f32
    %173 = vector.broadcast %cst_122 : f32 to vector<8x512xf32>
    %174 = arith.maximumf %172, %173 : vector<8x512xf32>
    %c17_i32_123 = arith.constant 17 : i32
    %175 = tpu.dynamic_rotate %174 by %c17_i32_123 dim 1 : vector<8x512xf32>, i32 -> vector<8x512xf32>
    %c0_124 = arith.constant 0 : index
    %c0_125 = arith.constant 0 : index
    %c0_126 = arith.constant 0 : index
    %176 = vector.load %arg3[%c0_124, %c0_125, %c0_126] : memref<9x1x512xf32, #tpu.memory_space<vmem>>, vector<1x1x512xf32>
    %177 = vector.shape_cast %176 : vector<1x1x512xf32> to vector<1x512xf32>
    %178 = vector.broadcast %177 : vector<1x512xf32> to vector<8x512xf32>
    %179 = arith.mulf %175, %178 : vector<8x512xf32>
    %c0_127 = arith.constant 0 : index
    %c0_128 = arith.constant 0 : index
    %c0_129 = arith.constant 0 : index
    %180 = vector.load %arg6[%c0_127, %c0_128, %c0_129] : memref<9x8x8xbf16, #tpu.memory_space<vmem>>, vector<1x8x8xbf16>
    %181 = vector.shape_cast %180 : vector<1x8x8xbf16> to vector<8x8xbf16>
    %182 = arith.truncf %179 : vector<8x512xf32> to vector<8x512xbf16>
    %cst_130 = arith.constant dense<0.000000e+00> : vector<8x512xf32>
    %183 = tpu.matmul %181, %182, %cst_130 {dimension_numbers = #tpu.dot_dimension_numbers<[1], [0], [0], [1], [0, 0, 1, 1], [], []>} : vector<8x8xbf16>, vector<8x512xbf16>, vector<8x512xf32> -> vector<8x512xf32>
    %c16_i32_131 = arith.constant 16 : i32
    %184 = tpu.dynamic_rotate %174 by %c16_i32_131 dim 1 : vector<8x512xf32>, i32 -> vector<8x512xf32>
    %c1_132 = arith.constant 1 : index
    %c0_133 = arith.constant 0 : index
    %c0_134 = arith.constant 0 : index
    %185 = vector.load %arg3[%c1_132, %c0_133, %c0_134] : memref<9x1x512xf32, #tpu.memory_space<vmem>>, vector<1x1x512xf32>
    %186 = vector.shape_cast %185 : vector<1x1x512xf32> to vector<1x512xf32>
    %187 = vector.broadcast %186 : vector<1x512xf32> to vector<8x512xf32>
    %188 = arith.mulf %184, %187 : vector<8x512xf32>
    %c1_135 = arith.constant 1 : index
    %c0_136 = arith.constant 0 : index
    %c0_137 = arith.constant 0 : index
    %189 = vector.load %arg6[%c1_135, %c0_136, %c0_137] : memref<9x8x8xbf16, #tpu.memory_space<vmem>>, vector<1x8x8xbf16>
    %190 = vector.shape_cast %189 : vector<1x8x8xbf16> to vector<8x8xbf16>
    %191 = arith.truncf %188 : vector<8x512xf32> to vector<8x512xbf16>
    %cst_138 = arith.constant dense<0.000000e+00> : vector<8x512xf32>
    %192 = tpu.matmul %190, %191, %cst_138 {dimension_numbers = #tpu.dot_dimension_numbers<[1], [0], [0], [1], [0, 0, 1, 1], [], []>} : vector<8x8xbf16>, vector<8x512xbf16>, vector<8x512xf32> -> vector<8x512xf32>
    %193 = arith.addf %183, %192 : vector<8x512xf32>
    %c15_i32_139 = arith.constant 15 : i32
    %194 = tpu.dynamic_rotate %174 by %c15_i32_139 dim 1 : vector<8x512xf32>, i32 -> vector<8x512xf32>
    %c2_140 = arith.constant 2 : index
    %c0_141 = arith.constant 0 : index
    %c0_142 = arith.constant 0 : index
    %195 = vector.load %arg3[%c2_140, %c0_141, %c0_142] : memref<9x1x512xf32, #tpu.memory_space<vmem>>, vector<1x1x512xf32>
    %196 = vector.shape_cast %195 : vector<1x1x512xf32> to vector<1x512xf32>
    %197 = vector.broadcast %196 : vector<1x512xf32> to vector<8x512xf32>
    %198 = arith.mulf %194, %197 : vector<8x512xf32>
    %c2_143 = arith.constant 2 : index
    %c0_144 = arith.constant 0 : index
    %c0_145 = arith.constant 0 : index
    %199 = vector.load %arg6[%c2_143, %c0_144, %c0_145] : memref<9x8x8xbf16, #tpu.memory_space<vmem>>, vector<1x8x8xbf16>
    %200 = vector.shape_cast %199 : vector<1x8x8xbf16> to vector<8x8xbf16>
    %201 = arith.truncf %198 : vector<8x512xf32> to vector<8x512xbf16>
    %cst_146 = arith.constant dense<0.000000e+00> : vector<8x512xf32>
    %202 = tpu.matmul %200, %201, %cst_146 {dimension_numbers = #tpu.dot_dimension_numbers<[1], [0], [0], [1], [0, 0, 1, 1], [], []>} : vector<8x8xbf16>, vector<8x512xbf16>, vector<8x512xf32> -> vector<8x512xf32>
    %203 = arith.addf %193, %202 : vector<8x512xf32>
    %c1_i32_147 = arith.constant 1 : i32
    %204 = tpu.dynamic_rotate %174 by %c1_i32_147 dim 1 : vector<8x512xf32>, i32 -> vector<8x512xf32>
    %c3_148 = arith.constant 3 : index
    %c0_149 = arith.constant 0 : index
    %c0_150 = arith.constant 0 : index
    %205 = vector.load %arg3[%c3_148, %c0_149, %c0_150] : memref<9x1x512xf32, #tpu.memory_space<vmem>>, vector<1x1x512xf32>
    %206 = vector.shape_cast %205 : vector<1x1x512xf32> to vector<1x512xf32>
    %207 = vector.broadcast %206 : vector<1x512xf32> to vector<8x512xf32>
    %208 = arith.mulf %204, %207 : vector<8x512xf32>
    %c3_151 = arith.constant 3 : index
    %c0_152 = arith.constant 0 : index
    %c0_153 = arith.constant 0 : index
    %209 = vector.load %arg6[%c3_151, %c0_152, %c0_153] : memref<9x8x8xbf16, #tpu.memory_space<vmem>>, vector<1x8x8xbf16>
    %210 = vector.shape_cast %209 : vector<1x8x8xbf16> to vector<8x8xbf16>
    %211 = arith.truncf %208 : vector<8x512xf32> to vector<8x512xbf16>
    %cst_154 = arith.constant dense<0.000000e+00> : vector<8x512xf32>
    %212 = tpu.matmul %210, %211, %cst_154 {dimension_numbers = #tpu.dot_dimension_numbers<[1], [0], [0], [1], [0, 0, 1, 1], [], []>} : vector<8x8xbf16>, vector<8x512xbf16>, vector<8x512xf32> -> vector<8x512xf32>
    %213 = arith.addf %203, %212 : vector<8x512xf32>
    %c4_155 = arith.constant 4 : index
    %c0_156 = arith.constant 0 : index
    %c0_157 = arith.constant 0 : index
    %214 = vector.load %arg6[%c4_155, %c0_156, %c0_157] : memref<9x8x8xbf16, #tpu.memory_space<vmem>>, vector<1x8x8xbf16>
    %215 = vector.shape_cast %214 : vector<1x8x8xbf16> to vector<8x8xbf16>
    %216 = arith.truncf %174 : vector<8x512xf32> to vector<8x512xbf16>
    %cst_158 = arith.constant dense<0.000000e+00> : vector<8x512xf32>
    %217 = tpu.matmul %215, %216, %cst_158 {dimension_numbers = #tpu.dot_dimension_numbers<[1], [0], [0], [1], [0, 0, 1, 1], [], []>} : vector<8x8xbf16>, vector<8x512xbf16>, vector<8x512xf32> -> vector<8x512xf32>
    %218 = arith.addf %213, %217 : vector<8x512xf32>
    %c511_i32_159 = arith.constant 511 : i32
    %219 = tpu.dynamic_rotate %174 by %c511_i32_159 dim 1 : vector<8x512xf32>, i32 -> vector<8x512xf32>
    %c5_160 = arith.constant 5 : index
    %c0_161 = arith.constant 0 : index
    %c0_162 = arith.constant 0 : index
    %220 = vector.load %arg3[%c5_160, %c0_161, %c0_162] : memref<9x1x512xf32, #tpu.memory_space<vmem>>, vector<1x1x512xf32>
    %221 = vector.shape_cast %220 : vector<1x1x512xf32> to vector<1x512xf32>
    %222 = vector.broadcast %221 : vector<1x512xf32> to vector<8x512xf32>
    %223 = arith.mulf %219, %222 : vector<8x512xf32>
    %c5_163 = arith.constant 5 : index
    %c0_164 = arith.constant 0 : index
    %c0_165 = arith.constant 0 : index
    %224 = vector.load %arg6[%c5_163, %c0_164, %c0_165] : memref<9x8x8xbf16, #tpu.memory_space<vmem>>, vector<1x8x8xbf16>
    %225 = vector.shape_cast %224 : vector<1x8x8xbf16> to vector<8x8xbf16>
    %226 = arith.truncf %223 : vector<8x512xf32> to vector<8x512xbf16>
    %cst_166 = arith.constant dense<0.000000e+00> : vector<8x512xf32>
    %227 = tpu.matmul %225, %226, %cst_166 {dimension_numbers = #tpu.dot_dimension_numbers<[1], [0], [0], [1], [0, 0, 1, 1], [], []>} : vector<8x8xbf16>, vector<8x512xbf16>, vector<8x512xf32> -> vector<8x512xf32>
    %228 = arith.addf %218, %227 : vector<8x512xf32>
    %c497_i32_167 = arith.constant 497 : i32
    %229 = tpu.dynamic_rotate %174 by %c497_i32_167 dim 1 : vector<8x512xf32>, i32 -> vector<8x512xf32>
    %c6_168 = arith.constant 6 : index
    %c0_169 = arith.constant 0 : index
    %c0_170 = arith.constant 0 : index
    %230 = vector.load %arg3[%c6_168, %c0_169, %c0_170] : memref<9x1x512xf32, #tpu.memory_space<vmem>>, vector<1x1x512xf32>
    %231 = vector.shape_cast %230 : vector<1x1x512xf32> to vector<1x512xf32>
    %232 = vector.broadcast %231 : vector<1x512xf32> to vector<8x512xf32>
    %233 = arith.mulf %229, %232 : vector<8x512xf32>
    %c6_171 = arith.constant 6 : index
    %c0_172 = arith.constant 0 : index
    %c0_173 = arith.constant 0 : index
    %234 = vector.load %arg6[%c6_171, %c0_172, %c0_173] : memref<9x8x8xbf16, #tpu.memory_space<vmem>>, vector<1x8x8xbf16>
    %235 = vector.shape_cast %234 : vector<1x8x8xbf16> to vector<8x8xbf16>
    %236 = arith.truncf %233 : vector<8x512xf32> to vector<8x512xbf16>
    %cst_174 = arith.constant dense<0.000000e+00> : vector<8x512xf32>
    %237 = tpu.matmul %235, %236, %cst_174 {dimension_numbers = #tpu.dot_dimension_numbers<[1], [0], [0], [1], [0, 0, 1, 1], [], []>} : vector<8x8xbf16>, vector<8x512xbf16>, vector<8x512xf32> -> vector<8x512xf32>
    %238 = arith.addf %228, %237 : vector<8x512xf32>
    %c496_i32_175 = arith.constant 496 : i32
    %239 = tpu.dynamic_rotate %174 by %c496_i32_175 dim 1 : vector<8x512xf32>, i32 -> vector<8x512xf32>
    %c7_176 = arith.constant 7 : index
    %c0_177 = arith.constant 0 : index
    %c0_178 = arith.constant 0 : index
    %240 = vector.load %arg3[%c7_176, %c0_177, %c0_178] : memref<9x1x512xf32, #tpu.memory_space<vmem>>, vector<1x1x512xf32>
    %241 = vector.shape_cast %240 : vector<1x1x512xf32> to vector<1x512xf32>
    %242 = vector.broadcast %241 : vector<1x512xf32> to vector<8x512xf32>
    %243 = arith.mulf %239, %242 : vector<8x512xf32>
    %c7_179 = arith.constant 7 : index
    %c0_180 = arith.constant 0 : index
    %c0_181 = arith.constant 0 : index
    %244 = vector.load %arg6[%c7_179, %c0_180, %c0_181] : memref<9x8x8xbf16, #tpu.memory_space<vmem>>, vector<1x8x8xbf16>
    %245 = vector.shape_cast %244 : vector<1x8x8xbf16> to vector<8x8xbf16>
    %246 = arith.truncf %243 : vector<8x512xf32> to vector<8x512xbf16>
    %cst_182 = arith.constant dense<0.000000e+00> : vector<8x512xf32>
    %247 = tpu.matmul %245, %246, %cst_182 {dimension_numbers = #tpu.dot_dimension_numbers<[1], [0], [0], [1], [0, 0, 1, 1], [], []>} : vector<8x8xbf16>, vector<8x512xbf16>, vector<8x512xf32> -> vector<8x512xf32>
    %248 = arith.addf %238, %247 : vector<8x512xf32>
    %c495_i32_183 = arith.constant 495 : i32
    %249 = tpu.dynamic_rotate %174 by %c495_i32_183 dim 1 : vector<8x512xf32>, i32 -> vector<8x512xf32>
    %c8_184 = arith.constant 8 : index
    %c0_185 = arith.constant 0 : index
    %c0_186 = arith.constant 0 : index
    %250 = vector.load %arg3[%c8_184, %c0_185, %c0_186] : memref<9x1x512xf32, #tpu.memory_space<vmem>>, vector<1x1x512xf32>
    %251 = vector.shape_cast %250 : vector<1x1x512xf32> to vector<1x512xf32>
    %252 = vector.broadcast %251 : vector<1x512xf32> to vector<8x512xf32>
    %253 = arith.mulf %249, %252 : vector<8x512xf32>
    %c8_187 = arith.constant 8 : index
    %c0_188 = arith.constant 0 : index
    %c0_189 = arith.constant 0 : index
    %254 = vector.load %arg6[%c8_187, %c0_188, %c0_189] : memref<9x8x8xbf16, #tpu.memory_space<vmem>>, vector<1x8x8xbf16>
    %255 = vector.shape_cast %254 : vector<1x8x8xbf16> to vector<8x8xbf16>
    %256 = arith.truncf %253 : vector<8x512xf32> to vector<8x512xbf16>
    %cst_190 = arith.constant dense<0.000000e+00> : vector<8x512xf32>
    %257 = tpu.matmul %255, %256, %cst_190 {dimension_numbers = #tpu.dot_dimension_numbers<[1], [0], [0], [1], [0, 0, 1, 1], [], []>} : vector<8x8xbf16>, vector<8x512xbf16>, vector<8x512xf32> -> vector<8x512xf32>
    %258 = arith.addf %248, %257 : vector<8x512xf32>
    %cst_191 = arith.constant 0.000000e+00 : f32
    %259 = vector.broadcast %cst_191 : f32 to vector<8x512xf32>
    %260 = arith.maximumf %258, %259 : vector<8x512xf32>
    %c17_i32_192 = arith.constant 17 : i32
    %261 = tpu.dynamic_rotate %260 by %c17_i32_192 dim 1 : vector<8x512xf32>, i32 -> vector<8x512xf32>
    %c0_193 = arith.constant 0 : index
    %c0_194 = arith.constant 0 : index
    %c0_195 = arith.constant 0 : index
    %262 = vector.load %arg3[%c0_193, %c0_194, %c0_195] : memref<9x1x512xf32, #tpu.memory_space<vmem>>, vector<1x1x512xf32>
    %263 = vector.shape_cast %262 : vector<1x1x512xf32> to vector<1x512xf32>
    %264 = vector.broadcast %263 : vector<1x512xf32> to vector<8x512xf32>
    %265 = arith.mulf %261, %264 : vector<8x512xf32>
    %c0_196 = arith.constant 0 : index
    %c0_197 = arith.constant 0 : index
    %c0_198 = arith.constant 0 : index
    %266 = vector.load %arg7[%c0_196, %c0_197, %c0_198] : memref<9x8x8xbf16, #tpu.memory_space<vmem>>, vector<1x8x8xbf16>
    %267 = vector.shape_cast %266 : vector<1x8x8xbf16> to vector<8x8xbf16>
    %268 = arith.truncf %265 : vector<8x512xf32> to vector<8x512xbf16>
    %cst_199 = arith.constant dense<0.000000e+00> : vector<8x512xf32>
    %269 = tpu.matmul %267, %268, %cst_199 {dimension_numbers = #tpu.dot_dimension_numbers<[1], [0], [0], [1], [0, 0, 1, 1], [], []>} : vector<8x8xbf16>, vector<8x512xbf16>, vector<8x512xf32> -> vector<8x512xf32>
    %c16_i32_200 = arith.constant 16 : i32
    %270 = tpu.dynamic_rotate %260 by %c16_i32_200 dim 1 : vector<8x512xf32>, i32 -> vector<8x512xf32>
    %c1_201 = arith.constant 1 : index
    %c0_202 = arith.constant 0 : index
    %c0_203 = arith.constant 0 : index
    %271 = vector.load %arg3[%c1_201, %c0_202, %c0_203] : memref<9x1x512xf32, #tpu.memory_space<vmem>>, vector<1x1x512xf32>
    %272 = vector.shape_cast %271 : vector<1x1x512xf32> to vector<1x512xf32>
    %273 = vector.broadcast %272 : vector<1x512xf32> to vector<8x512xf32>
    %274 = arith.mulf %270, %273 : vector<8x512xf32>
    %c1_204 = arith.constant 1 : index
    %c0_205 = arith.constant 0 : index
    %c0_206 = arith.constant 0 : index
    %275 = vector.load %arg7[%c1_204, %c0_205, %c0_206] : memref<9x8x8xbf16, #tpu.memory_space<vmem>>, vector<1x8x8xbf16>
    %276 = vector.shape_cast %275 : vector<1x8x8xbf16> to vector<8x8xbf16>
    %277 = arith.truncf %274 : vector<8x512xf32> to vector<8x512xbf16>
    %cst_207 = arith.constant dense<0.000000e+00> : vector<8x512xf32>
    %278 = tpu.matmul %276, %277, %cst_207 {dimension_numbers = #tpu.dot_dimension_numbers<[1], [0], [0], [1], [0, 0, 1, 1], [], []>} : vector<8x8xbf16>, vector<8x512xbf16>, vector<8x512xf32> -> vector<8x512xf32>
    %279 = arith.addf %269, %278 : vector<8x512xf32>
    %c15_i32_208 = arith.constant 15 : i32
    %280 = tpu.dynamic_rotate %260 by %c15_i32_208 dim 1 : vector<8x512xf32>, i32 -> vector<8x512xf32>
    %c2_209 = arith.constant 2 : index
    %c0_210 = arith.constant 0 : index
    %c0_211 = arith.constant 0 : index
    %281 = vector.load %arg3[%c2_209, %c0_210, %c0_211] : memref<9x1x512xf32, #tpu.memory_space<vmem>>, vector<1x1x512xf32>
    %282 = vector.shape_cast %281 : vector<1x1x512xf32> to vector<1x512xf32>
    %283 = vector.broadcast %282 : vector<1x512xf32> to vector<8x512xf32>
    %284 = arith.mulf %280, %283 : vector<8x512xf32>
    %c2_212 = arith.constant 2 : index
    %c0_213 = arith.constant 0 : index
    %c0_214 = arith.constant 0 : index
    %285 = vector.load %arg7[%c2_212, %c0_213, %c0_214] : memref<9x8x8xbf16, #tpu.memory_space<vmem>>, vector<1x8x8xbf16>
    %286 = vector.shape_cast %285 : vector<1x8x8xbf16> to vector<8x8xbf16>
    %287 = arith.truncf %284 : vector<8x512xf32> to vector<8x512xbf16>
    %cst_215 = arith.constant dense<0.000000e+00> : vector<8x512xf32>
    %288 = tpu.matmul %286, %287, %cst_215 {dimension_numbers = #tpu.dot_dimension_numbers<[1], [0], [0], [1], [0, 0, 1, 1], [], []>} : vector<8x8xbf16>, vector<8x512xbf16>, vector<8x512xf32> -> vector<8x512xf32>
    %289 = arith.addf %279, %288 : vector<8x512xf32>
    %c1_i32_216 = arith.constant 1 : i32
    %290 = tpu.dynamic_rotate %260 by %c1_i32_216 dim 1 : vector<8x512xf32>, i32 -> vector<8x512xf32>
    %c3_217 = arith.constant 3 : index
    %c0_218 = arith.constant 0 : index
    %c0_219 = arith.constant 0 : index
    %291 = vector.load %arg3[%c3_217, %c0_218, %c0_219] : memref<9x1x512xf32, #tpu.memory_space<vmem>>, vector<1x1x512xf32>
    %292 = vector.shape_cast %291 : vector<1x1x512xf32> to vector<1x512xf32>
    %293 = vector.broadcast %292 : vector<1x512xf32> to vector<8x512xf32>
    %294 = arith.mulf %290, %293 : vector<8x512xf32>
    %c3_220 = arith.constant 3 : index
    %c0_221 = arith.constant 0 : index
    %c0_222 = arith.constant 0 : index
    %295 = vector.load %arg7[%c3_220, %c0_221, %c0_222] : memref<9x8x8xbf16, #tpu.memory_space<vmem>>, vector<1x8x8xbf16>
    %296 = vector.shape_cast %295 : vector<1x8x8xbf16> to vector<8x8xbf16>
    %297 = arith.truncf %294 : vector<8x512xf32> to vector<8x512xbf16>
    %cst_223 = arith.constant dense<0.000000e+00> : vector<8x512xf32>
    %298 = tpu.matmul %296, %297, %cst_223 {dimension_numbers = #tpu.dot_dimension_numbers<[1], [0], [0], [1], [0, 0, 1, 1], [], []>} : vector<8x8xbf16>, vector<8x512xbf16>, vector<8x512xf32> -> vector<8x512xf32>
    %299 = arith.addf %289, %298 : vector<8x512xf32>
    %c4_224 = arith.constant 4 : index
    %c0_225 = arith.constant 0 : index
    %c0_226 = arith.constant 0 : index
    %300 = vector.load %arg7[%c4_224, %c0_225, %c0_226] : memref<9x8x8xbf16, #tpu.memory_space<vmem>>, vector<1x8x8xbf16>
    %301 = vector.shape_cast %300 : vector<1x8x8xbf16> to vector<8x8xbf16>
    %302 = arith.truncf %260 : vector<8x512xf32> to vector<8x512xbf16>
    %cst_227 = arith.constant dense<0.000000e+00> : vector<8x512xf32>
    %303 = tpu.matmul %301, %302, %cst_227 {dimension_numbers = #tpu.dot_dimension_numbers<[1], [0], [0], [1], [0, 0, 1, 1], [], []>} : vector<8x8xbf16>, vector<8x512xbf16>, vector<8x512xf32> -> vector<8x512xf32>
    %304 = arith.addf %299, %303 : vector<8x512xf32>
    %c511_i32_228 = arith.constant 511 : i32
    %305 = tpu.dynamic_rotate %260 by %c511_i32_228 dim 1 : vector<8x512xf32>, i32 -> vector<8x512xf32>
    %c5_229 = arith.constant 5 : index
    %c0_230 = arith.constant 0 : index
    %c0_231 = arith.constant 0 : index
    %306 = vector.load %arg3[%c5_229, %c0_230, %c0_231] : memref<9x1x512xf32, #tpu.memory_space<vmem>>, vector<1x1x512xf32>
    %307 = vector.shape_cast %306 : vector<1x1x512xf32> to vector<1x512xf32>
    %308 = vector.broadcast %307 : vector<1x512xf32> to vector<8x512xf32>
    %309 = arith.mulf %305, %308 : vector<8x512xf32>
    %c5_232 = arith.constant 5 : index
    %c0_233 = arith.constant 0 : index
    %c0_234 = arith.constant 0 : index
    %310 = vector.load %arg7[%c5_232, %c0_233, %c0_234] : memref<9x8x8xbf16, #tpu.memory_space<vmem>>, vector<1x8x8xbf16>
    %311 = vector.shape_cast %310 : vector<1x8x8xbf16> to vector<8x8xbf16>
    %312 = arith.truncf %309 : vector<8x512xf32> to vector<8x512xbf16>
    %cst_235 = arith.constant dense<0.000000e+00> : vector<8x512xf32>
    %313 = tpu.matmul %311, %312, %cst_235 {dimension_numbers = #tpu.dot_dimension_numbers<[1], [0], [0], [1], [0, 0, 1, 1], [], []>} : vector<8x8xbf16>, vector<8x512xbf16>, vector<8x512xf32> -> vector<8x512xf32>
    %314 = arith.addf %304, %313 : vector<8x512xf32>
    %c497_i32_236 = arith.constant 497 : i32
    %315 = tpu.dynamic_rotate %260 by %c497_i32_236 dim 1 : vector<8x512xf32>, i32 -> vector<8x512xf32>
    %c6_237 = arith.constant 6 : index
    %c0_238 = arith.constant 0 : index
    %c0_239 = arith.constant 0 : index
    %316 = vector.load %arg3[%c6_237, %c0_238, %c0_239] : memref<9x1x512xf32, #tpu.memory_space<vmem>>, vector<1x1x512xf32>
    %317 = vector.shape_cast %316 : vector<1x1x512xf32> to vector<1x512xf32>
    %318 = vector.broadcast %317 : vector<1x512xf32> to vector<8x512xf32>
    %319 = arith.mulf %315, %318 : vector<8x512xf32>
    %c6_240 = arith.constant 6 : index
    %c0_241 = arith.constant 0 : index
    %c0_242 = arith.constant 0 : index
    %320 = vector.load %arg7[%c6_240, %c0_241, %c0_242] : memref<9x8x8xbf16, #tpu.memory_space<vmem>>, vector<1x8x8xbf16>
    %321 = vector.shape_cast %320 : vector<1x8x8xbf16> to vector<8x8xbf16>
    %322 = arith.truncf %319 : vector<8x512xf32> to vector<8x512xbf16>
    %cst_243 = arith.constant dense<0.000000e+00> : vector<8x512xf32>
    %323 = tpu.matmul %321, %322, %cst_243 {dimension_numbers = #tpu.dot_dimension_numbers<[1], [0], [0], [1], [0, 0, 1, 1], [], []>} : vector<8x8xbf16>, vector<8x512xbf16>, vector<8x512xf32> -> vector<8x512xf32>
    %324 = arith.addf %314, %323 : vector<8x512xf32>
    %c496_i32_244 = arith.constant 496 : i32
    %325 = tpu.dynamic_rotate %260 by %c496_i32_244 dim 1 : vector<8x512xf32>, i32 -> vector<8x512xf32>
    %c7_245 = arith.constant 7 : index
    %c0_246 = arith.constant 0 : index
    %c0_247 = arith.constant 0 : index
    %326 = vector.load %arg3[%c7_245, %c0_246, %c0_247] : memref<9x1x512xf32, #tpu.memory_space<vmem>>, vector<1x1x512xf32>
    %327 = vector.shape_cast %326 : vector<1x1x512xf32> to vector<1x512xf32>
    %328 = vector.broadcast %327 : vector<1x512xf32> to vector<8x512xf32>
    %329 = arith.mulf %325, %328 : vector<8x512xf32>
    %c7_248 = arith.constant 7 : index
    %c0_249 = arith.constant 0 : index
    %c0_250 = arith.constant 0 : index
    %330 = vector.load %arg7[%c7_248, %c0_249, %c0_250] : memref<9x8x8xbf16, #tpu.memory_space<vmem>>, vector<1x8x8xbf16>
    %331 = vector.shape_cast %330 : vector<1x8x8xbf16> to vector<8x8xbf16>
    %332 = arith.truncf %329 : vector<8x512xf32> to vector<8x512xbf16>
    %cst_251 = arith.constant dense<0.000000e+00> : vector<8x512xf32>
    %333 = tpu.matmul %331, %332, %cst_251 {dimension_numbers = #tpu.dot_dimension_numbers<[1], [0], [0], [1], [0, 0, 1, 1], [], []>} : vector<8x8xbf16>, vector<8x512xbf16>, vector<8x512xf32> -> vector<8x512xf32>
    %334 = arith.addf %324, %333 : vector<8x512xf32>
    %c495_i32_252 = arith.constant 495 : i32
    %335 = tpu.dynamic_rotate %260 by %c495_i32_252 dim 1 : vector<8x512xf32>, i32 -> vector<8x512xf32>
    %c8_253 = arith.constant 8 : index
    %c0_254 = arith.constant 0 : index
    %c0_255 = arith.constant 0 : index
    %336 = vector.load %arg3[%c8_253, %c0_254, %c0_255] : memref<9x1x512xf32, #tpu.memory_space<vmem>>, vector<1x1x512xf32>
    %337 = vector.shape_cast %336 : vector<1x1x512xf32> to vector<1x512xf32>
    %338 = vector.broadcast %337 : vector<1x512xf32> to vector<8x512xf32>
    %339 = arith.mulf %335, %338 : vector<8x512xf32>
    %c8_256 = arith.constant 8 : index
    %c0_257 = arith.constant 0 : index
    %c0_258 = arith.constant 0 : index
    %340 = vector.load %arg7[%c8_256, %c0_257, %c0_258] : memref<9x8x8xbf16, #tpu.memory_space<vmem>>, vector<1x8x8xbf16>
    %341 = vector.shape_cast %340 : vector<1x8x8xbf16> to vector<8x8xbf16>
    %342 = arith.truncf %339 : vector<8x512xf32> to vector<8x512xbf16>
    %cst_259 = arith.constant dense<0.000000e+00> : vector<8x512xf32>
    %343 = tpu.matmul %341, %342, %cst_259 {dimension_numbers = #tpu.dot_dimension_numbers<[1], [0], [0], [1], [0, 0, 1, 1], [], []>} : vector<8x8xbf16>, vector<8x512xbf16>, vector<8x512xf32> -> vector<8x512xf32>
    %344 = arith.addf %334, %343 : vector<8x512xf32>
    %345 = arith.addf %344, %174 : vector<8x512xf32>
    %cst_260 = arith.constant 0.000000e+00 : f32
    %346 = vector.broadcast %cst_260 : f32 to vector<8x512xf32>
    %347 = arith.maximumf %345, %346 : vector<8x512xf32>
    %c0_261 = arith.constant 0 : index
    %c0_262 = arith.constant 0 : index
    %348 = vector.load %arg8[%c0_261, %c0_262] : memref<8x512xf32, #tpu.memory_space<vmem>>, vector<8x512xf32>
    tpu.vector_store %arg8[%c0_261, %c0_262], %347 {strides = array<i32>} : memref<8x512xf32, #tpu.memory_space<vmem>>, vector<8x512xf32>,
    return
  }
  func.func @transform_0(%arg0: i32) -> (i32, i32) {
    %c0_i32 = arith.constant 0 : i32
    %c0_i32_0 = arith.constant 0 : i32
    return %c0_i32, %arg0 : i32, i32
  }
  func.func @transform_1(%arg0: i32) -> (i32, i32) {
    %c0_i32 = arith.constant 0 : i32
    %c0_i32_0 = arith.constant 0 : i32
    return %c0_i32, %arg0 : i32, i32
  }
  func.func @transform_2(%arg0: i32) -> (i32, i32, i32) {
    %c0_i32 = arith.constant 0 : i32
    %c0_i32_0 = arith.constant 0 : i32
    %c0_i32_1 = arith.constant 0 : i32
    %c0_i32_2 = arith.constant 0 : i32
    return %c0_i32, %c0_i32_0, %c0_i32_1 : i32, i32, i32
  }
  func.func @transform_3(%arg0: i32) -> (i32, i32, i32) {
    %c0_i32 = arith.constant 0 : i32
    %c0_i32_0 = arith.constant 0 : i32
    %c0_i32_1 = arith.constant 0 : i32
    %c0_i32_2 = arith.constant 0 : i32
    return %c0_i32, %c0_i32_0, %c0_i32_1 : i32, i32, i32
  }
  func.func @transform_4(%arg0: i32) -> (i32, i32, i32) {
    %c0_i32 = arith.constant 0 : i32
    %c0_i32_0 = arith.constant 0 : i32
    %c0_i32_1 = arith.constant 0 : i32
    %c0_i32_2 = arith.constant 0 : i32
    return %c0_i32, %c0_i32_0, %c0_i32_1 : i32, i32, i32
  }
  func.func @transform_5(%arg0: i32) -> (i32, i32, i32) {
    %c0_i32 = arith.constant 0 : i32
    %c0_i32_0 = arith.constant 0 : i32
    %c0_i32_1 = arith.constant 0 : i32
    %c0_i32_2 = arith.constant 0 : i32
    return %c0_i32, %c0_i32_0, %c0_i32_1 : i32, i32, i32
  }
  func.func @transform_6(%arg0: i32) -> (i32, i32, i32) {
    %c0_i32 = arith.constant 0 : i32
    %c0_i32_0 = arith.constant 0 : i32
    %c0_i32_1 = arith.constant 0 : i32
    %c0_i32_2 = arith.constant 0 : i32
    return %c0_i32, %c0_i32_0, %c0_i32_1 : i32, i32, i32
  }
  func.func @transform_7(%arg0: i32) -> (i32, i32) {
    %c0_i32 = arith.constant 0 : i32
    %c0_i32_0 = arith.constant 0 : i32
    return %c0_i32, %arg0 : i32, i32
  }
}

</mosaic_0001>

<llo_original>
// kernel: res_stack_decoder_forward.1
$region0: #{res_stack_decoder_forward.1}
  #allocation0 [shape = 'u32[]', space=smem, size = 0x4, offset = 0x4, fixed_abs, tag = 'smem constant byte address 0x4 - core index']
  #allocation1 [shape = 'u32[144,128]{1,0:T(1,128)}', space=vmem, size = 0x12000, scoped, tag = 'internal scratch']
  %s0 = inlined_call_operand.vmem [shape: bf16[4,1024], index: 0, kind: input, shape index: {}]
  %s1 = inlined_call_operand.vmem [shape: bf16[4,1024], index: 1, kind: input, shape index: {}]
  %s2 = inlined_call_operand.vmem [shape: f32[9,1,512], index: 2, kind: input, shape index: {}]
  %s3 = inlined_call_operand.vmem [shape: bf16[9,8,4], index: 3, kind: input, shape index: {}]
  %s4 = inlined_call_operand.vmem [shape: bf16[9,8,4], index: 4, kind: input, shape index: {}]
  %s5 = inlined_call_operand.vmem [shape: bf16[9,8,8], index: 5, kind: input, shape index: {}]
  %s6 = inlined_call_operand.vmem [shape: bf16[9,8,8], index: 6, kind: input, shape index: {}]
  %s7 = inlined_call_operand.vmem [shape: f32[8,1024], index: 7, kind: output, shape index: {}]
  %s8 = sld [smem:[#allocation0]]
  $region61: #{res_stack_decoder_forward.1} parent=0
    _
  %s10 = ssub.s32 1, %s8
  %s11 = scalar_select 0, %s10, %s8
  loop: start=0, step=1, limit=4
  $region2: #{res_stack_decoder_forward.1} parent=0 // loop_pre_header
    _
  $region3: #{res_stack_decoder_forward.1} parent=0 // loop_header
    %s13 = sphi 0, %s17
    %p14 = scmp.ge.s32.totalorder %s13, 4
    %s23 = sphi 0, %s25
    %s26 = sphi 0, %s23
    %s27 = sphi 0, %s26
    %s43 = sphi 0, %s27
    %s49 = sphi 0, %s51
    %s52 = sphi 0, %s49
    %s53 = sphi 0, %s52
    %s69 = sphi 0, %s53
    %s73 = sphi 0, %s73
    %s75 = sphi 0, %s73
    %s76 = sphi 0, %s75
    %s90 = sphi 0, %s76
    %s94 = sphi 0, %s94
    %s96 = sphi 0, %s94
    %s97 = sphi 0, %s96
    %s111 = sphi 0, %s97
    %s115 = sphi 0, %s115
    %s117 = sphi 0, %s115
    %s118 = sphi 0, %s117
    %s132 = sphi 0, %s118
    %s136 = sphi 0, %s136
    %s138 = sphi 0, %s136
    %s139 = sphi 0, %s138
    %s153 = sphi 0, %s139
    %s157 = sphi 0, %s157
    %s159 = sphi 0, %s157
    %s160 = sphi 0, %s159
    %s174 = sphi 0, %s160
    %s180 = sphi 0, %s182
    %s183 = sphi 0, %s180
    %s184 = sphi 0, %s183
    %s200 = sphi 0, %s184
  $region4: #{res_stack_decoder_forward.1} parent=0 // loop_header_branch
    %16 = sbr.rel (%p14) target = $region8
  $region5: #{res_stack_decoder_forward.1} parent=0 // loop_body
    %s18 = ssub.s32 %s13, 1
    %s19 = ssub.s32 %s13, 2
    %s20 = sadd.s32 %s13, 1
    %s21 = ssub.s32 %s13, %s20
    %p22 = scmp.eq.s32.totalorder %s21, 0
    %s24 = sadd.s32 %s23, 1
    %s25 = scalar_select %p22, %s23, %s24
    %p28 = pneg %p22
    %p29 = scmp.eq.s32.totalorder %s13, 1
    %p30 = por %p28, %p29
    %p31 = scmp.ne.s32.totalorder %s23, %s26
    %p32 = scmp.eq.s32.totalorder %s13, 0
    %p33 = por %p31, %p32
    %p34 = scmp.ne.s32.totalorder %s23, %s26
    %p35 = scmp.eq.s32.totalorder %s18, 1
    %p36 = por %p34, %p35
    %p37 = scmp.ne.s32.totalorder %s26, %s27
    %p38 = scmp.eq.s32.totalorder %s18, 0
    %p39 = por %p37, %p38
    %p40 = scmp.ne.s32.totalorder %s26, %s27
    %p41 = scmp.eq.s32.totalorder %s19, 1
    %p42 = por %p40, %p41
    %p44 = scmp.ne.s32.totalorder %s27, %s43
    %p45 = scmp.eq.s32.totalorder %s19, 0
    %p46 = por %p44, %p45
    %s47 = ssub.s32 %s13, %s20
    %p48 = scmp.eq.s32.totalorder %s47, 0
    %s50 = sadd.s32 %s49, 1
    %s51 = scalar_select %p48, %s49, %s50
    %p54 = pneg %p48
    %p55 = scmp.eq.s32.totalorder %s13, 1
    %p56 = por %p54, %p55
    %p57 = scmp.ne.s32.totalorder %s49, %s52
    %p58 = scmp.eq.s32.totalorder %s13, 0
    %p59 = por %p57, %p58
    %p60 = scmp.ne.s32.totalorder %s49, %s52
    %p61 = scmp.eq.s32.totalorder %s18, 1
    %p62 = por %p60, %p61
    %p63 = scmp.ne.s32.totalorder %s52, %s53
    %p64 = scmp.eq.s32.totalorder %s18, 0
    %p65 = por %p63, %p64
    %p66 = scmp.ne.s32.totalorder %s52, %s53
    %p67 = scmp.eq.s32.totalorder %s19, 1
    %p68 = por %p66, %p67
    %p70 = scmp.ne.s32.totalorder %s53, %s69
    %p71 = scmp.eq.s32.totalorder %s19, 0
    %p72 = por %p70, %p71
    %s74 = sadd.s32 %s73, 1
    %p77 = scmp.eq.s32.totalorder %s13, 1
    %p78 = scmp.ne.s32.totalorder %s73, %s75
    %p79 = scmp.eq.s32.totalorder %s13, 0
    %p80 = por %p78, %p79
    %p81 = scmp.ne.s32.totalorder %s73, %s75
    %p82 = scmp.eq.s32.totalorder %s18, 1
    %p83 = por %p81, %p82
    %p84 = scmp.ne.s32.totalorder %s75, %s76
    %p85 = scmp.eq.s32.totalorder %s18, 0
    %p86 = por %p84, %p85
    %p87 = scmp.ne.s32.totalorder %s75, %s76
    %p88 = scmp.eq.s32.totalorder %s19, 1
    %p89 = por %p87, %p88
    %p91 = scmp.ne.s32.totalorder %s76, %s90
    %p92 = scmp.eq.s32.totalorder %s19, 0
    %p93 = por %p91, %p92
    %s95 = sadd.s32 %s94, 1
    %p98 = scmp.eq.s32.totalorder %s13, 1
    %p99 = scmp.ne.s32.totalorder %s94, %s96
    %p100 = scmp.eq.s32.totalorder %s13, 0
    %p101 = por %p99, %p100
    %p102 = scmp.ne.s32.totalorder %s94, %s96
    %p103 = scmp.eq.s32.totalorder %s18, 1
    %p104 = por %p102, %p103
    %p105 = scmp.ne.s32.totalorder %s96, %s97
    %p106 = scmp.eq.s32.totalorder %s18, 0
    %p107 = por %p105, %p106
    %p108 = scmp.ne.s32.totalorder %s96, %s97
    %p109 = scmp.eq.s32.totalorder %s19, 1
    %p110 = por %p108, %p109
    %p112 = scmp.ne.s32.totalorder %s97, %s111
    %p113 = scmp.eq.s32.totalorder %s19, 0
    %p114 = por %p112, %p113
    %s116 = sadd.s32 %s115, 1
    %p119 = scmp.eq.s32.totalorder %s13, 1
    %p120 = scmp.ne.s32.totalorder %s115, %s117
    %p121 = scmp.eq.s32.totalorder %s13, 0
    %p122 = por %p120, %p121
    %p123 = scmp.ne.s32.totalorder %s115, %s117
    %p124 = scmp.eq.s32.totalorder %s18, 1
    %p125 = por %p123, %p124
    %p126 = scmp.ne.s32.totalorder %s117, %s118
    %p127 = scmp.eq.s32.totalorder %s18, 0
    %p128 = por %p126, %p127
    %p129 = scmp.ne.s32.totalorder %s117, %s118
    %p130 = scmp.eq.s32.totalorder %s19, 1
    %p131 = por %p129, %p130
    %p133 = scmp.ne.s32.totalorder %s118, %s132
    %p134 = scmp.eq.s32.totalorder %s19, 0
    %p135 = por %p133, %p134
    %s137 = sadd.s32 %s136, 1
    %p140 = scmp.eq.s32.totalorder %s13, 1
    %p141 = scmp.ne.s32.totalorder %s136, %s138
    %p142 = scmp.eq.s32.totalorder %s13, 0
    %p143 = por %p141, %p142
    %p144 = scmp.ne.s32.totalorder %s136, %s138
    %p145 = scmp.eq.s32.totalorder %s18, 1
    %p146 = por %p144, %p145
    %p147 = scmp.ne.s32.totalorder %s138, %s139
    %p148 = scmp.eq.s32.totalorder %s18, 0
    %p149 = por %p147, %p148
    %p150 = scmp.ne.s32.totalorder %s138, %s139
    %p151 = scmp.eq.s32.totalorder %s19, 1
    %p152 = por %p150, %p151
    %p154 = scmp.ne.s32.totalorder %s139, %s153
    %p155 = scmp.eq.s32.totalorder %s19, 0
    %p156 = por %p154, %p155
    %s158 = sadd.s32 %s157, 1
    %p161 = scmp.eq.s32.totalorder %s13, 1
    %p162 = scmp.ne.s32.totalorder %s157, %s159
    %p163 = scmp.eq.s32.totalorder %s13, 0
    %p164 = por %p162, %p163
    %p165 = scmp.ne.s32.totalorder %s157, %s159
    %p166 = scmp.eq.s32.totalorder %s18, 1
    %p167 = por %p165, %p166
    %p168 = scmp.ne.s32.totalorder %s159, %s160
    %p169 = scmp.eq.s32.totalorder %s18, 0
    %p170 = por %p168, %p169
    %p171 = scmp.ne.s32.totalorder %s159, %s160
    %p172 = scmp.eq.s32.totalorder %s19, 1
    %p173 = por %p171, %p172
    %p175 = scmp.ne.s32.totalorder %s160, %s174
    %p176 = scmp.eq.s32.totalorder %s19, 0
    %p177 = por %p175, %p176
    %s178 = ssub.s32 %s13, %s20
    %p179 = scmp.eq.s32.totalorder %s178, 0
    %s181 = sadd.s32 %s180, 1
    %s182 = scalar_select %p179, %s180, %s181
    %p185 = pneg %p179
    %p186 = scmp.eq.s32.totalorder %s13, 1
    %p187 = por %p185, %p186
    %p188 = scmp.ne.s32.totalorder %s180, %s183
    %p189 = scmp.eq.s32.totalorder %s13, 0
    %p190 = por %p188, %p189
    %p191 = scmp.ne.s32.totalorder %s180, %s183
    %p192 = scmp.eq.s32.totalorder %s18, 1
    %p193 = por %p191, %p192
    %p194 = scmp.ne.s32.totalorder %s183, %s184
    %p195 = scmp.eq.s32.totalorder %s18, 0
    %p196 = por %p194, %p195
    %p197 = scmp.ne.s32.totalorder %s183, %s184
    %p198 = scmp.eq.s32.totalorder %s19, 1
    %p199 = por %p197, %p198
    %p201 = scmp.ne.s32.totalorder %s184, %s200
    %p202 = scmp.eq.s32.totalorder %s19, 0
    %p203 = por %p201, %p202
    %p204 = scmp.le.s32.totalorder 1, %s13
    %p205 = scmp.lt.s32.totalorder %s13, 3
    %p206 = pnand %p204, %p205
    %p207 = pneg %p206
    // Predicated region
    $region9: #{res_stack_decoder_forward.1} parent=5 // pred_check
      _
    $region10: #{res_stack_decoder_forward.1} parent=5 // pred_check_branch
      %209 = sbr.rel (%p206) target = $region12
    $region11: #{res_stack_decoder_forward.1} parent=5 // pred_region
      %s210 = ssub.s32 %s13, 1
      // Predicated region
      $region13: #{res_stack_decoder_forward.1} parent=11 // pred_check
        %p211 = pneg %p86
      $region14: #{res_stack_decoder_forward.1} parent=11 // pred_check_branch
        %213 = sbr.rel (%p211) target = $region16
      $region15: #{res_stack_decoder_forward.1} parent=11 // pred_region
        _
      $region16: #{res_stack_decoder_forward.1} parent=11 // pred_fallthru
        _
      // Predicated region
      $region17: #{res_stack_decoder_forward.1} parent=11 // pred_check
        %p214 = pneg %p107
      $region18: #{res_stack_decoder_forward.1} parent=11 // pred_check_branch
        %216 = sbr.rel (%p214) target = $region20
      $region19: #{res_stack_decoder_forward.1} parent=11 // pred_region
        _
      $region20: #{res_stack_decoder_forward.1} parent=11 // pred_fallthru
        _
      // Predicated region
      $region21: #{res_stack_decoder_forward.1} parent=11 // pred_check
        %p217 = pneg %p128
      $region22: #{res_stack_decoder_forward.1} parent=11 // pred_check_branch
        %219 = sbr.rel (%p217) target = $region24
      $region23: #{res_stack_decoder_forward.1} parent=11 // pred_region
        _
      $region24: #{res_stack_decoder_forward.1} parent=11 // pred_fallthru
        _
      // Predicated region
      $region25: #{res_stack_decoder_forward.1} parent=11 // pred_check
        %p220 = pneg %p149
      $region26: #{res_stack_decoder_forward.1} parent=11 // pred_check_branch
        %222 = sbr.rel (%p220) target = $region28
      $region27: #{res_stack_decoder_forward.1} parent=11 // pred_region
        _
      $region28: #{res_stack_decoder_forward.1} parent=11 // pred_fallthru
        _
      // Predicated region
      $region29: #{res_stack_decoder_forward.1} parent=11 // pred_check
        %p223 = pneg %p170
      $region30: #{res_stack_decoder_forward.1} parent=11 // pred_check_branch
        %225 = sbr.rel (%p223) target = $region32
      $region31: #{res_stack_decoder_forward.1} parent=11 // pred_region
        _
      $region32: #{res_stack_decoder_forward.1} parent=11 // pred_fallthru
        _
    $region12: #{res_stack_decoder_forward.1} parent=5 // pred_fallthru
      _
    %p226 = scmp.lt.s32.totalorder %s13, 2
    // Predicated region
    $region33: #{res_stack_decoder_forward.1} parent=5 // pred_check
      %p227 = pneg %p226
    $region34: #{res_stack_decoder_forward.1} parent=5 // pred_check_branch
      %229 = sbr.rel (%p227) target = $region36
    $region35: #{res_stack_decoder_forward.1} parent=5 // pred_region
      // Predicated region
      $region37: #{res_stack_decoder_forward.1} parent=35 // pred_check
        %p230 = pneg %p33
      $region38: #{res_stack_decoder_forward.1} parent=35 // pred_check_branch
        %232 = sbr.rel (%p230) target = $region40
      $region39: #{res_stack_decoder_forward.1} parent=35 // pred_region
        %s233 = smul.u32 4, %s13
        %p234 = scmp.lt.s32.totalorder %s233, 7
        %s235 = scalar_select %p234, %s233, 7
        %s236 = smul.addr %s235, 2
        %s237 = scalar_lea.vmem %s0, %s236
        %s238 = smul.u32 4, %s13
      $region40: #{res_stack_decoder_forward.1} parent=35 // pred_fallthru
        _
      // Predicated region
      $region41: #{res_stack_decoder_forward.1} parent=35 // pred_check
        %p239 = pneg %p59
      $region42: #{res_stack_decoder_forward.1} parent=35 // pred_check_branch
        %241 = sbr.rel (%p239) target = $region44
      $region43: #{res_stack_decoder_forward.1} parent=35 // pred_region
        %s242 = smul.u32 4, %s13
        %p243 = scmp.lt.s32.totalorder %s242, 7
        %s244 = scalar_select %p243, %s242, 7
        %s245 = smul.addr %s244, 2
        %s246 = scalar_lea.vmem %s1, %s245
        %s247 = smul.u32 4, %s13
      $region44: #{res_stack_decoder_forward.1} parent=35 // pred_fallthru
        _
    $region36: #{res_stack_decoder_forward.1} parent=5 // pred_fallthru
      _
    %p248 = scmp.le.s32.totalorder 1, %s13
    %p249 = scmp.lt.s32.totalorder %s13, 3
    %p250 = pnand %p248, %p249
    %p251 = pneg %p250
    // Predicated region
    $region45: #{res_stack_decoder_forward.1} parent=5 // pred_check
      _
    $region46: #{res_stack_decoder_forward.1} parent=5 // pred_check_branch
      %253 = sbr.rel (%p250) target = $region48
    $region47: #{res_stack_decoder_forward.1} parent=5 // pred_region
      %s254 = ssub.s32 %s13, 1
      %s255 = smul.u32 4, %s18
      %p256 = scmp.lt.s32.totalorder %s255, 7
      %s257 = scalar_select %p256, %s255, 7
      %s258 = smul.addr %s257, 2
      %s259 = scalar_lea.vmem %s0, %s258
      %p260 = pneg %p39
      %p261 = pneg %p36
      %s262 = smul.u32 4, %s18
      %p263 = scmp.lt.s32.totalorder %s262, 7
      %s264 = scalar_select %p263, %s262, 7
      %s265 = smul.addr %s264, 2
      %s266 = scalar_lea.vmem %s1, %s265
      %p267 = pneg %p65
      %p268 = pneg %p62
      %p269 = pneg %p86
      %p270 = pneg %p83
      %p271 = pneg %p107
      %p272 = pneg %p104
      %p273 = pneg %p128
      %p274 = pneg %p125
      %p275 = pneg %p149
      %p276 = pneg %p146
      %p277 = pneg %p170
      %p278 = pneg %p167
      %p279 = pneg %p196
      %p280 = pneg %p193
      %s281 = smul.u32 4, %s18
      %p282 = scmp.lt.s32.totalorder %s281, 7
      %s283 = scalar_select %p282, %s281, 7
      %s284 = smul.addr %s283, 8
      %s285 = scalar_lea.vmem %s7, %s284
      %s286 = smul.u32 4, %s18
      %p287 = scmp.lt.s32.totalorder %s286, 7
      %s288 = scalar_select %p287, %s286, 7
      %s289 = smul.addr %s288, 2
      %s290 = scalar_lea.vmem %s0, %s289
      %s291 = smul.u32 4, %s18
      %s292 = smul.u32 4, %s18
      %p293 = scmp.lt.s32.totalorder %s292, 7
      %s294 = scalar_select %p293, %s292, 7
      %s295 = smul.addr %s294, 2
      %s296 = scalar_lea.vmem %s1, %s295
      %s297 = smul.u32 4, %s18
      %s298 = smul.u32 4, %s18
      %p299 = scmp.lt.s32.totalorder %s298, 7
      %s300 = scalar_select %p299, %s298, 7
      %s301 = smul.addr %s300, 8
      %s302 = scalar_lea.vmem %s7, %s301
      %s303 = smul.u32 4, %s18
      %v305 = vld [vmem:[%s290] sm:$0xff]
      %v306 = vunpack.c.l.bf16 %v305
      %v307 = vunpack.c.h.bf16 %v305
      %v308 = vld [vmem:[%s296] sm:$0xff]
      %v309 = vunpack.c.l.bf16 %v308
      %v310 = vunpack.c.h.bf16 %v308
      %v313 = vcombine.high %v306, %v306
      %v314 = vcombine.high %v307, %v307
      %317 = vrot.lane.b32.xlu0 %v306, 17
      %v318 = vpop.permute.xlu0 %317
      %319 = vrot.lane.b32.xlu0 %v313, 17
      %v320 = vpop.permute.xlu0 %319
      %321 = vrot.lane.b32.xlu0 %v307, 17
      %v322 = vpop.permute.xlu0 %321
      %323 = vrot.lane.b32.xlu0 %v314, 17
      %v324 = vpop.permute.xlu0 %323
      %v325 = vlaneseq
      %v326 = vand.u32 %v325, 127
      %vm327 = vcmp.lt.s32.totalorder %v326, 17
      %v328 = vsel %vm327, %v322, %v324
      %v329 = vsel %vm327, %v320, %v322
      %v330 = vsel %vm327, %v318, %v320
      %v331 = vsel %vm327, %v324, %v318
      %v332 = vld [vmem:[%s2] sm:$0xf]
      %v334 = vlaneseq
      %v335 = vshrl.u32 %v334, 7
      %v336 = vsub.s32 0, %v335
      %v337 = vrot.slane %v332, %v336
      %v338 = vlaneseq
      %v339 = vshrl.u32 %v338, 7
      %v340 = vsub.s32 1, %v339
      %v341 = vrot.slane %v332, %v340
      %v342 = vlaneseq
      %v343 = vshrl.u32 %v342, 7
      %v344 = vsub.s32 2, %v343
      %v345 = vrot.slane %v332, %v344
      %v346 = vlaneseq
      %v347 = vshrl.u32 %v346, 7
      %v348 = vsub.s32 3, %v347
      %v349 = vrot.slane %v332, %v348
      %v354 = vmul.f32 %v331, %v337
      %v355 = vmul.f32 %v330, %v341
      %v356 = vmul.f32 %v329, %v345
      %v357 = vmul.f32 %v328, %v349
      %v358 = vld [vmem:[%s3] sm:$0xf]
      %v359 = vpack.c.bf16 %v354, %v354
      %v360 = vpack.c.bf16 %v355, %v355
      %v361 = vpack.c.bf16 %v356, %v356
      %v362 = vpack.c.bf16 %v357, %v357
      %363 = vrot.lane.b32.xlu0 %v306, 16
      %v364 = vpop.permute.xlu0 %363
      %365 = vrot.lane.b32.xlu0 %v313, 16
      %v366 = vpop.permute.xlu0 %365
      %367 = vrot.lane.b32.xlu0 %v307, 16
      %v368 = vpop.permute.xlu0 %367
      %369 = vrot.lane.b32.xlu0 %v314, 16
      %v370 = vpop.permute.xlu0 %369
      %vm371 = vcmp.lt.s32.totalorder %v326, 16
      %v372 = vsel %vm371, %v368, %v370
      %v373 = vsel %vm371, %v366, %v368
      %v374 = vsel %vm371, %v364, %v366
      %v375 = vsel %vm371, %v370, %v364
      %s376 = scalar_lea.vmem %s2, 4
      %v377 = vld [vmem:[%s376] sm:$0xf]
      %v379 = vlaneseq
      %v380 = vshrl.u32 %v379, 7
      %v381 = vsub.s32 0, %v380
      %v382 = vrot.slane %v377, %v381
      %v383 = vlaneseq
      %v384 = vshrl.u32 %v383, 7
      %v385 = vsub.s32 1, %v384
      %v386 = vrot.slane %v377, %v385
      %v387 = vlaneseq
      %v388 = vshrl.u32 %v387, 7
      %v389 = vsub.s32 2, %v388
      %v390 = vrot.slane %v377, %v389
      %v391 = vlaneseq
      %v392 = vshrl.u32 %v391, 7
      %v393 = vsub.s32 3, %v392
      %v394 = vrot.slane %v377, %v393
      %v399 = vmul.f32 %v375, %v382
      %v400 = vmul.f32 %v374, %v386
      %v401 = vmul.f32 %v373, %v390
      %v402 = vmul.f32 %v372, %v394
      %s403 = scalar_lea.vmem %s3, 4
      %v404 = vld [vmem:[%s403] sm:$0xf]
      %v405 = vpack.c.bf16 %v399, %v399
      %v406 = vpack.c.bf16 %v400, %v400
      %v407 = vpack.c.bf16 %v401, %v401
      %v408 = vpack.c.bf16 %v402, %v402
      %vm409 = vcmask 31744
      %v411 = vsel %vm409, %v404, 0
      %vm413 = vcmask 1041408
      %v415 = vsel %vm413, %v405, 0
      %v418 = vsel %vm413, %v406, 0
      %v421 = vsel %vm413, %v407, 0
      %v424 = vsel %vm413, %v408, 0
      %426 = vmatprep.subr.bf16.mxu0 %v418
      %427 = vmatpush1.bf16.msra.mxu0 %v415
      %428 = vmatprep.subr.bf16.mxu0 0
      %429 = vmatpush1.bf16.msra.mxu0 0
      %430 = vmatprep.subr.bf16.mxu0 0
      %431 = vmatpush1.bf16.msra.mxu0 0
      %432 = vmatprep.subr.bf16.mxu0 0
      %433 = vmatpush1.bf16.msra.mxu0 0
      %434 = vmatprep.subr.bf16.mxu0 0
      %435 = vmatpush1.bf16.msra.mxu0 0
      %436 = vmatprep.subr.bf16.mxu0 0
      %437 = vmatpush1.bf16.msra.mxu0 0
      %438 = vmatprep.subr.bf16.mxu0 0
      %439 = vmatpush1.bf16.msra.mxu0 0
      %440 = vmatprep.subr.bf16.mxu0 0
      %441 = vmatpush1.bf16.msra.mxu0 0
      %442 = vmatprep.subr.bf16.mxu0 0
      %443 = vmatpush1.bf16.msra.mxu0 0
      %444 = vmatprep.subr.bf16.mxu0 0
      %445 = vmatpush1.bf16.msra.mxu0 0
      %446 = vmatprep.subr.bf16.mxu0 0
      %447 = vmatpush1.bf16.msra.mxu0 0
      %448 = vmatprep.subr.bf16.mxu0 0
      %449 = vmatpush1.bf16.msra.mxu0 0
      %450 = vmatprep.subr.bf16.mxu0 0
      %451 = vmatpush1.bf16.msra.mxu0 0
      %452 = vmatprep.subr.bf16.mxu0 0
      %453 = vmatpush1.bf16.msra.mxu0 0
      %454 = vmatprep.subr.bf16.mxu0 0
      %455 = vmatpush1.bf16.msra.mxu0 0
      %456 = vmatprep.subr.bf16.mxu0 0
      %457 = vmatpush1.bf16.msra.mxu0 0
      %458 = vmatprep.mubr.bf16.mxu0 0
      %459 = vmatmul.mubr.bf16.gmra.mrb[0].mxu0 %v411
      %v460 = vpop.f32.mrb[0].mxu0
      %v461 = vadd.f32 0.0, %v460
      %v462 = vpop.f32.mrb[0].mxu0
      %v463 = vadd.f32 0.0, %v462
      %v464 = vpop.f32.mrb[0].mxu0
      %v465 = vpop.f32.mrb[0].mxu0
      %466 = vdwg.mxu0
      %467 = vmatprep.subr.bf16.mxu0 %v424
      %468 = vmatpush1.bf16.msra.mxu0 %v421
      %469 = vmatprep.subr.bf16.mxu0 0
      %470 = vmatpush1.bf16.msra.mxu0 0
      %471 = vmatprep.subr.bf16.mxu0 0
      %472 = vmatpush1.bf16.msra.mxu0 0
      %473 = vmatprep.subr.bf16.mxu0 0
      %474 = vmatpush1.bf16.msra.mxu0 0
      %475 = vmatprep.subr.bf16.mxu0 0
      %476 = vmatpush1.bf16.msra.mxu0 0
      %477 = vmatprep.subr.bf16.mxu0 0
      %478 = vmatpush1.bf16.msra.mxu0 0
      %479 = vmatprep.subr.bf16.mxu0 0
      %480 = vmatpush1.bf16.msra.mxu0 0
      %481 = vmatprep.subr.bf16.mxu0 0
      %482 = vmatpush1.bf16.msra.mxu0 0
      %483 = vmatprep.subr.bf16.mxu0 0
      %484 = vmatpush1.bf16.msra.mxu0 0
      %485 = vmatprep.subr.bf16.mxu0 0
      %486 = vmatpush1.bf16.msra.mxu0 0
      %487 = vmatprep.subr.bf16.mxu0 0
      %488 = vmatpush1.bf16.msra.mxu0 0
      %489 = vmatprep.subr.bf16.mxu0 0
      %490 = vmatpush1.bf16.msra.mxu0 0
      %491 = vmatprep.subr.bf16.mxu0 0
      %492 = vmatpush1.bf16.msra.mxu0 0
      %493 = vmatprep.subr.bf16.mxu0 0
      %494 = vmatpush1.bf16.msra.mxu0 0
      %495 = vmatprep.subr.bf16.mxu0 0
      %496 = vmatpush1.bf16.msra.mxu0 0
      %497 = vmatprep.subr.bf16.mxu0 0
      %498 = vmatpush1.bf16.msra.mxu0 0
      %499 = vmatprep.mubr.bf16.mxu0 0
      %500 = vmatmul.mubr.bf16.gmra.mrb[0].mxu0 %v411
      %v501 = vpop.f32.mrb[0].mxu0
      %v502 = vadd.f32 0.0, %v501
      %v503 = vpop.f32.mrb[0].mxu0
      %v504 = vadd.f32 0.0, %v503
      %v505 = vpop.f32.mrb[0].mxu0
      %v506 = vpop.f32.mrb[0].mxu0
      %507 = vdwg.mxu0
      %v509 = vsel %vm409, %v358, 0
      %v512 = vsel %vm413, %v359, 0
      %v515 = vsel %vm413, %v360, 0
      %v518 = vsel %vm413, %v361, 0
      %v521 = vsel %vm413, %v362, 0
      %523 = vmatprep.subr.bf16.mxu0 %v515
      %524 = vmatpush1.bf16.msra.mxu0 %v512
      %525 = vmatprep.subr.bf16.mxu0 0
      %526 = vmatpush1.bf16.msra.mxu0 0
      %527 = vmatprep.subr.bf16.mxu0 0
      %528 = vmatpush1.bf16.msra.mxu0 0
      %529 = vmatprep.subr.bf16.mxu0 0
      %530 = vmatpush1.bf16.msra.mxu0 0
      %531 = vmatprep.subr.bf16.mxu0 0
      %532 = vmatpush1.bf16.msra.mxu0 0
      %533 = vmatprep.subr.bf16.mxu0 0
      %534 = vmatpush1.bf16.msra.mxu0 0
      %535 = vmatprep.subr.bf16.mxu0 0
      %536 = vmatpush1.bf16.msra.mxu0 0
      %537 = vmatprep.subr.bf16.mxu0 0
      %538 = vmatpush1.bf16.msra.mxu0 0
      %539 = vmatprep.subr.bf16.mxu0 0
      %540 = vmatpush1.bf16.msra.mxu0 0
      %541 = vmatprep.subr.bf16.mxu0 0
      %542 = vmatpush1.bf16.msra.mxu0 0
      %543 = vmatprep.subr.bf16.mxu0 0
      %544 = vmatpush1.bf16.msra.mxu0 0
      %545 = vmatprep.subr.bf16.mxu0 0
      %546 = vmatpush1.bf16.msra.mxu0 0
      %547 = vmatprep.subr.bf16.mxu0 0
      %548 = vmatpush1.bf16.msra.mxu0 0
      %549 = vmatprep.subr.bf16.mxu0 0
      %550 = vmatpush1.bf16.msra.mxu0 0
      %551 = vmatprep.subr.bf16.mxu0 0
      %552 = vmatpush1.bf16.msra.mxu0 0
      %553 = vmatprep.subr.bf16.mxu0 0
      %554 = vmatpush1.bf16.msra.mxu0 0
      %555 = vmatprep.mubr.bf16.mxu0 0
      %556 = vmatmul.mubr.bf16.gmra.mrb[0].mxu0 %v509
      %v557 = vpop.f32.mrb[0].mxu0
      %v558 = vadd.f32 %v461, %v557
      %v559 = vpop.f32.mrb[0].mxu0
      %v560 = vadd.f32 %v463, %v559
      %v561 = vpop.f32.mrb[0].mxu0
      %v562 = vpop.f32.mrb[0].mxu0
      %563 = vdwg.mxu0
      %564 = vmatprep.subr.bf16.mxu0 %v521
      %565 = vmatpush1.bf16.msra.mxu0 %v518
      %566 = vmatprep.subr.bf16.mxu0 0
      %567 = vmatpush1.bf16.msra.mxu0 0
      %568 = vmatprep.subr.bf16.mxu0 0
      %569 = vmatpush1.bf16.msra.mxu0 0
      %570 = vmatprep.subr.bf16.mxu0 0
      %571 = vmatpush1.bf16.msra.mxu0 0
      %572 = vmatprep.subr.bf16.mxu0 0
      %573 = vmatpush1.bf16.msra.mxu0 0
      %574 = vmatprep.subr.bf16.mxu0 0
      %575 = vmatpush1.bf16.msra.mxu0 0
      %576 = vmatprep.subr.bf16.mxu0 0
      %577 = vmatpush1.bf16.msra.mxu0 0
      %578 = vmatprep.subr.bf16.mxu0 0
      %579 = vmatpush1.bf16.msra.mxu0 0
      %580 = vmatprep.subr.bf16.mxu0 0
      %581 = vmatpush1.bf16.msra.mxu0 0
      %582 = vmatprep.subr.bf16.mxu0 0
      %583 = vmatpush1.bf16.msra.mxu0 0
      %584 = vmatprep.subr.bf16.mxu0 0
      %585 = vmatpush1.bf16.msra.mxu0 0
      %586 = vmatprep.subr.bf16.mxu0 0
      %587 = vmatpush1.bf16.msra.mxu0 0
      %588 = vmatprep.subr.bf16.mxu0 0
      %589 = vmatpush1.bf16.msra.mxu0 0
      %590 = vmatprep.subr.bf16.mxu0 0
      %591 = vmatpush1.bf16.msra.mxu0 0
      %592 = vmatprep.subr.bf16.mxu0 0
      %593 = vmatpush1.bf16.msra.mxu0 0
      %594 = vmatprep.subr.bf16.mxu0 0
      %595 = vmatpush1.bf16.msra.mxu0 0
      %596 = vmatprep.mubr.bf16.mxu0 0
      %597 = vmatmul.mubr.bf16.gmra.mrb[0].mxu0 %v509
      %v598 = vpop.f32.mrb[0].mxu0
      %v599 = vadd.f32 %v502, %v598
      %v600 = vpop.f32.mrb[0].mxu0
      %v601 = vadd.f32 %v504, %v600
      %v602 = vpop.f32.mrb[0].mxu0
      %v603 = vpop.f32.mrb[0].mxu0
      %604 = vdwg.mxu0
      %605 = vrot.lane.b32.xlu0 %v306, 15
      %v606 = vpop.permute.xlu0 %605
      %607 = vrot.lane.b32.xlu0 %v313, 15
      %v608 = vpop.permute.xlu0 %607
      %609 = vrot.lane.b32.xlu0 %v307, 15
      %v610 = vpop.permute.xlu0 %609
      %611 = vrot.lane.b32.xlu0 %v314, 15
      %v612 = vpop.permute.xlu0 %611
      %vm613 = vcmp.lt.s32.totalorder %v326, 15
      %v614 = vsel %vm613, %v610, %v612
      %v615 = vsel %vm613, %v608, %v610
      %v616 = vsel %vm613, %v606, %v608
      %v617 = vsel %vm613, %v612, %v606
      %s618 = scalar_lea.vmem %s2, 8
      %v619 = vld [vmem:[%s618] sm:$0xf]
      %v621 = vlaneseq
      %v622 = vshrl.u32 %v621, 7
      %v623 = vsub.s32 0, %v622
      %v624 = vrot.slane %v619, %v623
      %v625 = vlaneseq
      %v626 = vshrl.u32 %v625, 7
      %v627 = vsub.s32 1, %v626
      %v628 = vrot.slane %v619, %v627
      %v629 = vlaneseq
      %v630 = vshrl.u32 %v629, 7
      %v631 = vsub.s32 2, %v630
      %v632 = vrot.slane %v619, %v631
      %v633 = vlaneseq
      %v634 = vshrl.u32 %v633, 7
      %v635 = vsub.s32 3, %v634
      %v636 = vrot.slane %v619, %v635
      %v641 = vmul.f32 %v617, %v624
      %v642 = vmul.f32 %v616, %v628
      %v643 = vmul.f32 %v615, %v632
      %v644 = vmul.f32 %v614, %v636
      %s645 = scalar_lea.vmem %s3, 8
      %v646 = vld [vmem:[%s645] sm:$0xf]
      %v647 = vpack.c.bf16 %v641, %v641
      %v648 = vpack.c.bf16 %v642, %v642
      %v649 = vpack.c.bf16 %v643, %v643
      %v650 = vpack.c.bf16 %v644, %v644
      %v652 = vsel %vm409, %v646, 0
      %v655 = vsel %vm413, %v647, 0
      %v658 = vsel %vm413, %v648, 0
      %v661 = vsel %vm413, %v649, 0
      %v664 = vsel %vm413, %v650, 0
      %666 = vmatprep.subr.bf16.mxu0 %v658
      %667 = vmatpush1.bf16.msra.mxu0 %v655
      %668 = vmatprep.subr.bf16.mxu0 0
      %669 = vmatpush1.bf16.msra.mxu0 0
      %670 = vmatprep.subr.bf16.mxu0 0
      %671 = vmatpush1.bf16.msra.mxu0 0
      %672 = vmatprep.subr.bf16.mxu0 0
      %673 = vmatpush1.bf16.msra.mxu0 0
      %674 = vmatprep.subr.bf16.mxu0 0
      %675 = vmatpush1.bf16.msra.mxu0 0
      %676 = vmatprep.subr.bf16.mxu0 0
      %677 = vmatpush1.bf16.msra.mxu0 0
      %678 = vmatprep.subr.bf16.mxu0 0
      %679 = vmatpush1.bf16.msra.mxu0 0
      %680 = vmatprep.subr.bf16.mxu0 0
      %681 = vmatpush1.bf16.msra.mxu0 0
      %682 = vmatprep.subr.bf16.mxu0 0
      %683 = vmatpush1.bf16.msra.mxu0 0
      %684 = vmatprep.subr.bf16.mxu0 0
      %685 = vmatpush1.bf16.msra.mxu0 0
      %686 = vmatprep.subr.bf16.mxu0 0
      %687 = vmatpush1.bf16.msra.mxu0 0
      %688 = vmatprep.subr.bf16.mxu0 0
      %689 = vmatpush1.bf16.msra.mxu0 0
      %690 = vmatprep.subr.bf16.mxu0 0
      %691 = vmatpush1.bf16.msra.mxu0 0
      %692 = vmatprep.subr.bf16.mxu0 0
      %693 = vmatpush1.bf16.msra.mxu0 0
      %694 = vmatprep.subr.bf16.mxu0 0
      %695 = vmatpush1.bf16.msra.mxu0 0
      %696 = vmatprep.subr.bf16.mxu0 0
      %697 = vmatpush1.bf16.msra.mxu0 0
      %698 = vmatprep.mubr.bf16.mxu0 0
      %699 = vmatmul.mubr.bf16.gmra.mrb[0].mxu0 %v652
      %v700 = vpop.f32.mrb[0].mxu0
      %v701 = vadd.f32 0.0, %v700
      %v702 = vpop.f32.mrb[0].mxu0
      %v703 = vadd.f32 0.0, %v702
      %v704 = vpop.f32.mrb[0].mxu0
      %v705 = vpop.f32.mrb[0].mxu0
      %706 = vdwg.mxu0
      %707 = vmatprep.subr.bf16.mxu0 %v664
      %708 = vmatpush1.bf16.msra.mxu0 %v661
      %709 = vmatprep.subr.bf16.mxu0 0
      %710 = vmatpush1.bf16.msra.mxu0 0
      %711 = vmatprep.subr.bf16.mxu0 0
      %712 = vmatpush1.bf16.msra.mxu0 0
      %713 = vmatprep.subr.bf16.mxu0 0
      %714 = vmatpush1.bf16.msra.mxu0 0
      %715 = vmatprep.subr.bf16.mxu0 0
      %716 = vmatpush1.bf16.msra.mxu0 0
      %717 = vmatprep.subr.bf16.mxu0 0
      %718 = vmatpush1.bf16.msra.mxu0 0
      %719 = vmatprep.subr.bf16.mxu0 0
      %720 = vmatpush1.bf16.msra.mxu0 0
      %721 = vmatprep.subr.bf16.mxu0 0
      %722 = vmatpush1.bf16.msra.mxu0 0
      %723 = vmatprep.subr.bf16.mxu0 0
      %724 = vmatpush1.bf16.msra.mxu0 0
      %725 = vmatprep.subr.bf16.mxu0 0
      %726 = vmatpush1.bf16.msra.mxu0 0
      %727 = vmatprep.subr.bf16.mxu0 0
      %728 = vmatpush1.bf16.msra.mxu0 0
      %729 = vmatprep.subr.bf16.mxu0 0
      %730 = vmatpush1.bf16.msra.mxu0 0
      %731 = vmatprep.subr.bf16.mxu0 0
      %732 = vmatpush1.bf16.msra.mxu0 0
      %733 = vmatprep.subr.bf16.mxu0 0
      %734 = vmatpush1.bf16.msra.mxu0 0
      %735 = vmatprep.subr.bf16.mxu0 0
      %736 = vmatpush1.bf16.msra.mxu0 0
      %737 = vmatprep.subr.bf16.mxu0 0
      %738 = vmatpush1.bf16.msra.mxu0 0
      %739 = vmatprep.mubr.bf16.mxu0 0
      %740 = vmatmul.mubr.bf16.gmra.mrb[0].mxu0 %v652
      %v741 = vpop.f32.mrb[0].mxu0
      %v742 = vadd.f32 0.0, %v741
      %v743 = vpop.f32.mrb[0].mxu0
      %v744 = vadd.f32 0.0, %v743
      %v745 = vpop.f32.mrb[0].mxu0
      %v746 = vpop.f32.mrb[0].mxu0
      %747 = vdwg.mxu0
      %v748 = vadd.f32 %v558, %v701
      %v749 = vadd.f32 %v560, %v703
      %v750 = vadd.f32 %v599, %v742
      %v751 = vadd.f32 %v601, %v744
      %752 = vrot.lane.b32.xlu0 %v306, 1
      %v753 = vpop.permute.xlu0 %752
      %754 = vrot.lane.b32.xlu0 %v313, 1
      %v755 = vpop.permute.xlu0 %754
      %756 = vrot.lane.b32.xlu0 %v307, 1
      %v757 = vpop.permute.xlu0 %756
      %758 = vrot.lane.b32.xlu0 %v314, 1
      %v759 = vpop.permute.xlu0 %758
      %vm760 = vcmp.lt.s32.totalorder %v326, 1
      %v761 = vsel %vm760, %v757, %v759
      %v762 = vsel %vm760, %v755, %v757
      %v763 = vsel %vm760, %v753, %v755
      %v764 = vsel %vm760, %v759, %v753
      %s765 = scalar_lea.vmem %s2, 12
      %v766 = vld [vmem:[%s765] sm:$0xf]
      %v768 = vlaneseq
      %v769 = vshrl.u32 %v768, 7
      %v770 = vsub.s32 0, %v769
      %v771 = vrot.slane %v766, %v770
      %v772 = vlaneseq
      %v773 = vshrl.u32 %v772, 7
      %v774 = vsub.s32 1, %v773
      %v775 = vrot.slane %v766, %v774
      %v776 = vlaneseq
      %v777 = vshrl.u32 %v776, 7
      %v778 = vsub.s32 2, %v777
      %v779 = vrot.slane %v766, %v778
      %v780 = vlaneseq
      %v781 = vshrl.u32 %v780, 7
      %v782 = vsub.s32 3, %v781
      %v783 = vrot.slane %v766, %v782
      %v788 = vmul.f32 %v764, %v771
      %v789 = vmul.f32 %v763, %v775
      %v790 = vmul.f32 %v762, %v779
      %v791 = vmul.f32 %v761, %v783
      %s792 = scalar_lea.vmem %s3, 12
      %v793 = vld [vmem:[%s792] sm:$0xf]
      %v794 = vpack.c.bf16 %v788, %v788
      %v795 = vpack.c.bf16 %v789, %v789
      %v796 = vpack.c.bf16 %v790, %v790
      %v797 = vpack.c.bf16 %v791, %v791
      %v799 = vsel %vm409, %v793, 0
      %v802 = vsel %vm413, %v794, 0
      %v805 = vsel %vm413, %v795, 0
      %v808 = vsel %vm413, %v796, 0
      %v811 = vsel %vm413, %v797, 0
      %813 = vmatprep.subr.bf16.mxu0 %v805
      %814 = vmatpush1.bf16.msra.mxu0 %v802
      %815 = vmatprep.subr.bf16.mxu0 0
      %816 = vmatpush1.bf16.msra.mxu0 0
      %817 = vmatprep.subr.bf16.mxu0 0
      %818 = vmatpush1.bf16.msra.mxu0 0
      %819 = vmatprep.subr.bf16.mxu0 0
      %820 = vmatpush1.bf16.msra.mxu0 0
      %821 = vmatprep.subr.bf16.mxu0 0
      %822 = vmatpush1.bf16.msra.mxu0 0
      %823 = vmatprep.subr.bf16.mxu0 0
      %824 = vmatpush1.bf16.msra.mxu0 0
      %825 = vmatprep.subr.bf16.mxu0 0
      %826 = vmatpush1.bf16.msra.mxu0 0
      %827 = vmatprep.subr.bf16.mxu0 0
      %828 = vmatpush1.bf16.msra.mxu0 0
      %829 = vmatprep.subr.bf16.mxu0 0
      %830 = vmatpush1.bf16.msra.mxu0 0
      %831 = vmatprep.subr.bf16.mxu0 0
      %832 = vmatpush1.bf16.msra.mxu0 0
      %833 = vmatprep.subr.bf16.mxu0 0
      %834 = vmatpush1.bf16.msra.mxu0 0
      %835 = vmatprep.subr.bf16.mxu0 0
      %836 = vmatpush1.bf16.msra.mxu0 0
      %837 = vmatprep.subr.bf16.mxu0 0
      %838 = vmatpush1.bf16.msra.mxu0 0
      %839 = vmatprep.subr.bf16.mxu0 0
      %840 = vmatpush1.bf16.msra.mxu0 0
      %841 = vmatprep.subr.bf16.mxu0 0
      %842 = vmatpush1.bf16.msra.mxu0 0
      %843 = vmatprep.subr.bf16.mxu0 0
      %844 = vmatpush1.bf16.msra.mxu0 0
      %845 = vmatprep.mubr.bf16.mxu0 0
      %846 = vmatmul.mubr.bf16.gmra.mrb[0].mxu0 %v799
      %v847 = vpop.f32.mrb[0].mxu0
      %v848 = vadd.f32 0.0, %v847
      %v849 = vpop.f32.mrb[0].mxu0
      %v850 = vadd.f32 0.0, %v849
      %v851 = vpop.f32.mrb[0].mxu0
      %v852 = vpop.f32.mrb[0].mxu0
      %853 = vdwg.mxu0
      %854 = vmatprep.subr.bf16.mxu0 %v811
      %855 = vmatpush1.bf16.msra.mxu0 %v808
      %856 = vmatprep.subr.bf16.mxu0 0
      %857 = vmatpush1.bf16.msra.mxu0 0
      %858 = vmatprep.subr.bf16.mxu0 0
      %859 = vmatpush1.bf16.msra.mxu0 0
      %860 = vmatprep.subr.bf16.mxu0 0
      %861 = vmatpush1.bf16.msra.mxu0 0
      %862 = vmatprep.subr.bf16.mxu0 0
      %863 = vmatpush1.bf16.msra.mxu0 0
      %864 = vmatprep.subr.bf16.mxu0 0
      %865 = vmatpush1.bf16.msra.mxu0 0
      %866 = vmatprep.subr.bf16.mxu0 0
      %867 = vmatpush1.bf16.msra.mxu0 0
      %868 = vmatprep.subr.bf16.mxu0 0
      %869 = vmatpush1.bf16.msra.mxu0 0
      %870 = vmatprep.subr.bf16.mxu0 0
      %871 = vmatpush1.bf16.msra.mxu0 0
      %872 = vmatprep.subr.bf16.mxu0 0
      %873 = vmatpush1.bf16.msra.mxu0 0
      %874 = vmatprep.subr.bf16.mxu0 0
      %875 = vmatpush1.bf16.msra.mxu0 0
      %876 = vmatprep.subr.bf16.mxu0 0
      %877 = vmatpush1.bf16.msra.mxu0 0
      %878 = vmatprep.subr.bf16.mxu0 0
      %879 = vmatpush1.bf16.msra.mxu0 0
      %880 = vmatprep.subr.bf16.mxu0 0
      %881 = vmatpush1.bf16.msra.mxu0 0
      %882 = vmatprep.subr.bf16.mxu0 0
      %883 = vmatpush1.bf16.msra.mxu0 0
      %884 = vmatprep.subr.bf16.mxu0 0
      %885 = vmatpush1.bf16.msra.mxu0 0
      %886 = vmatprep.mubr.bf16.mxu0 0
      %887 = vmatmul.mubr.bf16.gmra.mrb[0].mxu0 %v799
      %v888 = vpop.f32.mrb[0].mxu0
      %v889 = vadd.f32 0.0, %v888
      %v890 = vpop.f32.mrb[0].mxu0
      %v891 = vadd.f32 0.0, %v890
      %v892 = vpop.f32.mrb[0].mxu0
      %v893 = vpop.f32.mrb[0].mxu0
      %894 = vdwg.mxu0
      %v895 = vadd.f32 %v748, %v848
      %v896 = vadd.f32 %v749, %v850
      %v897 = vadd.f32 %v750, %v889
      %v898 = vadd.f32 %v751, %v891
      %s899 = scalar_lea.vmem %s3, 16
      %v900 = vld [vmem:[%s899] sm:$0xf]
      %v902 = vcombine.high %v305, %v305
      %v904 = vunpack.c.l.s4 1983009808
      %v905 = vunpack.c.0.s8 %v904
      %v906 = vlaneseq
      %v907 = vshrl.u32 %v906, 7
      %v908 = vsub.s32 %v905, %v907
      %v909 = vrot.slane %v305, %v908
      %v911 = vunpack.c.l.s4 1983009808
      %v912 = vunpack.c.0.s8 %v911
      %v913 = vlaneseq
      %v914 = vshrl.u32 %v913, 7
      %v915 = vsub.s32 %v912, %v914
      %v916 = vrot.slane %v902, %v915
      %v917 = vcombine.high %v909, %v909
      %v918 = vcombine.high %v916, %v916
      %v920 = vsel %vm409, %v900, 0
      %v923 = vsel %vm413, %v909, 0
      %v926 = vsel %vm413, %v917, 0
      %v929 = vsel %vm413, %v916, 0
      %v932 = vsel %vm413, %v918, 0
      %934 = vmatprep.subr.bf16.mxu0 %v926
      %935 = vmatpush1.bf16.msra.mxu0 %v923
      %936 = vmatprep.subr.bf16.mxu0 0
      %937 = vmatpush1.bf16.msra.mxu0 0
      %938 = vmatprep.subr.bf16.mxu0 0
      %939 = vmatpush1.bf16.msra.mxu0 0
      %940 = vmatprep.subr.bf16.mxu0 0
      %941 = vmatpush1.bf16.msra.mxu0 0
      %942 = vmatprep.subr.bf16.mxu0 0
      %943 = vmatpush1.bf16.msra.mxu0 0
      %944 = vmatprep.subr.bf16.mxu0 0
      %945 = vmatpush1.bf16.msra.mxu0 0
      %946 = vmatprep.subr.bf16.mxu0 0
      %947 = vmatpush1.bf16.msra.mxu0 0
      %948 = vmatprep.subr.bf16.mxu0 0
      %949 = vmatpush1.bf16.msra.mxu0 0
      %950 = vmatprep.subr.bf16.mxu0 0
      %951 = vmatpush1.bf16.msra.mxu0 0
      %952 = vmatprep.subr.bf16.mxu0 0
      %953 = vmatpush1.bf16.msra.mxu0 0
      %954 = vmatprep.subr.bf16.mxu0 0
      %955 = vmatpush1.bf16.msra.mxu0 0
      %956 = vmatprep.subr.bf16.mxu0 0
      %957 = vmatpush1.bf16.msra.mxu0 0
      %958 = vmatprep.subr.bf16.mxu0 0
      %959 = vmatpush1.bf16.msra.mxu0 0
      %960 = vmatprep.subr.bf16.mxu0 0
      %961 = vmatpush1.bf16.msra.mxu0 0
      %962 = vmatprep.subr.bf16.mxu0 0
      %963 = vmatpush1.bf16.msra.mxu0 0
      %964 = vmatprep.subr.bf16.mxu0 0
      %965 = vmatpush1.bf16.msra.mxu0 0
      %966 = vmatprep.mubr.bf16.mxu0 0
      %967 = vmatmul.mubr.bf16.gmra.mrb[0].mxu0 %v920
      %v968 = vpop.f32.mrb[0].mxu0
      %v969 = vadd.f32 0.0, %v968
      %v970 = vpop.f32.mrb[0].mxu0
      %v971 = vadd.f32 0.0, %v970
      %v972 = vpop.f32.mrb[0].mxu0
      %v973 = vpop.f32.mrb[0].mxu0
      %974 = vdwg.mxu0
      %975 = vmatprep.subr.bf16.mxu0 %v932
      %976 = vmatpush1.bf16.msra.mxu0 %v929
      %977 = vmatprep.subr.bf16.mxu0 0
      %978 = vmatpush1.bf16.msra.mxu0 0
      %979 = vmatprep.subr.bf16.mxu0 0
      %980 = vmatpush1.bf16.msra.mxu0 0
      %981 = vmatprep.subr.bf16.mxu0 0
      %982 = vmatpush1.bf16.msra.mxu0 0
      %983 = vmatprep.subr.bf16.mxu0 0
      %984 = vmatpush1.bf16.msra.mxu0 0
      %985 = vmatprep.subr.bf16.mxu0 0
      %986 = vmatpush1.bf16.msra.mxu0 0
      %987 = vmatprep.subr.bf16.mxu0 0
      %988 = vmatpush1.bf16.msra.mxu0 0
      %989 = vmatprep.subr.bf16.mxu0 0
      %990 = vmatpush1.bf16.msra.mxu0 0
      %991 = vmatprep.subr.bf16.mxu0 0
      %992 = vmatpush1.bf16.msra.mxu0 0
      %993 = vmatprep.subr.bf16.mxu0 0
      %994 = vmatpush1.bf16.msra.mxu0 0
      %995 = vmatprep.subr.bf16.mxu0 0
      %996 = vmatpush1.bf16.msra.mxu0 0
      %997 = vmatprep.subr.bf16.mxu0 0
      %998 = vmatpush1.bf16.msra.mxu0 0
      %999 = vmatprep.subr.bf16.mxu0 0
      %1000 = vmatpush1.bf16.msra.mxu0 0
      %1001 = vmatprep.subr.bf16.mxu0 0
      %1002 = vmatpush1.bf16.msra.mxu0 0
      %1003 = vmatprep.subr.bf16.mxu0 0
      %1004 = vmatpush1.bf16.msra.mxu0 0
      %1005 = vmatprep.subr.bf16.mxu0 0
      %1006 = vmatpush1.bf16.msra.mxu0 0
      %1007 = vmatprep.mubr.bf16.mxu0 0
      %1008 = vmatmul.mubr.bf16.gmra.mrb[0].mxu0 %v920
      %v1009 = vpop.f32.mrb[0].mxu0
      %v1010 = vadd.f32 0.0, %v1009
      %v1011 = vpop.f32.mrb[0].mxu0
      %v1012 = vadd.f32 0.0, %v1011
      %v1013 = vpop.f32.mrb[0].mxu0
      %v1014 = vpop.f32.mrb[0].mxu0
      %1015 = vdwg.mxu0
      %v1016 = vadd.f32 %v895, %v969
      %v1017 = vadd.f32 %v896, %v971
      %v1018 = vadd.f32 %v897, %v1010
      %v1019 = vadd.f32 %v898, %v1012
      %1020 = vrot.lane.b32.xlu0 %v306, 127
      %v1021 = vpop.permute.xlu0 %1020
      %1022 = vrot.lane.b32.xlu0 %v313, 127
      %v1023 = vpop.permute.xlu0 %1022
      %1024 = vrot.lane.b32.xlu0 %v307, 127
      %v1025 = vpop.permute.xlu0 %1024
      %1026 = vrot.lane.b32.xlu0 %v314, 127
      %v1027 = vpop.permute.xlu0 %1026
      %vm1028 = vcmp.lt.s32.totalorder %v326, 127
      %v1029 = vsel %vm1028, %v1025, %v1027
      %v1030 = vsel %vm1028, %v1023, %v1025
      %v1031 = vsel %vm1028, %v1021, %v1023
      %v1032 = vsel %vm1028, %v1027, %v1021
      %s1033 = scalar_lea.vmem %s2, 20
      %v1034 = vld [vmem:[%s1033] sm:$0xf]
      %v1036 = vlaneseq
      %v1037 = vshrl.u32 %v1036, 7
      %v1038 = vsub.s32 0, %v1037
      %v1039 = vrot.slane %v1034, %v1038
      %v1040 = vlaneseq
      %v1041 = vshrl.u32 %v1040, 7
      %v1042 = vsub.s32 1, %v1041
      %v1043 = vrot.slane %v1034, %v1042
      %v1044 = vlaneseq
      %v1045 = vshrl.u32 %v1044, 7
      %v1046 = vsub.s32 2, %v1045
      %v1047 = vrot.slane %v1034, %v1046
      %v1048 = vlaneseq
      %v1049 = vshrl.u32 %v1048, 7
      %v1050 = vsub.s32 3, %v1049
      %v1051 = vrot.slane %v1034, %v1050
      %v1056 = vmul.f32 %v1031, %v1039
      %v1057 = vmul.f32 %v1030, %v1043
      %v1058 = vmul.f32 %v1029, %v1047
      %v1059 = vmul.f32 %v1032, %v1051
      %s1060 = scalar_lea.vmem %s3, 20
      %v1061 = vld [vmem:[%s1060] sm:$0xf]
      %v1062 = vpack.c.bf16 %v1056, %v1056
      %v1063 = vpack.c.bf16 %v1057, %v1057
      %v1064 = vpack.c.bf16 %v1058, %v1058
      %v1065 = vpack.c.bf16 %v1059, %v1059
      %v1067 = vsel %vm409, %v1061, 0
      %v1070 = vsel %vm413, %v1062, 0
      %v1073 = vsel %vm413, %v1063, 0
      %v1076 = vsel %vm413, %v1064, 0
      %v1079 = vsel %vm413, %v1065, 0
      %1081 = vmatprep.subr.bf16.mxu0 %v1073
      %1082 = vmatpush1.bf16.msra.mxu0 %v1070
      %1083 = vmatprep.subr.bf16.mxu0 0
      %1084 = vmatpush1.bf16.msra.mxu0 0
      %1085 = vmatprep.subr.bf16.mxu0 0
      %1086 = vmatpush1.bf16.msra.mxu0 0
      %1087 = vmatprep.subr.bf16.mxu0 0
      %1088 = vmatpush1.bf16.msra.mxu0 0
      %1089 = vmatprep.subr.bf16.mxu0 0
      %1090 = vmatpush1.bf16.msra.mxu0 0
      %1091 = vmatprep.subr.bf16.mxu0 0
      %1092 = vmatpush1.bf16.msra.mxu0 0
      %1093 = vmatprep.subr.bf16.mxu0 0
      %1094 = vmatpush1.bf16.msra.mxu0 0
      %1095 = vmatprep.subr.bf16.mxu0 0
      %1096 = vmatpush1.bf16.msra.mxu0 0
      %1097 = vmatprep.subr.bf16.mxu0 0
      %1098 = vmatpush1.bf16.msra.mxu0 0
      %1099 = vmatprep.subr.bf16.mxu0 0
      %1100 = vmatpush1.bf16.msra.mxu0 0
      %1101 = vmatprep.subr.bf16.mxu0 0
      %1102 = vmatpush1.bf16.msra.mxu0 0
      %1103 = vmatprep.subr.bf16.mxu0 0
      %1104 = vmatpush1.bf16.msra.mxu0 0
      %1105 = vmatprep.subr.bf16.mxu0 0
      %1106 = vmatpush1.bf16.msra.mxu0 0
      %1107 = vmatprep.subr.bf16.mxu0 0
      %1108 = vmatpush1.bf16.msra.mxu0 0
      %1109 = vmatprep.subr.bf16.mxu0 0
      %1110 = vmatpush1.bf16.msra.mxu0 0
      %1111 = vmatprep.subr.bf16.mxu0 0
      %1112 = vmatpush1.bf16.msra.mxu0 0
      %1113 = vmatprep.mubr.bf16.mxu0 0
      %1114 = vmatmul.mubr.bf16.gmra.mrb[0].mxu0 %v1067
      %v1115 = vpop.f32.mrb[0].mxu0
      %v1116 = vadd.f32 0.0, %v1115
      %v1117 = vpop.f32.mrb[0].mxu0
      %v1118 = vadd.f32 0.0, %v1117
      %v1119 = vpop.f32.mrb[0].mxu0
      %v1120 = vpop.f32.mrb[0].mxu0
      %1121 = vdwg.mxu0
      %1122 = vmatprep.subr.bf16.mxu0 %v1079
      %1123 = vmatpush1.bf16.msra.mxu0 %v1076
      %1124 = vmatprep.subr.bf16.mxu0 0
      %1125 = vmatpush1.bf16.msra.mxu0 0
      %1126 = vmatprep.subr.bf16.mxu0 0
      %1127 = vmatpush1.bf16.msra.mxu0 0
      %1128 = vmatprep.subr.bf16.mxu0 0
      %1129 = vmatpush1.bf16.msra.mxu0 0
      %1130 = vmatprep.subr.bf16.mxu0 0
      %1131 = vmatpush1.bf16.msra.mxu0 0
      %1132 = vmatprep.subr.bf16.mxu0 0
      %1133 = vmatpush1.bf16.msra.mxu0 0
      %1134 = vmatprep.subr.bf16.mxu0 0
      %1135 = vmatpush1.bf16.msra.mxu0 0
      %1136 = vmatprep.subr.bf16.mxu0 0
      %1137 = vmatpush1.bf16.msra.mxu0 0
      %1138 = vmatprep.subr.bf16.mxu0 0
      %1139 = vmatpush1.bf16.msra.mxu0 0
      %1140 = vmatprep.subr.bf16.mxu0 0
      %1141 = vmatpush1.bf16.msra.mxu0 0
      %1142 = vmatprep.subr.bf16.mxu0 0
      %1143 = vmatpush1.bf16.msra.mxu0 0
      %1144 = vmatprep.subr.bf16.mxu0 0
      %1145 = vmatpush1.bf16.msra.mxu0 0
      %1146 = vmatprep.subr.bf16.mxu0 0
      %1147 = vmatpush1.bf16.msra.mxu0 0
      %1148 = vmatprep.subr.bf16.mxu0 0
      %1149 = vmatpush1.bf16.msra.mxu0 0
      %1150 = vmatprep.subr.bf16.mxu0 0
      %1151 = vmatpush1.bf16.msra.mxu0 0
      %1152 = vmatprep.subr.bf16.mxu0 0
      %1153 = vmatpush1.bf16.msra.mxu0 0
      %1154 = vmatprep.mubr.bf16.mxu0 0
      %1155 = vmatmul.mubr.bf16.gmra.mrb[0].mxu0 %v1067
      %v1156 = vpop.f32.mrb[0].mxu0
      %v1157 = vadd.f32 0.0, %v1156
      %v1158 = vpop.f32.mrb[0].mxu0
      %v1159 = vadd.f32 0.0, %v1158
      %v1160 = vpop.f32.mrb[0].mxu0
      %v1161 = vpop.f32.mrb[0].mxu0
      %1162 = vdwg.mxu0
      %v1163 = vadd.f32 %v1016, %v1116
      %v1164 = vadd.f32 %v1017, %v1118
      %v1165 = vadd.f32 %v1018, %v1157
      %v1166 = vadd.f32 %v1019, %v1159
      %1167 = vrot.lane.b32.xlu0 %v306, 113
      %v1168 = vpop.permute.xlu0 %1167
      %1169 = vrot.lane.b32.xlu0 %v313, 113
      %v1170 = vpop.permute.xlu0 %1169
      %1171 = vrot.lane.b32.xlu0 %v307, 113
      %v1172 = vpop.permute.xlu0 %1171
      %1173 = vrot.lane.b32.xlu0 %v314, 113
      %v1174 = vpop.permute.xlu0 %1173
      %vm1175 = vcmp.lt.s32.totalorder %v326, 113
      %v1176 = vsel %vm1175, %v1172, %v1174
      %v1177 = vsel %vm1175, %v1170, %v1172
      %v1178 = vsel %vm1175, %v1168, %v1170
      %v1179 = vsel %vm1175, %v1174, %v1168
      %s1180 = scalar_lea.vmem %s2, 24
      %v1181 = vld [vmem:[%s1180] sm:$0xf]
      %v1183 = vlaneseq
      %v1184 = vshrl.u32 %v1183, 7
      %v1185 = vsub.s32 0, %v1184
      %v1186 = vrot.slane %v1181, %v1185
      %v1187 = vlaneseq
      %v1188 = vshrl.u32 %v1187, 7
      %v1189 = vsub.s32 1, %v1188
      %v1190 = vrot.slane %v1181, %v1189
      %v1191 = vlaneseq
      %v1192 = vshrl.u32 %v1191, 7
      %v1193 = vsub.s32 2, %v1192
      %v1194 = vrot.slane %v1181, %v1193
      %v1195 = vlaneseq
      %v1196 = vshrl.u32 %v1195, 7
      %v1197 = vsub.s32 3, %v1196
      %v1198 = vrot.slane %v1181, %v1197
      %v1203 = vmul.f32 %v1178, %v1186
      %v1204 = vmul.f32 %v1177, %v1190
      %v1205 = vmul.f32 %v1176, %v1194
      %v1206 = vmul.f32 %v1179, %v1198
      %s1207 = scalar_lea.vmem %s3, 24
      %v1208 = vld [vmem:[%s1207] sm:$0xf]
      %v1209 = vpack.c.bf16 %v1203, %v1203
      %v1210 = vpack.c.bf16 %v1204, %v1204
      %v1211 = vpack.c.bf16 %v1205, %v1205
      %v1212 = vpack.c.bf16 %v1206, %v1206
      %v1214 = vsel %vm409, %v1208, 0
      %v1217 = vsel %vm413, %v1209, 0
      %v1220 = vsel %vm413, %v1210, 0
      %v1223 = vsel %vm413, %v1211, 0
      %v1226 = vsel %vm413, %v1212, 0
      %1228 = vmatprep.subr.bf16.mxu0 %v1220
      %1229 = vmatpush1.bf16.msra.mxu0 %v1217
      %1230 = vmatprep.subr.bf16.mxu0 0
      %1231 = vmatpush1.bf16.msra.mxu0 0
      %1232 = vmatprep.subr.bf16.mxu0 0
      %1233 = vmatpush1.bf16.msra.mxu0 0
      %1234 = vmatprep.subr.bf16.mxu0 0
      %1235 = vmatpush1.bf16.msra.mxu0 0
      %1236 = vmatprep.subr.bf16.mxu0 0
      %1237 = vmatpush1.bf16.msra.mxu0 0
      %1238 = vmatprep.subr.bf16.mxu0 0
      %1239 = vmatpush1.bf16.msra.mxu0 0
      %1240 = vmatprep.subr.bf16.mxu0 0
      %1241 = vmatpush1.bf16.msra.mxu0 0
      %1242 = vmatprep.subr.bf16.mxu0 0
      %1243 = vmatpush1.bf16.msra.mxu0 0
      %1244 = vmatprep.subr.bf16.mxu0 0
      %1245 = vmatpush1.bf16.msra.mxu0 0
      %1246 = vmatprep.subr.bf16.mxu0 0
      %1247 = vmatpush1.bf16.msra.mxu0 0
      %1248 = vmatprep.subr.bf16.mxu0 0
      %1249 = vmatpush1.bf16.msra.mxu0 0
      %1250 = vmatprep.subr.bf16.mxu0 0
      %1251 = vmatpush1.bf16.msra.mxu0 0
      %1252 = vmatprep.subr.bf16.mxu0 0
      %1253 = vmatpush1.bf16.msra.mxu0 0
      %1254 = vmatprep.subr.bf16.mxu0 0
      %1255 = vmatpush1.bf16.msra.mxu0 0
      %1256 = vmatprep.subr.bf16.mxu0 0
      %1257 = vmatpush1.bf16.msra.mxu0 0
      %1258 = vmatprep.subr.bf16.mxu0 0
      %1259 = vmatpush1.bf16.msra.mxu0 0
      %1260 = vmatprep.mubr.bf16.mxu0 0
      %1261 = vmatmul.mubr.bf16.gmra.mrb[0].mxu0 %v1214
      %v1262 = vpop.f32.mrb[0].mxu0
      %v1263 = vadd.f32 0.0, %v1262
      %v1264 = vpop.f32.mrb[0].mxu0
      %v1265 = vadd.f32 0.0, %v1264
      %v1266 = vpop.f32.mrb[0].mxu0
      %v1267 = vpop.f32.mrb[0].mxu0
      %1268 = vdwg.mxu0
      %1269 = vmatprep.subr.bf16.mxu0 %v1226
      %1270 = vmatpush1.bf16.msra.mxu0 %v1223
      %1271 = vmatprep.subr.bf16.mxu0 0
      %1272 = vmatpush1.bf16.msra.mxu0 0
      %1273 = vmatprep.subr.bf16.mxu0 0
      %1274 = vmatpush1.bf16.msra.mxu0 0
      %1275 = vmatprep.subr.bf16.mxu0 0
      %1276 = vmatpush1.bf16.msra.mxu0 0
      %1277 = vmatprep.subr.bf16.mxu0 0
      %1278 = vmatpush1.bf16.msra.mxu0 0
      %1279 = vmatprep.subr.bf16.mxu0 0
      %1280 = vmatpush1.bf16.msra.mxu0 0
      %1281 = vmatprep.subr.bf16.mxu0 0
      %1282 = vmatpush1.bf16.msra.mxu0 0
      %1283 = vmatprep.subr.bf16.mxu0 0
      %1284 = vmatpush1.bf16.msra.mxu0 0
      %1285 = vmatprep.subr.bf16.mxu0 0
      %1286 = vmatpush1.bf16.msra.mxu0 0
      %1287 = vmatprep.subr.bf16.mxu0 0
      %1288 = vmatpush1.bf16.msra.mxu0 0
      %1289 = vmatprep.subr.bf16.mxu0 0
      %1290 = vmatpush1.bf16.msra.mxu0 0
      %1291 = vmatprep.subr.bf16.mxu0 0
      %1292 = vmatpush1.bf16.msra.mxu0 0
      %1293 = vmatprep.subr.bf16.mxu0 0
      %1294 = vmatpush1.bf16.msra.mxu0 0
      %1295 = vmatprep.subr.bf16.mxu0 0
      %1296 = vmatpush1.bf16.msra.mxu0 0
      %1297 = vmatprep.subr.bf16.mxu0 0
      %1298 = vmatpush1.bf16.msra.mxu0 0
      %1299 = vmatprep.subr.bf16.mxu0 0
      %1300 = vmatpush1.bf16.msra.mxu0 0
      %1301 = vmatprep.mubr.bf16.mxu0 0
      %1302 = vmatmul.mubr.bf16.gmra.mrb[0].mxu0 %v1214
      %v1303 = vpop.f32.mrb[0].mxu0
      %v1304 = vadd.f32 0.0, %v1303
      %v1305 = vpop.f32.mrb[0].mxu0
      %v1306 = vadd.f32 0.0, %v1305
      %v1307 = vpop.f32.mrb[0].mxu0
      %v1308 = vpop.f32.mrb[0].mxu0
      %1309 = vdwg.mxu0
      %v1310 = vadd.f32 %v1163, %v1263
      %v1311 = vadd.f32 %v1164, %v1265
      %v1312 = vadd.f32 %v1165, %v1304
      %v1313 = vadd.f32 %v1166, %v1306
      %1314 = vrot.lane.b32.xlu0 %v306, 112
      %v1315 = vpop.permute.xlu0 %1314
      %1316 = vrot.lane.b32.xlu0 %v313, 112
      %v1317 = vpop.permute.xlu0 %1316
      %1318 = vrot.lane.b32.xlu0 %v307, 112
      %v1319 = vpop.permute.xlu0 %1318
      %1320 = vrot.lane.b32.xlu0 %v314, 112
      %v1321 = vpop.permute.xlu0 %1320
      %vm1322 = vcmp.lt.s32.totalorder %v326, 112
      %v1323 = vsel %vm1322, %v1319, %v1321
      %v1324 = vsel %vm1322, %v1317, %v1319
      %v1325 = vsel %vm1322, %v1315, %v1317
      %v1326 = vsel %vm1322, %v1321, %v1315
      %s1327 = scalar_lea.vmem %s2, 28
      %v1328 = vld [vmem:[%s1327] sm:$0xf]
      %v1330 = vlaneseq
      %v1331 = vshrl.u32 %v1330, 7
      %v1332 = vsub.s32 0, %v1331
      %v1333 = vrot.slane %v1328, %v1332
      %v1334 = vlaneseq
      %v1335 = vshrl.u32 %v1334, 7
      %v1336 = vsub.s32 1, %v1335
      %v1337 = vrot.slane %v1328, %v1336
      %v1338 = vlaneseq
      %v1339 = vshrl.u32 %v1338, 7
      %v1340 = vsub.s32 2, %v1339
      %v1341 = vrot.slane %v1328, %v1340
      %v1342 = vlaneseq
      %v1343 = vshrl.u32 %v1342, 7
      %v1344 = vsub.s32 3, %v1343
      %v1345 = vrot.slane %v1328, %v1344
      %v1350 = vmul.f32 %v1325, %v1333
      %v1351 = vmul.f32 %v1324, %v1337
      %v1352 = vmul.f32 %v1323, %v1341
      %v1353 = vmul.f32 %v1326, %v1345
      %s1354 = scalar_lea.vmem %s3, 28
      %v1355 = vld [vmem:[%s1354] sm:$0xf]
      %v1356 = vpack.c.bf16 %v1350, %v1350
      %v1357 = vpack.c.bf16 %v1351, %v1351
      %v1358 = vpack.c.bf16 %v1352, %v1352
      %v1359 = vpack.c.bf16 %v1353, %v1353
      %v1361 = vsel %vm409, %v1355, 0
      %v1364 = vsel %vm413, %v1356, 0
      %v1367 = vsel %vm413, %v1357, 0
      %v1370 = vsel %vm413, %v1358, 0
      %v1373 = vsel %vm413, %v1359, 0
      %1375 = vmatprep.subr.bf16.mxu0 %v1367
      %1376 = vmatpush1.bf16.msra.mxu0 %v1364
      %1377 = vmatprep.subr.bf16.mxu0 0
      %1378 = vmatpush1.bf16.msra.mxu0 0
      %1379 = vmatprep.subr.bf16.mxu0 0
      %1380 = vmatpush1.bf16.msra.mxu0 0
      %1381 = vmatprep.subr.bf16.mxu0 0
      %1382 = vmatpush1.bf16.msra.mxu0 0
      %1383 = vmatprep.subr.bf16.mxu0 0
      %1384 = vmatpush1.bf16.msra.mxu0 0
      %1385 = vmatprep.subr.bf16.mxu0 0
      %1386 = vmatpush1.bf16.msra.mxu0 0
      %1387 = vmatprep.subr.bf16.mxu0 0
      %1388 = vmatpush1.bf16.msra.mxu0 0
      %1389 = vmatprep.subr.bf16.mxu0 0
      %1390 = vmatpush1.bf16.msra.mxu0 0
      %1391 = vmatprep.subr.bf16.mxu0 0
      %1392 = vmatpush1.bf16.msra.mxu0 0
      %1393 = vmatprep.subr.bf16.mxu0 0
      %1394 = vmatpush1.bf16.msra.mxu0 0
      %1395 = vmatprep.subr.bf16.mxu0 0
      %1396 = vmatpush1.bf16.msra.mxu0 0
      %1397 = vmatprep.subr.bf16.mxu0 0
      %1398 = vmatpush1.bf16.msra.mxu0 0
      %1399 = vmatprep.subr.bf16.mxu0 0
      %1400 = vmatpush1.bf16.msra.mxu0 0
      %1401 = vmatprep.subr.bf16.mxu0 0
      %1402 = vmatpush1.bf16.msra.mxu0 0
      %1403 = vmatprep.subr.bf16.mxu0 0
      %1404 = vmatpush1.bf16.msra.mxu0 0
      %1405 = vmatprep.subr.bf16.mxu0 0
      %1406 = vmatpush1.bf16.msra.mxu0 0
      %1407 = vmatprep.mubr.bf16.mxu0 0
      %1408 = vmatmul.mubr.bf16.gmra.mrb[0].mxu0 %v1361
      %v1409 = vpop.f32.mrb[0].mxu0
      %v1410 = vadd.f32 0.0, %v1409
      %v1411 = vpop.f32.mrb[0].mxu0
      %v1412 = vadd.f32 0.0, %v1411
      %v1413 = vpop.f32.mrb[0].mxu0
      %v1414 = vpop.f32.mrb[0].mxu0
      %1415 = vdwg.mxu0
      %1416 = vmatprep.subr.bf16.mxu0 %v1373
      %1417 = vmatpush1.bf16.msra.mxu0 %v1370
      %1418 = vmatprep.subr.bf16.mxu0 0
      %1419 = vmatpush1.bf16.msra.mxu0 0
      %1420 = vmatprep.subr.bf16.mxu0 0
      %1421 = vmatpush1.bf16.msra.mxu0 0
      %1422 = vmatprep.subr.bf16.mxu0 0
      %1423 = vmatpush1.bf16.msra.mxu0 0
      %1424 = vmatprep.subr.bf16.mxu0 0
      %1425 = vmatpush1.bf16.msra.mxu0 0
      %1426 = vmatprep.subr.bf16.mxu0 0
      %1427 = vmatpush1.bf16.msra.mxu0 0
      %1428 = vmatprep.subr.bf16.mxu0 0
      %1429 = vmatpush1.bf16.msra.mxu0 0
      %1430 = vmatprep.subr.bf16.mxu0 0
      %1431 = vmatpush1.bf16.msra.mxu0 0
      %1432 = vmatprep.subr.bf16.mxu0 0
      %1433 = vmatpush1.bf16.msra.mxu0 0
      %1434 = vmatprep.subr.bf16.mxu0 0
      %1435 = vmatpush1.bf16.msra.mxu0 0
      %1436 = vmatprep.subr.bf16.mxu0 0
      %1437 = vmatpush1.bf16.msra.mxu0 0
      %1438 = vmatprep.subr.bf16.mxu0 0
      %1439 = vmatpush1.bf16.msra.mxu0 0
      %1440 = vmatprep.subr.bf16.mxu0 0
      %1441 = vmatpush1.bf16.msra.mxu0 0
      %1442 = vmatprep.subr.bf16.mxu0 0
      %1443 = vmatpush1.bf16.msra.mxu0 0
      %1444 = vmatprep.subr.bf16.mxu0 0
      %1445 = vmatpush1.bf16.msra.mxu0 0
      %1446 = vmatprep.subr.bf16.mxu0 0
      %1447 = vmatpush1.bf16.msra.mxu0 0
      %1448 = vmatprep.mubr.bf16.mxu0 0
      %1449 = vmatmul.mubr.bf16.gmra.mrb[0].mxu0 %v1361
      %v1450 = vpop.f32.mrb[0].mxu0
      %v1451 = vadd.f32 0.0, %v1450
      %v1452 = vpop.f32.mrb[0].mxu0
      %v1453 = vadd.f32 0.0, %v1452
      %v1454 = vpop.f32.mrb[0].mxu0
      %v1455 = vpop.f32.mrb[0].mxu0
      %1456 = vdwg.mxu0
      %v1457 = vadd.f32 %v1310, %v1410
      %v1458 = vadd.f32 %v1311, %v1412
      %v1459 = vadd.f32 %v1312, %v1451
      %v1460 = vadd.f32 %v1313, %v1453
      %1461 = vrot.lane.b32.xlu0 %v306, 111
      %v1462 = vpop.permute.xlu0 %1461
      %1463 = vrot.lane.b32.xlu0 %v313, 111
      %v1464 = vpop.permute.xlu0 %1463
      %1465 = vrot.lane.b32.xlu0 %v307, 111
      %v1466 = vpop.permute.xlu0 %1465
      %1467 = vrot.lane.b32.xlu0 %v314, 111
      %v1468 = vpop.permute.xlu0 %1467
      %vm1469 = vcmp.lt.s32.totalorder %v326, 111
      %v1470 = vsel %vm1469, %v1466, %v1468
      %v1471 = vsel %vm1469, %v1464, %v1466
      %v1472 = vsel %vm1469, %v1462, %v1464
      %v1473 = vsel %vm1469, %v1468, %v1462
      %s1474 = scalar_lea.vmem %s2, 32
      %v1475 = vld [vmem:[%s1474] sm:$0xf]
      %v1477 = vlaneseq
      %v1478 = vshrl.u32 %v1477, 7
      %v1479 = vsub.s32 0, %v1478
      %v1480 = vrot.slane %v1475, %v1479
      %v1481 = vlaneseq
      %v1482 = vshrl.u32 %v1481, 7
      %v1483 = vsub.s32 1, %v1482
      %v1484 = vrot.slane %v1475, %v1483
      %v1485 = vlaneseq
      %v1486 = vshrl.u32 %v1485, 7
      %v1487 = vsub.s32 2, %v1486
      %v1488 = vrot.slane %v1475, %v1487
      %v1489 = vlaneseq
      %v1490 = vshrl.u32 %v1489, 7
      %v1491 = vsub.s32 3, %v1490
      %v1492 = vrot.slane %v1475, %v1491
      %v1497 = vmul.f32 %v1472, %v1480
      %v1498 = vmul.f32 %v1471, %v1484
      %v1499 = vmul.f32 %v1470, %v1488
      %v1500 = vmul.f32 %v1473, %v1492
      %s1501 = scalar_lea.vmem %s3, 32
      %v1502 = vld [vmem:[%s1501] sm:$0xf]
      %v1503 = vpack.c.bf16 %v1497, %v1497
      %v1504 = vpack.c.bf16 %v1498, %v1498
      %v1505 = vpack.c.bf16 %v1499, %v1499
      %v1506 = vpack.c.bf16 %v1500, %v1500
      %v1508 = vsel %vm409, %v1502, 0
      %v1511 = vsel %vm413, %v1503, 0
      %v1514 = vsel %vm413, %v1504, 0
      %v1517 = vsel %vm413, %v1505, 0
      %v1520 = vsel %vm413, %v1506, 0
      %1522 = vmatprep.subr.bf16.mxu0 %v1514
      %1523 = vmatpush1.bf16.msra.mxu0 %v1511
      %1524 = vmatprep.subr.bf16.mxu0 0
      %1525 = vmatpush1.bf16.msra.mxu0 0
      %1526 = vmatprep.subr.bf16.mxu0 0
      %1527 = vmatpush1.bf16.msra.mxu0 0
      %1528 = vmatprep.subr.bf16.mxu0 0
      %1529 = vmatpush1.bf16.msra.mxu0 0
      %1530 = vmatprep.subr.bf16.mxu0 0
      %1531 = vmatpush1.bf16.msra.mxu0 0
      %1532 = vmatprep.subr.bf16.mxu0 0
      %1533 = vmatpush1.bf16.msra.mxu0 0
      %1534 = vmatprep.subr.bf16.mxu0 0
      %1535 = vmatpush1.bf16.msra.mxu0 0
      %1536 = vmatprep.subr.bf16.mxu0 0
      %1537 = vmatpush1.bf16.msra.mxu0 0
      %1538 = vmatprep.subr.bf16.mxu0 0
      %1539 = vmatpush1.bf16.msra.mxu0 0
      %1540 = vmatprep.subr.bf16.mxu0 0
      %1541 = vmatpush1.bf16.msra.mxu0 0
      %1542 = vmatprep.subr.bf16.mxu0 0
      %1543 = vmatpush1.bf16.msra.mxu0 0
      %1544 = vmatprep.subr.bf16.mxu0 0
      %1545 = vmatpush1.bf16.msra.mxu0 0
      %1546 = vmatprep.subr.bf16.mxu0 0
      %1547 = vmatpush1.bf16.msra.mxu0 0
      %1548 = vmatprep.subr.bf16.mxu0 0
      %1549 = vmatpush1.bf16.msra.mxu0 0
      %1550 = vmatprep.subr.bf16.mxu0 0
      %1551 = vmatpush1.bf16.msra.mxu0 0
      %1552 = vmatprep.subr.bf16.mxu0 0
      %1553 = vmatpush1.bf16.msra.mxu0 0
      %1554 = vmatprep.mubr.bf16.mxu0 0
      %1555 = vmatmul.mubr.bf16.gmra.mrb[0].mxu0 %v1508
      %v1556 = vpop.f32.mrb[0].mxu0
      %v1557 = vadd.f32 0.0, %v1556
      %v1558 = vpop.f32.mrb[0].mxu0
      %v1559 = vadd.f32 0.0, %v1558
      %v1560 = vpop.f32.mrb[0].mxu0
      %v1561 = vpop.f32.mrb[0].mxu0
      %1562 = vdwg.mxu0
      %1563 = vmatprep.subr.bf16.mxu0 %v1520
      %1564 = vmatpush1.bf16.msra.mxu0 %v1517
      %1565 = vmatprep.subr.bf16.mxu0 0
      %1566 = vmatpush1.bf16.msra.mxu0 0
      %1567 = vmatprep.subr.bf16.mxu0 0
      %1568 = vmatpush1.bf16.msra.mxu0 0
      %1569 = vmatprep.subr.bf16.mxu0 0
      %1570 = vmatpush1.bf16.msra.mxu0 0
      %1571 = vmatprep.subr.bf16.mxu0 0
      %1572 = vmatpush1.bf16.msra.mxu0 0
      %1573 = vmatprep.subr.bf16.mxu0 0
      %1574 = vmatpush1.bf16.msra.mxu0 0
      %1575 = vmatprep.subr.bf16.mxu0 0
      %1576 = vmatpush1.bf16.msra.mxu0 0
      %1577 = vmatprep.subr.bf16.mxu0 0
      %1578 = vmatpush1.bf16.msra.mxu0 0
      %1579 = vmatprep.subr.bf16.mxu0 0
      %1580 = vmatpush1.bf16.msra.mxu0 0
      %1581 = vmatprep.subr.bf16.mxu0 0
      %1582 = vmatpush1.bf16.msra.mxu0 0
      %1583 = vmatprep.subr.bf16.mxu0 0
      %1584 = vmatpush1.bf16.msra.mxu0 0
      %1585 = vmatprep.subr.bf16.mxu0 0
      %1586 = vmatpush1.bf16.msra.mxu0 0
      %1587 = vmatprep.subr.bf16.mxu0 0
      %1588 = vmatpush1.bf16.msra.mxu0 0
      %1589 = vmatprep.subr.bf16.mxu0 0
      %1590 = vmatpush1.bf16.msra.mxu0 0
      %1591 = vmatprep.subr.bf16.mxu0 0
      %1592 = vmatpush1.bf16.msra.mxu0 0
      %1593 = vmatprep.subr.bf16.mxu0 0
      %1594 = vmatpush1.bf16.msra.mxu0 0
      %1595 = vmatprep.mubr.bf16.mxu0 0
      %1596 = vmatmul.mubr.bf16.gmra.mrb[0].mxu0 %v1508
      %v1597 = vpop.f32.mrb[0].mxu0
      %v1598 = vadd.f32 0.0, %v1597
      %v1599 = vpop.f32.mrb[0].mxu0
      %v1600 = vadd.f32 0.0, %v1599
      %v1601 = vpop.f32.mrb[0].mxu0
      %v1602 = vpop.f32.mrb[0].mxu0
      %1603 = vdwg.mxu0
      %v1604 = vadd.f32 %v1457, %v1557
      %v1605 = vadd.f32 %v1458, %v1559
      %v1606 = vadd.f32 %v1459, %v1598
      %v1607 = vadd.f32 %v1460, %v1600
      %v1610 = vcombine.high %v309, %v309
      %v1611 = vcombine.high %v310, %v310
      %1614 = vrot.lane.b32.xlu0 %v309, 17
      %v1615 = vpop.permute.xlu0 %1614
      %1616 = vrot.lane.b32.xlu0 %v1610, 17
      %v1617 = vpop.permute.xlu0 %1616
      %1618 = vrot.lane.b32.xlu0 %v310, 17
      %v1619 = vpop.permute.xlu0 %1618
      %1620 = vrot.lane.b32.xlu0 %v1611, 17
      %v1621 = vpop.permute.xlu0 %1620
      %v1622 = vsel %vm327, %v1619, %v1621
      %v1623 = vsel %vm327, %v1617, %v1619
      %v1624 = vsel %vm327, %v1615, %v1617
      %v1625 = vsel %vm327, %v1621, %v1615
      %v1626 = vmul.f32 %v1625, %v337
      %v1627 = vmul.f32 %v1624, %v341
      %v1628 = vmul.f32 %v1623, %v345
      %v1629 = vmul.f32 %v1622, %v349
      %v1630 = vld [vmem:[%s4] sm:$0xf]
      %v1631 = vpack.c.bf16 %v1626, %v1626
      %v1632 = vpack.c.bf16 %v1627, %v1627
      %v1633 = vpack.c.bf16 %v1628, %v1628
      %v1634 = vpack.c.bf16 %v1629, %v1629
      %v1636 = vsel %vm409, %v1630, 0
      %v1639 = vsel %vm413, %v1631, 0
      %v1642 = vsel %vm413, %v1632, 0
      %v1645 = vsel %vm413, %v1633, 0
      %v1648 = vsel %vm413, %v1634, 0
      %1650 = vmatprep.subr.bf16.mxu0 %v1642
      %1651 = vmatpush1.bf16.msra.mxu0 %v1639
      %1652 = vmatprep.subr.bf16.mxu0 0
      %1653 = vmatpush1.bf16.msra.mxu0 0
      %1654 = vmatprep.subr.bf16.mxu0 0
      %1655 = vmatpush1.bf16.msra.mxu0 0
      %1656 = vmatprep.subr.bf16.mxu0 0
      %1657 = vmatpush1.bf16.msra.mxu0 0
      %1658 = vmatprep.subr.bf16.mxu0 0
      %1659 = vmatpush1.bf16.msra.mxu0 0
      %1660 = vmatprep.subr.bf16.mxu0 0
      %1661 = vmatpush1.bf16.msra.mxu0 0
      %1662 = vmatprep.subr.bf16.mxu0 0
      %1663 = vmatpush1.bf16.msra.mxu0 0
      %1664 = vmatprep.subr.bf16.mxu0 0
      %1665 = vmatpush1.bf16.msra.mxu0 0
      %1666 = vmatprep.subr.bf16.mxu0 0
      %1667 = vmatpush1.bf16.msra.mxu0 0
      %1668 = vmatprep.subr.bf16.mxu0 0
      %1669 = vmatpush1.bf16.msra.mxu0 0
      %1670 = vmatprep.subr.bf16.mxu0 0
      %1671 = vmatpush1.bf16.msra.mxu0 0
      %1672 = vmatprep.subr.bf16.mxu0 0
      %1673 = vmatpush1.bf16.msra.mxu0 0
      %1674 = vmatprep.subr.bf16.mxu0 0
      %1675 = vmatpush1.bf16.msra.mxu0 0
      %1676 = vmatprep.subr.bf16.mxu0 0
      %1677 = vmatpush1.bf16.msra.mxu0 0
      %1678 = vmatprep.subr.bf16.mxu0 0
      %1679 = vmatpush1.bf16.msra.mxu0 0
      %1680 = vmatprep.subr.bf16.mxu0 0
      %1681 = vmatpush1.bf16.msra.mxu0 0
      %1682 = vmatprep.mubr.bf16.mxu0 0
      %1683 = vmatmul.mubr.bf16.gmra.mrb[0].mxu0 %v1636
      %v1684 = vpop.f32.mrb[0].mxu0
      %v1685 = vadd.f32 0.0, %v1684
      %v1686 = vpop.f32.mrb[0].mxu0
      %v1687 = vadd.f32 0.0, %v1686
      %v1688 = vpop.f32.mrb[0].mxu0
      %v1689 = vpop.f32.mrb[0].mxu0
      %1690 = vdwg.mxu0
      %1691 = vmatprep.subr.bf16.mxu0 %v1648
      %1692 = vmatpush1.bf16.msra.mxu0 %v1645
      %1693 = vmatprep.subr.bf16.mxu0 0
      %1694 = vmatpush1.bf16.msra.mxu0 0
      %1695 = vmatprep.subr.bf16.mxu0 0
      %1696 = vmatpush1.bf16.msra.mxu0 0
      %1697 = vmatprep.subr.bf16.mxu0 0
      %1698 = vmatpush1.bf16.msra.mxu0 0
      %1699 = vmatprep.subr.bf16.mxu0 0
      %1700 = vmatpush1.bf16.msra.mxu0 0
      %1701 = vmatprep.subr.bf16.mxu0 0
      %1702 = vmatpush1.bf16.msra.mxu0 0
      %1703 = vmatprep.subr.bf16.mxu0 0
      %1704 = vmatpush1.bf16.msra.mxu0 0
      %1705 = vmatprep.subr.bf16.mxu0 0
      %1706 = vmatpush1.bf16.msra.mxu0 0
      %1707 = vmatprep.subr.bf16.mxu0 0
      %1708 = vmatpush1.bf16.msra.mxu0 0
      %1709 = vmatprep.subr.bf16.mxu0 0
      %1710 = vmatpush1.bf16.msra.mxu0 0
      %1711 = vmatprep.subr.bf16.mxu0 0
      %1712 = vmatpush1.bf16.msra.mxu0 0
      %1713 = vmatprep.subr.bf16.mxu0 0
      %1714 = vmatpush1.bf16.msra.mxu0 0
      %1715 = vmatprep.subr.bf16.mxu0 0
      %1716 = vmatpush1.bf16.msra.mxu0 0
      %1717 = vmatprep.subr.bf16.mxu0 0
      %1718 = vmatpush1.bf16.msra.mxu0 0
      %1719 = vmatprep.subr.bf16.mxu0 0
      %1720 = vmatpush1.bf16.msra.mxu0 0
      %1721 = vmatprep.subr.bf16.mxu0 0
      %1722 = vmatpush1.bf16.msra.mxu0 0
      %1723 = vmatprep.mubr.bf16.mxu0 0
      %1724 = vmatmul.mubr.bf16.gmra.mrb[0].mxu0 %v1636
      %v1725 = vpop.f32.mrb[0].mxu0
      %v1726 = vadd.f32 0.0, %v1725
      %v1727 = vpop.f32.mrb[0].mxu0
      %v1728 = vadd.f32 0.0, %v1727
      %v1729 = vpop.f32.mrb[0].mxu0
      %v1730 = vpop.f32.mrb[0].mxu0
      %1731 = vdwg.mxu0
      %v1732 = vadd.f32 %v1604, %v1685
      %v1733 = vadd.f32 %v1605, %v1687
      %v1734 = vadd.f32 %v1606, %v1726
      %v1735 = vadd.f32 %v1607, %v1728
      %1736 = vrot.lane.b32.xlu0 %v309, 16
      %v1737 = vpop.permute.xlu0 %1736
      %1738 = vrot.lane.b32.xlu0 %v1610, 16
      %v1739 = vpop.permute.xlu0 %1738
      %1740 = vrot.lane.b32.xlu0 %v310, 16
      %v1741 = vpop.permute.xlu0 %1740
      %1742 = vrot.lane.b32.xlu0 %v1611, 16
      %v1743 = vpop.permute.xlu0 %1742
      %v1744 = vsel %vm371, %v1741, %v1743
      %v1745 = vsel %vm371, %v1739, %v1741
      %v1746 = vsel %vm371, %v1737, %v1739
      %v1747 = vsel %vm371, %v1743, %v1737
      %v1748 = vmul.f32 %v1747, %v382
      %v1749 = vmul.f32 %v1746, %v386
      %v1750 = vmul.f32 %v1745, %v390
      %v1751 = vmul.f32 %v1744, %v394
      %s1752 = scalar_lea.vmem %s4, 4
      %v1753 = vld [vmem:[%s1752] sm:$0xf]
      %v1754 = vpack.c.bf16 %v1748, %v1748
      %v1755 = vpack.c.bf16 %v1749, %v1749
      %v1756 = vpack.c.bf16 %v1750, %v1750
      %v1757 = vpack.c.bf16 %v1751, %v1751
      %v1759 = vsel %vm409, %v1753, 0
      %v1762 = vsel %vm413, %v1754, 0
      %v1765 = vsel %vm413, %v1755, 0
      %v1768 = vsel %vm413, %v1756, 0
      %v1771 = vsel %vm413, %v1757, 0
      %1773 = vmatprep.subr.bf16.mxu0 %v1765
      %1774 = vmatpush1.bf16.msra.mxu0 %v1762
      %1775 = vmatprep.subr.bf16.mxu0 0
      %1776 = vmatpush1.bf16.msra.mxu0 0
      %1777 = vmatprep.subr.bf16.mxu0 0
      %1778 = vmatpush1.bf16.msra.mxu0 0
      %1779 = vmatprep.subr.bf16.mxu0 0
      %1780 = vmatpush1.bf16.msra.mxu0 0
      %1781 = vmatprep.subr.bf16.mxu0 0
      %1782 = vmatpush1.bf16.msra.mxu0 0
      %1783 = vmatprep.subr.bf16.mxu0 0
      %1784 = vmatpush1.bf16.msra.mxu0 0
      %1785 = vmatprep.subr.bf16.mxu0 0
      %1786 = vmatpush1.bf16.msra.mxu0 0
      %1787 = vmatprep.subr.bf16.mxu0 0
      %1788 = vmatpush1.bf16.msra.mxu0 0
      %1789 = vmatprep.subr.bf16.mxu0 0
      %1790 = vmatpush1.bf16.msra.mxu0 0
      %1791 = vmatprep.subr.bf16.mxu0 0
      %1792 = vmatpush1.bf16.msra.mxu0 0
      %1793 = vmatprep.subr.bf16.mxu0 0
      %1794 = vmatpush1.bf16.msra.mxu0 0
      %1795 = vmatprep.subr.bf16.mxu0 0
      %1796 = vmatpush1.bf16.msra.mxu0 0
      %1797 = vmatprep.subr.bf16.mxu0 0
      %1798 = vmatpush1.bf16.msra.mxu0 0
      %1799 = vmatprep.subr.bf16.mxu0 0
      %1800 = vmatpush1.bf16.msra.mxu0 0
      %1801 = vmatprep.subr.bf16.mxu0 0
      %1802 = vmatpush1.bf16.msra.mxu0 0
      %1803 = vmatprep.subr.bf16.mxu0 0
      %1804 = vmatpush1.bf16.msra.mxu0 0
      %1805 = vmatprep.mubr.bf16.mxu0 0
      %1806 = vmatmul.mubr.bf16.gmra.mrb[0].mxu0 %v1759
      %v1807 = vpop.f32.mrb[0].mxu0
      %v1808 = vadd.f32 0.0, %v1807
      %v1809 = vpop.f32.mrb[0].mxu0
      %v1810 = vadd.f32 0.0, %v1809
      %v1811 = vpop.f32.mrb[0].mxu0
      %v1812 = vpop.f32.mrb[0].mxu0
      %1813 = vdwg.mxu0
      %1814 = vmatprep.subr.bf16.mxu0 %v1771
      %1815 = vmatpush1.bf16.msra.mxu0 %v1768
      %1816 = vmatprep.subr.bf16.mxu0 0
      %1817 = vmatpush1.bf16.msra.mxu0 0
      %1818 = vmatprep.subr.bf16.mxu0 0
      %1819 = vmatpush1.bf16.msra.mxu0 0
      %1820 = vmatprep.subr.bf16.mxu0 0
      %1821 = vmatpush1.bf16.msra.mxu0 0
      %1822 = vmatprep.subr.bf16.mxu0 0
      %1823 = vmatpush1.bf16.msra.mxu0 0
      %1824 = vmatprep.subr.bf16.mxu0 0
      %1825 = vmatpush1.bf16.msra.mxu0 0
      %1826 = vmatprep.subr.bf16.mxu0 0
      %1827 = vmatpush1.bf16.msra.mxu0 0
      %1828 = vmatprep.subr.bf16.mxu0 0
      %1829 = vmatpush1.bf16.msra.mxu0 0
      %1830 = vmatprep.subr.bf16.mxu0 0
      %1831 = vmatpush1.bf16.msra.mxu0 0
      %1832 = vmatprep.subr.bf16.mxu0 0
      %1833 = vmatpush1.bf16.msra.mxu0 0
      %1834 = vmatprep.subr.bf16.mxu0 0
      %1835 = vmatpush1.bf16.msra.mxu0 0
      %1836 = vmatprep.subr.bf16.mxu0 0
      %1837 = vmatpush1.bf16.msra.mxu0 0
      %1838 = vmatprep.subr.bf16.mxu0 0
      %1839 = vmatpush1.bf16.msra.mxu0 0
      %1840 = vmatprep.subr.bf16.mxu0 0
      %1841 = vmatpush1.bf16.msra.mxu0 0
      %1842 = vmatprep.subr.bf16.mxu0 0
      %1843 = vmatpush1.bf16.msra.mxu0 0
      %1844 = vmatprep.subr.bf16.mxu0 0
      %1845 = vmatpush1.bf16.msra.mxu0 0
      %1846 = vmatprep.mubr.bf16.mxu0 0
      %1847 = vmatmul.mubr.bf16.gmra.mrb[0].mxu0 %v1759
      %v1848 = vpop.f32.mrb[0].mxu0
      %v1849 = vadd.f32 0.0, %v1848
      %v1850 = vpop.f32.mrb[0].mxu0
      %v1851 = vadd.f32 0.0, %v1850
      %v1852 = vpop.f32.mrb[0].mxu0
      %v1853 = vpop.f32.mrb[0].mxu0
      %1854 = vdwg.mxu0
      %v1855 = vadd.f32 %v1732, %v1808
      %v1856 = vadd.f32 %v1733, %v1810
      %v1857 = vadd.f32 %v1734, %v1849
      %v1858 = vadd.f32 %v1735, %v1851
      %1859 = vrot.lane.b32.xlu0 %v309, 15
      %v1860 = vpop.permute.xlu0 %1859
      %1861 = vrot.lane.b32.xlu0 %v1610, 15
      %v1862 = vpop.permute.xlu0 %1861
      %1863 = vrot.lane.b32.xlu0 %v310, 15
      %v1864 = vpop.permute.xlu0 %1863
      %1865 = vrot.lane.b32.xlu0 %v1611, 15
      %v1866 = vpop.permute.xlu0 %1865
      %v1867 = vsel %vm613, %v1864, %v1866
      %v1868 = vsel %vm613, %v1862, %v1864
      %v1869 = vsel %vm613, %v1860, %v1862
      %v1870 = vsel %vm613, %v1866, %v1860
      %v1871 = vmul.f32 %v1870, %v624
      %v1872 = vmul.f32 %v1869, %v628
      %v1873 = vmul.f32 %v1868, %v632
      %v1874 = vmul.f32 %v1867, %v636
      %s1875 = scalar_lea.vmem %s4, 8
      %v1876 = vld [vmem:[%s1875] sm:$0xf]
      %v1877 = vpack.c.bf16 %v1871, %v1871
      %v1878 = vpack.c.bf16 %v1872, %v1872
      %v1879 = vpack.c.bf16 %v1873, %v1873
      %v1880 = vpack.c.bf16 %v1874, %v1874
      %v1882 = vsel %vm409, %v1876, 0
      %v1885 = vsel %vm413, %v1877, 0
      %v1888 = vsel %vm413, %v1878, 0
      %v1891 = vsel %vm413, %v1879, 0
      %v1894 = vsel %vm413, %v1880, 0
      %1896 = vmatprep.subr.bf16.mxu0 %v1888
      %1897 = vmatpush1.bf16.msra.mxu0 %v1885
      %1898 = vmatprep.subr.bf16.mxu0 0
      %1899 = vmatpush1.bf16.msra.mxu0 0
      %1900 = vmatprep.subr.bf16.mxu0 0
      %1901 = vmatpush1.bf16.msra.mxu0 0
      %1902 = vmatprep.subr.bf16.mxu0 0
      %1903 = vmatpush1.bf16.msra.mxu0 0
      %1904 = vmatprep.subr.bf16.mxu0 0
      %1905 = vmatpush1.bf16.msra.mxu0 0
      %1906 = vmatprep.subr.bf16.mxu0 0
      %1907 = vmatpush1.bf16.msra.mxu0 0
      %1908 = vmatprep.subr.bf16.mxu0 0
      %1909 = vmatpush1.bf16.msra.mxu0 0
      %1910 = vmatprep.subr.bf16.mxu0 0
      %1911 = vmatpush1.bf16.msra.mxu0 0
      %1912 = vmatprep.subr.bf16.mxu0 0
      %1913 = vmatpush1.bf16.msra.mxu0 0
      %1914 = vmatprep.subr.bf16.mxu0 0
      %1915 = vmatpush1.bf16.msra.mxu0 0
      %1916 = vmatprep.subr.bf16.mxu0 0
      %1917 = vmatpush1.bf16.msra.mxu0 0
      %1918 = vmatprep.subr.bf16.mxu0 0
      %1919 = vmatpush1.bf16.msra.mxu0 0
      %1920 = vmatprep.subr.bf16.mxu0 0
      %1921 = vmatpush1.bf16.msra.mxu0 0
      %1922 = vmatprep.subr.bf16.mxu0 0
      %1923 = vmatpush1.bf16.msra.mxu0 0
      %1924 = vmatprep.subr.bf16.mxu0 0
      %1925 = vmatpush1.bf16.msra.mxu0 0
      %1926 = vmatprep.subr.bf16.mxu0 0
      %1927 = vmatpush1.bf16.msra.mxu0 0
      %1928 = vmatprep.mubr.bf16.mxu0 0
      %1929 = vmatmul.mubr.bf16.gmra.mrb[0].mxu0 %v1882
      %v1930 = vpop.f32.mrb[0].mxu0
      %v1931 = vadd.f32 0.0, %v1930
      %v1932 = vpop.f32.mrb[0].mxu0
      %v1933 = vadd.f32 0.0, %v1932
      %v1934 = vpop.f32.mrb[0].mxu0
      %v1935 = vpop.f32.mrb[0].mxu0
      %1936 = vdwg.mxu0
      %1937 = vmatprep.subr.bf16.mxu0 %v1894
      %1938 = vmatpush1.bf16.msra.mxu0 %v1891
      %1939 = vmatprep.subr.bf16.mxu0 0
      %1940 = vmatpush1.bf16.msra.mxu0 0
      %1941 = vmatprep.subr.bf16.mxu0 0
      %1942 = vmatpush1.bf16.msra.mxu0 0
      %1943 = vmatprep.subr.bf16.mxu0 0
      %1944 = vmatpush1.bf16.msra.mxu0 0
      %1945 = vmatprep.subr.bf16.mxu0 0
      %1946 = vmatpush1.bf16.msra.mxu0 0
      %1947 = vmatprep.subr.bf16.mxu0 0
      %1948 = vmatpush1.bf16.msra.mxu0 0
      %1949 = vmatprep.subr.bf16.mxu0 0
      %1950 = vmatpush1.bf16.msra.mxu0 0
      %1951 = vmatprep.subr.bf16.mxu0 0
      %1952 = vmatpush1.bf16.msra.mxu0 0
      %1953 = vmatprep.subr.bf16.mxu0 0
      %1954 = vmatpush1.bf16.msra.mxu0 0
      %1955 = vmatprep.subr.bf16.mxu0 0
      %1956 = vmatpush1.bf16.msra.mxu0 0
      %1957 = vmatprep.subr.bf16.mxu0 0
      %1958 = vmatpush1.bf16.msra.mxu0 0
      %1959 = vmatprep.subr.bf16.mxu0 0
      %1960 = vmatpush1.bf16.msra.mxu0 0
      %1961 = vmatprep.subr.bf16.mxu0 0
      %1962 = vmatpush1.bf16.msra.mxu0 0
      %1963 = vmatprep.subr.bf16.mxu0 0
      %1964 = vmatpush1.bf16.msra.mxu0 0
      %1965 = vmatprep.subr.bf16.mxu0 0
      %1966 = vmatpush1.bf16.msra.mxu0 0
      %1967 = vmatprep.subr.bf16.mxu0 0
      %1968 = vmatpush1.bf16.msra.mxu0 0
      %1969 = vmatprep.mubr.bf16.mxu0 0
      %1970 = vmatmul.mubr.bf16.gmra.mrb[0].mxu0 %v1882
      %v1971 = vpop.f32.mrb[0].mxu0
      %v1972 = vadd.f32 0.0, %v1971
      %v1973 = vpop.f32.mrb[0].mxu0
      %v1974 = vadd.f32 0.0, %v1973
      %v1975 = vpop.f32.mrb[0].mxu0
      %v1976 = vpop.f32.mrb[0].mxu0
      %1977 = vdwg.mxu0
      %v1978 = vadd.f32 %v1855, %v1931
      %v1979 = vadd.f32 %v1856, %v1933
      %v1980 = vadd.f32 %v1857, %v1972
      %v1981 = vadd.f32 %v1858, %v1974
      %1982 = vrot.lane.b32.xlu0 %v309, 1
      %v1983 = vpop.permute.xlu0 %1982
      %1984 = vrot.lane.b32.xlu0 %v1610, 1
      %v1985 = vpop.permute.xlu0 %1984
      %1986 = vrot.lane.b32.xlu0 %v310, 1
      %v1987 = vpop.permute.xlu0 %1986
      %1988 = vrot.lane.b32.xlu0 %v1611, 1
      %v1989 = vpop.permute.xlu0 %1988
      %v1990 = vsel %vm760, %v1987, %v1989
      %v1991 = vsel %vm760, %v1985, %v1987
      %v1992 = vsel %vm760, %v1983, %v1985
      %v1993 = vsel %vm760, %v1989, %v1983
      %v1994 = vmul.f32 %v1993, %v771
      %v1995 = vmul.f32 %v1992, %v775
      %v1996 = vmul.f32 %v1991, %v779
      %v1997 = vmul.f32 %v1990, %v783
      %s1998 = scalar_lea.vmem %s4, 12
      %v1999 = vld [vmem:[%s1998] sm:$0xf]
      %v2000 = vpack.c.bf16 %v1994, %v1994
      %v2001 = vpack.c.bf16 %v1995, %v1995
      %v2002 = vpack.c.bf16 %v1996, %v1996
      %v2003 = vpack.c.bf16 %v1997, %v1997
      %v2005 = vsel %vm409, %v1999, 0
      %v2008 = vsel %vm413, %v2000, 0
      %v2011 = vsel %vm413, %v2001, 0
      %v2014 = vsel %vm413, %v2002, 0
      %v2017 = vsel %vm413, %v2003, 0
      %2019 = vmatprep.subr.bf16.mxu0 %v2011
      %2020 = vmatpush1.bf16.msra.mxu0 %v2008
      %2021 = vmatprep.subr.bf16.mxu0 0
      %2022 = vmatpush1.bf16.msra.mxu0 0
      %2023 = vmatprep.subr.bf16.mxu0 0
      %2024 = vmatpush1.bf16.msra.mxu0 0
      %2025 = vmatprep.subr.bf16.mxu0 0
      %2026 = vmatpush1.bf16.msra.mxu0 0
      %2027 = vmatprep.subr.bf16.mxu0 0
      %2028 = vmatpush1.bf16.msra.mxu0 0
      %2029 = vmatprep.subr.bf16.mxu0 0
      %2030 = vmatpush1.bf16.msra.mxu0 0
      %2031 = vmatprep.subr.bf16.mxu0 0
      %2032 = vmatpush1.bf16.msra.mxu0 0
      %2033 = vmatprep.subr.bf16.mxu0 0
      %2034 = vmatpush1.bf16.msra.mxu0 0
      %2035 = vmatprep.subr.bf16.mxu0 0
      %2036 = vmatpush1.bf16.msra.mxu0 0
      %2037 = vmatprep.subr.bf16.mxu0 0
      %2038 = vmatpush1.bf16.msra.mxu0 0
      %2039 = vmatprep.subr.bf16.mxu0 0
      %2040 = vmatpush1.bf16.msra.mxu0 0
      %2041 = vmatprep.subr.bf16.mxu0 0
      %2042 = vmatpush1.bf16.msra.mxu0 0
      %2043 = vmatprep.subr.bf16.mxu0 0
      %2044 = vmatpush1.bf16.msra.mxu0 0
      %2045 = vmatprep.subr.bf16.mxu0 0
      %2046 = vmatpush1.bf16.msra.mxu0 0
      %2047 = vmatprep.subr.bf16.mxu0 0
      %2048 = vmatpush1.bf16.msra.mxu0 0
      %2049 = vmatprep.subr.bf16.mxu0 0
      %2050 = vmatpush1.bf16.msra.mxu0 0
      %2051 = vmatprep.mubr.bf16.mxu0 0
      %2052 = vmatmul.mubr.bf16.gmra.mrb[0].mxu0 %v2005
      %v2053 = vpop.f32.mrb[0].mxu0
      %v2054 = vadd.f32 0.0, %v2053
      %v2055 = vpop.f32.mrb[0].mxu0
      %v2056 = vadd.f32 0.0, %v2055
      %v2057 = vpop.f32.mrb[0].mxu0
      %v2058 = vpop.f32.mrb[0].mxu0
      %2059 = vdwg.mxu0
      %2060 = vmatprep.subr.bf16.mxu0 %v2017
      %2061 = vmatpush1.bf16.msra.mxu0 %v2014
      %2062 = vmatprep.subr.bf16.mxu0 0
      %2063 = vmatpush1.bf16.msra.mxu0 0
      %2064 = vmatprep.subr.bf16.mxu0 0
      %2065 = vmatpush1.bf16.msra.mxu0 0
      %2066 = vmatprep.subr.bf16.mxu0 0
      %2067 = vmatpush1.bf16.msra.mxu0 0
      %2068 = vmatprep.subr.bf16.mxu0 0
      %2069 = vmatpush1.bf16.msra.mxu0 0
      %2070 = vmatprep.subr.bf16.mxu0 0
      %2071 = vmatpush1.bf16.msra.mxu0 0
      %2072 = vmatprep.subr.bf16.mxu0 0
      %2073 = vmatpush1.bf16.msra.mxu0 0
      %2074 = vmatprep.subr.bf16.mxu0 0
      %2075 = vmatpush1.bf16.msra.mxu0 0
      %2076 = vmatprep.subr.bf16.mxu0 0
      %2077 = vmatpush1.bf16.msra.mxu0 0
      %2078 = vmatprep.subr.bf16.mxu0 0
      %2079 = vmatpush1.bf16.msra.mxu0 0
      %2080 = vmatprep.subr.bf16.mxu0 0
      %2081 = vmatpush1.bf16.msra.mxu0 0
      %2082 = vmatprep.subr.bf16.mxu0 0
      %2083 = vmatpush1.bf16.msra.mxu0 0
      %2084 = vmatprep.subr.bf16.mxu0 0
      %2085 = vmatpush1.bf16.msra.mxu0 0
      %2086 = vmatprep.subr.bf16.mxu0 0
      %2087 = vmatpush1.bf16.msra.mxu0 0
      %2088 = vmatprep.subr.bf16.mxu0 0
      %2089 = vmatpush1.bf16.msra.mxu0 0
      %2090 = vmatprep.subr.bf16.mxu0 0
      %2091 = vmatpush1.bf16.msra.mxu0 0
      %2092 = vmatprep.mubr.bf16.mxu0 0
      %2093 = vmatmul.mubr.bf16.gmra.mrb[0].mxu0 %v2005
      %v2094 = vpop.f32.mrb[0].mxu0
      %v2095 = vadd.f32 0.0, %v2094
      %v2096 = vpop.f32.mrb[0].mxu0
      %v2097 = vadd.f32 0.0, %v2096
      %v2098 = vpop.f32.mrb[0].mxu0
      %v2099 = vpop.f32.mrb[0].mxu0
      %2100 = vdwg.mxu0
      %v2101 = vadd.f32 %v1978, %v2054
      %v2102 = vadd.f32 %v1979, %v2056
      %v2103 = vadd.f32 %v1980, %v2095
      %v2104 = vadd.f32 %v1981, %v2097
      %s2105 = scalar_lea.vmem %s4, 16
      %v2106 = vld [vmem:[%s2105] sm:$0xf]
      %v2108 = vcombine.high %v308, %v308
      %v2110 = vunpack.c.l.s4 1983009808
      %v2111 = vunpack.c.0.s8 %v2110
      %v2112 = vlaneseq
      %v2113 = vshrl.u32 %v2112, 7
      %v2114 = vsub.s32 %v2111, %v2113
      %v2115 = vrot.slane %v308, %v2114
      %v2117 = vunpack.c.l.s4 1983009808
      %v2118 = vunpack.c.0.s8 %v2117
      %v2119 = vlaneseq
      %v2120 = vshrl.u32 %v2119, 7
      %v2121 = vsub.s32 %v2118, %v2120
      %v2122 = vrot.slane %v2108, %v2121
      %v2123 = vcombine.high %v2115, %v2115
      %v2124 = vcombine.high %v2122, %v2122
      %v2126 = vsel %vm409, %v2106, 0
      %v2129 = vsel %vm413, %v2115, 0
      %v2132 = vsel %vm413, %v2123, 0
      %v2135 = vsel %vm413, %v2122, 0
      %v2138 = vsel %vm413, %v2124, 0
      %2140 = vmatprep.subr.bf16.mxu0 %v2132
      %2141 = vmatpush1.bf16.msra.mxu0 %v2129
      %2142 = vmatprep.subr.bf16.mxu0 0
      %2143 = vmatpush1.bf16.msra.mxu0 0
      %2144 = vmatprep.subr.bf16.mxu0 0
      %2145 = vmatpush1.bf16.msra.mxu0 0
      %2146 = vmatprep.subr.bf16.mxu0 0
      %2147 = vmatpush1.bf16.msra.mxu0 0
      %2148 = vmatprep.subr.bf16.mxu0 0
      %2149 = vmatpush1.bf16.msra.mxu0 0
      %2150 = vmatprep.subr.bf16.mxu0 0
      %2151 = vmatpush1.bf16.msra.mxu0 0
      %2152 = vmatprep.subr.bf16.mxu0 0
      %2153 = vmatpush1.bf16.msra.mxu0 0
      %2154 = vmatprep.subr.bf16.mxu0 0
      %2155 = vmatpush1.bf16.msra.mxu0 0
      %2156 = vmatprep.subr.bf16.mxu0 0
      %2157 = vmatpush1.bf16.msra.mxu0 0
      %2158 = vmatprep.subr.bf16.mxu0 0
      %2159 = vmatpush1.bf16.msra.mxu0 0
      %2160 = vmatprep.subr.bf16.mxu0 0
      %2161 = vmatpush1.bf16.msra.mxu0 0
      %2162 = vmatprep.subr.bf16.mxu0 0
      %2163 = vmatpush1.bf16.msra.mxu0 0
      %2164 = vmatprep.subr.bf16.mxu0 0
      %2165 = vmatpush1.bf16.msra.mxu0 0
      %2166 = vmatprep.subr.bf16.mxu0 0
      %2167 = vmatpush1.bf16.msra.mxu0 0
      %2168 = vmatprep.subr.bf16.mxu0 0
      %2169 = vmatpush1.bf16.msra.mxu0 0
      %2170 = vmatprep.subr.bf16.mxu0 0
      %2171 = vmatpush1.bf16.msra.mxu0 0
      %2172 = vmatprep.mubr.bf16.mxu0 0
      %2173 = vmatmul.mubr.bf16.gmra.mrb[0].mxu0 %v2126
      %v2174 = vpop.f32.mrb[0].mxu0
      %v2175 = vadd.f32 0.0, %v2174
      %v2176 = vpop.f32.mrb[0].mxu0
      %v2177 = vadd.f32 0.0, %v2176
      %v2178 = vpop.f32.mrb[0].mxu0
      %v2179 = vpop.f32.mrb[0].mxu0
      %2180 = vdwg.mxu0
      %2181 = vmatprep.subr.bf16.mxu0 %v2138
      %2182 = vmatpush1.bf16.msra.mxu0 %v2135
      %2183 = vmatprep.subr.bf16.mxu0 0
      %2184 = vmatpush1.bf16.msra.mxu0 0
      %2185 = vmatprep.subr.bf16.mxu0 0
      %2186 = vmatpush1.bf16.msra.mxu0 0
      %2187 = vmatprep.subr.bf16.mxu0 0
      %2188 = vmatpush1.bf16.msra.mxu0 0
      %2189 = vmatprep.subr.bf16.mxu0 0
      %2190 = vmatpush1.bf16.msra.mxu0 0
      %2191 = vmatprep.subr.bf16.mxu0 0
      %2192 = vmatpush1.bf16.msra.mxu0 0
      %2193 = vmatprep.subr.bf16.mxu0 0
      %2194 = vmatpush1.bf16.msra.mxu0 0
      %2195 = vmatprep.subr.bf16.mxu0 0
      %2196 = vmatpush1.bf16.msra.mxu0 0
      %2197 = vmatprep.subr.bf16.mxu0 0
      %2198 = vmatpush1.bf16.msra.mxu0 0
      %2199 = vmatprep.subr.bf16.mxu0 0
      %2200 = vmatpush1.bf16.msra.mxu0 0
      %2201 = vmatprep.subr.bf16.mxu0 0
      %2202 = vmatpush1.bf16.msra.mxu0 0
      %2203 = vmatprep.subr.bf16.mxu0 0
      %2204 = vmatpush1.bf16.msra.mxu0 0
      %2205 = vmatprep.subr.bf16.mxu0 0
      %2206 = vmatpush1.bf16.msra.mxu0 0
      %2207 = vmatprep.subr.bf16.mxu0 0
      %2208 = vmatpush1.bf16.msra.mxu0 0
      %2209 = vmatprep.subr.bf16.mxu0 0
      %2210 = vmatpush1.bf16.msra.mxu0 0
      %2211 = vmatprep.subr.bf16.mxu0 0
      %2212 = vmatpush1.bf16.msra.mxu0 0
      %2213 = vmatprep.mubr.bf16.mxu0 0
      %2214 = vmatmul.mubr.bf16.gmra.mrb[0].mxu0 %v2126
      %v2215 = vpop.f32.mrb[0].mxu0
      %v2216 = vadd.f32 0.0, %v2215
      %v2217 = vpop.f32.mrb[0].mxu0
      %v2218 = vadd.f32 0.0, %v2217
      %v2219 = vpop.f32.mrb[0].mxu0
      %v2220 = vpop.f32.mrb[0].mxu0
      %2221 = vdwg.mxu0
      %v2222 = vadd.f32 %v2101, %v2175
      %v2223 = vadd.f32 %v2102, %v2177
      %v2224 = vadd.f32 %v2103, %v2216
      %v2225 = vadd.f32 %v2104, %v2218
      %2226 = vrot.lane.b32.xlu0 %v309, 127
      %v2227 = vpop.permute.xlu0 %2226
      %2228 = vrot.lane.b32.xlu0 %v1610, 127
      %v2229 = vpop.permute.xlu0 %2228
      %2230 = vrot.lane.b32.xlu0 %v310, 127
      %v2231 = vpop.permute.xlu0 %2230
      %2232 = vrot.lane.b32.xlu0 %v1611, 127
      %v2233 = vpop.permute.xlu0 %2232
      %v2234 = vsel %vm1028, %v2231, %v2233
      %v2235 = vsel %vm1028, %v2229, %v2231
      %v2236 = vsel %vm1028, %v2227, %v2229
      %v2237 = vsel %vm1028, %v2233, %v2227
      %v2238 = vmul.f32 %v2236, %v1039
      %v2239 = vmul.f32 %v2235, %v1043
      %v2240 = vmul.f32 %v2234, %v1047
      %v2241 = vmul.f32 %v2237, %v1051
      %s2242 = scalar_lea.vmem %s4, 20
      %v2243 = vld [vmem:[%s2242] sm:$0xf]
      %v2244 = vpack.c.bf16 %v2238, %v2238
      %v2245 = vpack.c.bf16 %v2239, %v2239
      %v2246 = vpack.c.bf16 %v2240, %v2240
      %v2247 = vpack.c.bf16 %v2241, %v2241
      %v2249 = vsel %vm409, %v2243, 0
      %v2252 = vsel %vm413, %v2244, 0
      %v2255 = vsel %vm413, %v2245, 0
      %v2258 = vsel %vm413, %v2246, 0
      %v2261 = vsel %vm413, %v2247, 0
      %2263 = vmatprep.subr.bf16.mxu0 %v2255
      %2264 = vmatpush1.bf16.msra.mxu0 %v2252
      %2265 = vmatprep.subr.bf16.mxu0 0
      %2266 = vmatpush1.bf16.msra.mxu0 0
      %2267 = vmatprep.subr.bf16.mxu0 0
      %2268 = vmatpush1.bf16.msra.mxu0 0
      %2269 = vmatprep.subr.bf16.mxu0 0
      %2270 = vmatpush1.bf16.msra.mxu0 0
      %2271 = vmatprep.subr.bf16.mxu0 0
      %2272 = vmatpush1.bf16.msra.mxu0 0
      %2273 = vmatprep.subr.bf16.mxu0 0
      %2274 = vmatpush1.bf16.msra.mxu0 0
      %2275 = vmatprep.subr.bf16.mxu0 0
      %2276 = vmatpush1.bf16.msra.mxu0 0
      %2277 = vmatprep.subr.bf16.mxu0 0
      %2278 = vmatpush1.bf16.msra.mxu0 0
      %2279 = vmatprep.subr.bf16.mxu0 0
      %2280 = vmatpush1.bf16.msra.mxu0 0
      %2281 = vmatprep.subr.bf16.mxu0 0
      %2282 = vmatpush1.bf16.msra.mxu0 0
      %2283 = vmatprep.subr.bf16.mxu0 0
      %2284 = vmatpush1.bf16.msra.mxu0 0
      %2285 = vmatprep.subr.bf16.mxu0 0
      %2286 = vmatpush1.bf16.msra.mxu0 0
      %2287 = vmatprep.subr.bf16.mxu0 0
      %2288 = vmatpush1.bf16.msra.mxu0 0
      %2289 = vmatprep.subr.bf16.mxu0 0
      %2290 = vmatpush1.bf16.msra.mxu0 0
      %2291 = vmatprep.subr.bf16.mxu0 0
      %2292 = vmatpush1.bf16.msra.mxu0 0
      %2293 = vmatprep.subr.bf16.mxu0 0
      %2294 = vmatpush1.bf16.msra.mxu0 0
      %2295 = vmatprep.mubr.bf16.mxu0 0
      %2296 = vmatmul.mubr.bf16.gmra.mrb[0].mxu0 %v2249
      %v2297 = vpop.f32.mrb[0].mxu0
      %v2298 = vadd.f32 0.0, %v2297
      %v2299 = vpop.f32.mrb[0].mxu0
      %v2300 = vadd.f32 0.0, %v2299
      %v2301 = vpop.f32.mrb[0].mxu0
      %v2302 = vpop.f32.mrb[0].mxu0
      %2303 = vdwg.mxu0
      %2304 = vmatprep.subr.bf16.mxu0 %v2261
      %2305 = vmatpush1.bf16.msra.mxu0 %v2258
      %2306 = vmatprep.subr.bf16.mxu0 0
      %2307 = vmatpush1.bf16.msra.mxu0 0
      %2308 = vmatprep.subr.bf16.mxu0 0
      %2309 = vmatpush1.bf16.msra.mxu0 0
      %2310 = vmatprep.subr.bf16.mxu0 0
      %2311 = vmatpush1.bf16.msra.mxu0 0
      %2312 = vmatprep.subr.bf16.mxu0 0
      %2313 = vmatpush1.bf16.msra.mxu0 0
      %2314 = vmatprep.subr.bf16.mxu0 0
      %2315 = vmatpush1.bf16.msra.mxu0 0
      %2316 = vmatprep.subr.bf16.mxu0 0
      %2317 = vmatpush1.bf16.msra.mxu0 0
      %2318 = vmatprep.subr.bf16.mxu0 0
      %2319 = vmatpush1.bf16.msra.mxu0 0
      %2320 = vmatprep.subr.bf16.mxu0 0
      %2321 = vmatpush1.bf16.msra.mxu0 0
      %2322 = vmatprep.subr.bf16.mxu0 0
      %2323 = vmatpush1.bf16.msra.mxu0 0
      %2324 = vmatprep.subr.bf16.mxu0 0
      %2325 = vmatpush1.bf16.msra.mxu0 0
      %2326 = vmatprep.subr.bf16.mxu0 0
      %2327 = vmatpush1.bf16.msra.mxu0 0
      %2328 = vmatprep.subr.bf16.mxu0 0
      %2329 = vmatpush1.bf16.msra.mxu0 0
      %2330 = vmatprep.subr.bf16.mxu0 0
      %2331 = vmatpush1.bf16.msra.mxu0 0
      %2332 = vmatprep.subr.bf16.mxu0 0
      %2333 = vmatpush1.bf16.msra.mxu0 0
      %2334 = vmatprep.subr.bf16.mxu0 0
      %2335 = vmatpush1.bf16.msra.mxu0 0
      %2336 = vmatprep.mubr.bf16.mxu0 0
      %2337 = vmatmul.mubr.bf16.gmra.mrb[0].mxu0 %v2249
      %v2338 = vpop.f32.mrb[0].mxu0
      %v2339 = vadd.f32 0.0, %v2338
      %v2340 = vpop.f32.mrb[0].mxu0
      %v2341 = vadd.f32 0.0, %v2340
      %v2342 = vpop.f32.mrb[0].mxu0
      %v2343 = vpop.f32.mrb[0].mxu0
      %2344 = vdwg.mxu0
      %v2345 = vadd.f32 %v2222, %v2298
      %v2346 = vadd.f32 %v2223, %v2300
      %v2347 = vadd.f32 %v2224, %v2339
      %v2348 = vadd.f32 %v2225, %v2341
      %2349 = vrot.lane.b32.xlu0 %v309, 113
      %v2350 = vpop.permute.xlu0 %2349
      %2351 = vrot.lane.b32.xlu0 %v1610, 113
      %v2352 = vpop.permute.xlu0 %2351
      %2353 = vrot.lane.b32.xlu0 %v310, 113
      %v2354 = vpop.permute.xlu0 %2353
      %2355 = vrot.lane.b32.xlu0 %v1611, 113
      %v2356 = vpop.permute.xlu0 %2355
      %v2357 = vsel %vm1175, %v2354, %v2356
      %v2358 = vsel %vm1175, %v2352, %v2354
      %v2359 = vsel %vm1175, %v2350, %v2352
      %v2360 = vsel %vm1175, %v2356, %v2350
      %v2361 = vmul.f32 %v2359, %v1186
      %v2362 = vmul.f32 %v2358, %v1190
      %v2363 = vmul.f32 %v2357, %v1194
      %v2364 = vmul.f32 %v2360, %v1198
      %s2365 = scalar_lea.vmem %s4, 24
      %v2366 = vld [vmem:[%s2365] sm:$0xf]
      %v2367 = vpack.c.bf16 %v2361, %v2361
      %v2368 = vpack.c.bf16 %v2362, %v2362
      %v2369 = vpack.c.bf16 %v2363, %v2363
      %v2370 = vpack.c.bf16 %v2364, %v2364
      %v2372 = vsel %vm409, %v2366, 0
      %v2375 = vsel %vm413, %v2367, 0
      %v2378 = vsel %vm413, %v2368, 0
      %v2381 = vsel %vm413, %v2369, 0
      %v2384 = vsel %vm413, %v2370, 0
      %2386 = vmatprep.subr.bf16.mxu0 %v2378
      %2387 = vmatpush1.bf16.msra.mxu0 %v2375
      %2388 = vmatprep.subr.bf16.mxu0 0
      %2389 = vmatpush1.bf16.msra.mxu0 0
      %2390 = vmatprep.subr.bf16.mxu0 0
      %2391 = vmatpush1.bf16.msra.mxu0 0
      %2392 = vmatprep.subr.bf16.mxu0 0
      %2393 = vmatpush1.bf16.msra.mxu0 0
      %2394 = vmatprep.subr.bf16.mxu0 0
      %2395 = vmatpush1.bf16.msra.mxu0 0
      %2396 = vmatprep.subr.bf16.mxu0 0
      %2397 = vmatpush1.bf16.msra.mxu0 0
      %2398 = vmatprep.subr.bf16.mxu0 0
      %2399 = vmatpush1.bf16.msra.mxu0 0
      %2400 = vmatprep.subr.bf16.mxu0 0
      %2401 = vmatpush1.bf16.msra.mxu0 0
      %2402 = vmatprep.subr.bf16.mxu0 0
      %2403 = vmatpush1.bf16.msra.mxu0 0
      %2404 = vmatprep.subr.bf16.mxu0 0
      %2405 = vmatpush1.bf16.msra.mxu0 0
      %2406 = vmatprep.subr.bf16.mxu0 0
      %2407 = vmatpush1.bf16.msra.mxu0 0
      %2408 = vmatprep.subr.bf16.mxu0 0
      %2409 = vmatpush1.bf16.msra.mxu0 0
      %2410 = vmatprep.subr.bf16.mxu0 0
      %2411 = vmatpush1.bf16.msra.mxu0 0
      %2412 = vmatprep.subr.bf16.mxu0 0
      %2413 = vmatpush1.bf16.msra.mxu0 0
      %2414 = vmatprep.subr.bf16.mxu0 0
      %2415 = vmatpush1.bf16.msra.mxu0 0
      %2416 = vmatprep.subr.bf16.mxu0 0
      %2417 = vmatpush1.bf16.msra.mxu0 0
      %2418 = vmatprep.mubr.bf16.mxu0 0
      %2419 = vmatmul.mubr.bf16.gmra.mrb[0].mxu0 %v2372
      %v2420 = vpop.f32.mrb[0].mxu0
      %v2421 = vadd.f32 0.0, %v2420
      %v2422 = vpop.f32.mrb[0].mxu0
      %v2423 = vadd.f32 0.0, %v2422
      %v2424 = vpop.f32.mrb[0].mxu0
      %v2425 = vpop.f32.mrb[0].mxu0
      %2426 = vdwg.mxu0
      %2427 = vmatprep.subr.bf16.mxu0 %v2384
      %2428 = vmatpush1.bf16.msra.mxu0 %v2381
      %2429 = vmatprep.subr.bf16.mxu0 0
      %2430 = vmatpush1.bf16.msra.mxu0 0
      %2431 = vmatprep.subr.bf16.mxu0 0
      %2432 = vmatpush1.bf16.msra.mxu0 0
      %2433 = vmatprep.subr.bf16.mxu0 0
      %2434 = vmatpush1.bf16.msra.mxu0 0
      %2435 = vmatprep.subr.bf16.mxu0 0
      %2436 = vmatpush1.bf16.msra.mxu0 0
      %2437 = vmatprep.subr.bf16.mxu0 0
      %2438 = vmatpush1.bf16.msra.mxu0 0
      %2439 = vmatprep.subr.bf16.mxu0 0
      %2440 = vmatpush1.bf16.msra.mxu0 0
      %2441 = vmatprep.subr.bf16.mxu0 0
      %2442 = vmatpush1.bf16.msra.mxu0 0
      %2443 = vmatprep.subr.bf16.mxu0 0
      %2444 = vmatpush1.bf16.msra.mxu0 0
      %2445 = vmatprep.subr.bf16.mxu0 0
      %2446 = vmatpush1.bf16.msra.mxu0 0
      %2447 = vmatprep.subr.bf16.mxu0 0
      %2448 = vmatpush1.bf16.msra.mxu0 0
      %2449 = vmatprep.subr.bf16.mxu0 0
      %2450 = vmatpush1.bf16.msra.mxu0 0
      %2451 = vmatprep.subr.bf16.mxu0 0
      %2452 = vmatpush1.bf16.msra.mxu0 0
      %2453 = vmatprep.subr.bf16.mxu0 0
      %2454 = vmatpush1.bf16.msra.mxu0 0
      %2455 = vmatprep.subr.bf16.mxu0 0
      %2456 = vmatpush1.bf16.msra.mxu0 0
      %2457 = vmatprep.subr.bf16.mxu0 0
      %2458 = vmatpush1.bf16.msra.mxu0 0
      %2459 = vmatprep.mubr.bf16.mxu0 0
      %2460 = vmatmul.mubr.bf16.gmra.mrb[0].mxu0 %v2372
      %v2461 = vpop.f32.mrb[0].mxu0
      %v2462 = vadd.f32 0.0, %v2461
      %v2463 = vpop.f32.mrb[0].mxu0
      %v2464 = vadd.f32 0.0, %v2463
      %v2465 = vpop.f32.mrb[0].mxu0
      %v2466 = vpop.f32.mrb[0].mxu0
      %2467 = vdwg.mxu0
      %v2468 = vadd.f32 %v2345, %v2421
      %v2469 = vadd.f32 %v2346, %v2423
      %v2470 = vadd.f32 %v2347, %v2462
      %v2471 = vadd.f32 %v2348, %v2464
      %2472 = vrot.lane.b32.xlu0 %v309, 112
      %v2473 = vpop.permute.xlu0 %2472
      %2474 = vrot.lane.b32.xlu0 %v1610, 112
      %v2475 = vpop.permute.xlu0 %2474
      %2476 = vrot.lane.b32.xlu0 %v310, 112
      %v2477 = vpop.permute.xlu0 %2476
      %2478 = vrot.lane.b32.xlu0 %v1611, 112
      %v2479 = vpop.permute.xlu0 %2478
      %v2480 = vsel %vm1322, %v2477, %v2479
      %v2481 = vsel %vm1322, %v2475, %v2477
      %v2482 = vsel %vm1322, %v2473, %v2475
      %v2483 = vsel %vm1322, %v2479, %v2473
      %v2484 = vmul.f32 %v2482, %v1333
      %v2485 = vmul.f32 %v2481, %v1337
      %v2486 = vmul.f32 %v2480, %v1341
      %v2487 = vmul.f32 %v2483, %v1345
      %s2488 = scalar_lea.vmem %s4, 28
      %v2489 = vld [vmem:[%s2488] sm:$0xf]
      %v2490 = vpack.c.bf16 %v2484, %v2484
      %v2491 = vpack.c.bf16 %v2485, %v2485
      %v2492 = vpack.c.bf16 %v2486, %v2486
      %v2493 = vpack.c.bf16 %v2487, %v2487
      %v2495 = vsel %vm409, %v2489, 0
      %v2498 = vsel %vm413, %v2490, 0
      %v2501 = vsel %vm413, %v2491, 0
      %v2504 = vsel %vm413, %v2492, 0
      %v2507 = vsel %vm413, %v2493, 0
      %2509 = vmatprep.subr.bf16.mxu0 %v2501
      %2510 = vmatpush1.bf16.msra.mxu0 %v2498
      %2511 = vmatprep.subr.bf16.mxu0 0
      %2512 = vmatpush1.bf16.msra.mxu0 0
      %2513 = vmatprep.subr.bf16.mxu0 0
      %2514 = vmatpush1.bf16.msra.mxu0 0
      %2515 = vmatprep.subr.bf16.mxu0 0
      %2516 = vmatpush1.bf16.msra.mxu0 0
      %2517 = vmatprep.subr.bf16.mxu0 0
      %2518 = vmatpush1.bf16.msra.mxu0 0
      %2519 = vmatprep.subr.bf16.mxu0 0
      %2520 = vmatpush1.bf16.msra.mxu0 0
      %2521 = vmatprep.subr.bf16.mxu0 0
      %2522 = vmatpush1.bf16.msra.mxu0 0
      %2523 = vmatprep.subr.bf16.mxu0 0
      %2524 = vmatpush1.bf16.msra.mxu0 0
      %2525 = vmatprep.subr.bf16.mxu0 0
      %2526 = vmatpush1.bf16.msra.mxu0 0
      %2527 = vmatprep.subr.bf16.mxu0 0
      %2528 = vmatpush1.bf16.msra.mxu0 0
      %2529 = vmatprep.subr.bf16.mxu0 0
      %2530 = vmatpush1.bf16.msra.mxu0 0
      %2531 = vmatprep.subr.bf16.mxu0 0
      %2532 = vmatpush1.bf16.msra.mxu0 0
      %2533 = vmatprep.subr.bf16.mxu0 0
      %2534 = vmatpush1.bf16.msra.mxu0 0
      %2535 = vmatprep.subr.bf16.mxu0 0
      %2536 = vmatpush1.bf16.msra.mxu0 0
      %2537 = vmatprep.subr.bf16.mxu0 0
      %2538 = vmatpush1.bf16.msra.mxu0 0
      %2539 = vmatprep.subr.bf16.mxu0 0
      %2540 = vmatpush1.bf16.msra.mxu0 0
      %2541 = vmatprep.mubr.bf16.mxu0 0
      %2542 = vmatmul.mubr.bf16.gmra.mrb[0].mxu0 %v2495
      %v2543 = vpop.f32.mrb[0].mxu0
      %v2544 = vadd.f32 0.0, %v2543
      %v2545 = vpop.f32.mrb[0].mxu0
      %v2546 = vadd.f32 0.0, %v2545
      %v2547 = vpop.f32.mrb[0].mxu0
      %v2548 = vpop.f32.mrb[0].mxu0
      %2549 = vdwg.mxu0
      %2550 = vmatprep.subr.bf16.mxu0 %v2507
      %2551 = vmatpush1.bf16.msra.mxu0 %v2504
      %2552 = vmatprep.subr.bf16.mxu0 0
      %2553 = vmatpush1.bf16.msra.mxu0 0
      %2554 = vmatprep.subr.bf16.mxu0 0
      %2555 = vmatpush1.bf16.msra.mxu0 0
      %2556 = vmatprep.subr.bf16.mxu0 0
      %2557 = vmatpush1.bf16.msra.mxu0 0
      %2558 = vmatprep.subr.bf16.mxu0 0
      %2559 = vmatpush1.bf16.msra.mxu0 0
      %2560 = vmatprep.subr.bf16.mxu0 0
      %2561 = vmatpush1.bf16.msra.mxu0 0
      %2562 = vmatprep.subr.bf16.mxu0 0
      %2563 = vmatpush1.bf16.msra.mxu0 0
      %2564 = vmatprep.subr.bf16.mxu0 0
      %2565 = vmatpush1.bf16.msra.mxu0 0
      %2566 = vmatprep.subr.bf16.mxu0 0
      %2567 = vmatpush1.bf16.msra.mxu0 0
      %2568 = vmatprep.subr.bf16.mxu0 0
      %2569 = vmatpush1.bf16.msra.mxu0 0
      %2570 = vmatprep.subr.bf16.mxu0 0
      %2571 = vmatpush1.bf16.msra.mxu0 0
      %2572 = vmatprep.subr.bf16.mxu0 0
      %2573 = vmatpush1.bf16.msra.mxu0 0
      %2574 = vmatprep.subr.bf16.mxu0 0
      %2575 = vmatpush1.bf16.msra.mxu0 0
      %2576 = vmatprep.subr.bf16.mxu0 0
      %2577 = vmatpush1.bf16.msra.mxu0 0
      %2578 = vmatprep.subr.bf16.mxu0 0
      %2579 = vmatpush1.bf16.msra.mxu0 0
      %2580 = vmatprep.subr.bf16.mxu0 0
      %2581 = vmatpush1.bf16.msra.mxu0 0
      %2582 = vmatprep.mubr.bf16.mxu0 0
      %2583 = vmatmul.mubr.bf16.gmra.mrb[0].mxu0 %v2495
      %v2584 = vpop.f32.mrb[0].mxu0
      %v2585 = vadd.f32 0.0, %v2584
      %v2586 = vpop.f32.mrb[0].mxu0
      %v2587 = vadd.f32 0.0, %v2586
      %v2588 = vpop.f32.mrb[0].mxu0
      %v2589 = vpop.f32.mrb[0].mxu0
      %2590 = vdwg.mxu0
      %v2591 = vadd.f32 %v2468, %v2544
      %v2592 = vadd.f32 %v2469, %v2546
      %v2593 = vadd.f32 %v2470, %v2585
      %v2594 = vadd.f32 %v2471, %v2587
      %2595 = vrot.lane.b32.xlu0 %v309, 111
      %v2596 = vpop.permute.xlu0 %2595
      %2597 = vrot.lane.b32.xlu0 %v1610, 111
      %v2598 = vpop.permute.xlu0 %2597
      %2599 = vrot.lane.b32.xlu0 %v310, 111
      %v2600 = vpop.permute.xlu0 %2599
      %2601 = vrot.lane.b32.xlu0 %v1611, 111
      %v2602 = vpop.permute.xlu0 %2601
      %v2603 = vsel %vm1469, %v2600, %v2602
      %v2604 = vsel %vm1469, %v2598, %v2600
      %v2605 = vsel %vm1469, %v2596, %v2598
      %v2606 = vsel %vm1469, %v2602, %v2596
      %v2607 = vmul.f32 %v2605, %v1480
      %v2608 = vmul.f32 %v2604, %v1484
      %v2609 = vmul.f32 %v2603, %v1488
      %v2610 = vmul.f32 %v2606, %v1492
      %s2611 = scalar_lea.vmem %s4, 32
      %v2612 = vld [vmem:[%s2611] sm:$0xf]
      %v2613 = vpack.c.bf16 %v2607, %v2607
      %v2614 = vpack.c.bf16 %v2608, %v2608
      %v2615 = vpack.c.bf16 %v2609, %v2609
      %v2616 = vpack.c.bf16 %v2610, %v2610
      %v2618 = vsel %vm409, %v2612, 0
      %v2621 = vsel %vm413, %v2613, 0
      %v2624 = vsel %vm413, %v2614, 0
      %v2627 = vsel %vm413, %v2615, 0
      %v2630 = vsel %vm413, %v2616, 0
      %2632 = vmatprep.subr.bf16.mxu0 %v2624
      %2633 = vmatpush1.bf16.msra.mxu0 %v2621
      %2634 = vmatprep.subr.bf16.mxu0 0
      %2635 = vmatpush1.bf16.msra.mxu0 0
      %2636 = vmatprep.subr.bf16.mxu0 0
      %2637 = vmatpush1.bf16.msra.mxu0 0
      %2638 = vmatprep.subr.bf16.mxu0 0
      %2639 = vmatpush1.bf16.msra.mxu0 0
      %2640 = vmatprep.subr.bf16.mxu0 0
      %2641 = vmatpush1.bf16.msra.mxu0 0
      %2642 = vmatprep.subr.bf16.mxu0 0
      %2643 = vmatpush1.bf16.msra.mxu0 0
      %2644 = vmatprep.subr.bf16.mxu0 0
      %2645 = vmatpush1.bf16.msra.mxu0 0
      %2646 = vmatprep.subr.bf16.mxu0 0
      %2647 = vmatpush1.bf16.msra.mxu0 0
      %2648 = vmatprep.subr.bf16.mxu0 0
      %2649 = vmatpush1.bf16.msra.mxu0 0
      %2650 = vmatprep.subr.bf16.mxu0 0
      %2651 = vmatpush1.bf16.msra.mxu0 0
      %2652 = vmatprep.subr.bf16.mxu0 0
      %2653 = vmatpush1.bf16.msra.mxu0 0
      %2654 = vmatprep.subr.bf16.mxu0 0
      %2655 = vmatpush1.bf16.msra.mxu0 0
      %2656 = vmatprep.subr.bf16.mxu0 0
      %2657 = vmatpush1.bf16.msra.mxu0 0
      %2658 = vmatprep.subr.bf16.mxu0 0
      %2659 = vmatpush1.bf16.msra.mxu0 0
      %2660 = vmatprep.subr.bf16.mxu0 0
      %2661 = vmatpush1.bf16.msra.mxu0 0
      %2662 = vmatprep.subr.bf16.mxu0 0
      %2663 = vmatpush1.bf16.msra.mxu0 0
      %2664 = vmatprep.mubr.bf16.mxu0 0
      %2665 = vmatmul.mubr.bf16.gmra.mrb[0].mxu0 %v2618
      %v2666 = vpop.f32.mrb[0].mxu0
      %v2667 = vadd.f32 0.0, %v2666
      %v2668 = vpop.f32.mrb[0].mxu0
      %v2669 = vadd.f32 0.0, %v2668
      %v2670 = vpop.f32.mrb[0].mxu0
      %v2671 = vpop.f32.mrb[0].mxu0
      %2672 = vdwg.mxu0
      %2673 = vmatprep.subr.bf16.mxu0 %v2630
      %2674 = vmatpush1.bf16.msra.mxu0 %v2627
      %2675 = vmatprep.subr.bf16.mxu0 0
      %2676 = vmatpush1.bf16.msra.mxu0 0
      %2677 = vmatprep.subr.bf16.mxu0 0
      %2678 = vmatpush1.bf16.msra.mxu0 0
      %2679 = vmatprep.subr.bf16.mxu0 0
      %2680 = vmatpush1.bf16.msra.mxu0 0
      %2681 = vmatprep.subr.bf16.mxu0 0
      %2682 = vmatpush1.bf16.msra.mxu0 0
      %2683 = vmatprep.subr.bf16.mxu0 0
      %2684 = vmatpush1.bf16.msra.mxu0 0
      %2685 = vmatprep.subr.bf16.mxu0 0
      %2686 = vmatpush1.bf16.msra.mxu0 0
      %2687 = vmatprep.subr.bf16.mxu0 0
      %2688 = vmatpush1.bf16.msra.mxu0 0
      %2689 = vmatprep.subr.bf16.mxu0 0
      %2690 = vmatpush1.bf16.msra.mxu0 0
      %2691 = vmatprep.subr.bf16.mxu0 0
      %2692 = vmatpush1.bf16.msra.mxu0 0
      %2693 = vmatprep.subr.bf16.mxu0 0
      %2694 = vmatpush1.bf16.msra.mxu0 0
      %2695 = vmatprep.subr.bf16.mxu0 0
      %2696 = vmatpush1.bf16.msra.mxu0 0
      %2697 = vmatprep.subr.bf16.mxu0 0
      %2698 = vmatpush1.bf16.msra.mxu0 0
      %2699 = vmatprep.subr.bf16.mxu0 0
      %2700 = vmatpush1.bf16.msra.mxu0 0
      %2701 = vmatprep.subr.bf16.mxu0 0
      %2702 = vmatpush1.bf16.msra.mxu0 0
      %2703 = vmatprep.subr.bf16.mxu0 0
      %2704 = vmatpush1.bf16.msra.mxu0 0
      %2705 = vmatprep.mubr.bf16.mxu0 0
      %2706 = vmatmul.mubr.bf16.gmra.mrb[0].mxu0 %v2618
      %v2707 = vpop.f32.mrb[0].mxu0
      %v2708 = vadd.f32 0.0, %v2707
      %v2709 = vpop.f32.mrb[0].mxu0
      %v2710 = vadd.f32 0.0, %v2709
      %v2711 = vpop.f32.mrb[0].mxu0
      %v2712 = vpop.f32.mrb[0].mxu0
      %2713 = vdwg.mxu0
      %v2714 = vadd.f32 %v2591, %v2667
      %v2715 = vadd.f32 %v2592, %v2669
      %v2716 = vadd.f32 %v2593, %v2708
      %v2717 = vadd.f32 %v2594, %v2710
      %v2718 = vmax.f32 %v2714, 0.0
      %v2719 = vmax.f32 %v2715, 0.0
      %v2720 = vmax.f32 %v2716, 0.0
      %v2721 = vmax.f32 %v2717, 0.0
      %2722 = vrot.lane.b32.xlu0 %v2718, 17
      %v2723 = vpop.permute.xlu0 %2722
      %2724 = vrot.lane.b32.xlu0 %v2719, 17
      %v2725 = vpop.permute.xlu0 %2724
      %2726 = vrot.lane.b32.xlu0 %v2720, 17
      %v2727 = vpop.permute.xlu0 %2726
      %2728 = vrot.lane.b32.xlu0 %v2721, 17
      %v2729 = vpop.permute.xlu0 %2728
      %v2730 = vsel %vm327, %v2727, %v2729
      %v2731 = vsel %vm327, %v2725, %v2727
      %v2732 = vsel %vm327, %v2723, %v2725
      %v2733 = vsel %vm327, %v2729, %v2723
      %v2734 = vmul.f32 %v2733, %v337
      %v2735 = vmul.f32 %v2732, %v341
      %v2736 = vmul.f32 %v2731, %v345
      %v2737 = vmul.f32 %v2730, %v349
      %v2738 = vld [vmem:[%s5] sm:$0xf]
      %v2739 = vpack.c.bf16 %v2734, %v2734
      %v2740 = vpack.c.bf16 %v2735, %v2735
      %v2741 = vpack.c.bf16 %v2736, %v2736
      %v2742 = vpack.c.bf16 %v2737, %v2737
      %2743 = vrot.lane.b32.xlu0 %v2718, 16
      %v2744 = vpop.permute.xlu0 %2743
      %2745 = vrot.lane.b32.xlu0 %v2719, 16
      %v2746 = vpop.permute.xlu0 %2745
      %2747 = vrot.lane.b32.xlu0 %v2720, 16
      %v2748 = vpop.permute.xlu0 %2747
      %2749 = vrot.lane.b32.xlu0 %v2721, 16
      %v2750 = vpop.permute.xlu0 %2749
      %v2751 = vsel %vm371, %v2748, %v2750
      %v2752 = vsel %vm371, %v2746, %v2748
      %v2753 = vsel %vm371, %v2744, %v2746
      %v2754 = vsel %vm371, %v2750, %v2744
      %v2755 = vmul.f32 %v2754, %v382
      %v2756 = vmul.f32 %v2753, %v386
      %v2757 = vmul.f32 %v2752, %v390
      %v2758 = vmul.f32 %v2751, %v394
      %s2759 = scalar_lea.vmem %s5, 4
      %v2760 = vld [vmem:[%s2759] sm:$0xf]
      %v2761 = vpack.c.bf16 %v2755, %v2755
      %v2762 = vpack.c.bf16 %v2756, %v2756
      %v2763 = vpack.c.bf16 %v2757, %v2757
      %v2764 = vpack.c.bf16 %v2758, %v2758
      %vm2765 = vcmask 64512
      %v2767 = vsel %vm2765, %v2760, 0
      %vm2769 = vcmask 1043456
      %v2771 = vsel %vm2769, %v2761, 0
      %v2774 = vsel %vm2769, %v2762, 0
      %v2777 = vsel %vm2769, %v2763, 0
      %v2780 = vsel %vm2769, %v2764, 0
      %2782 = vmatprep.subr.bf16.mxu0 %v2774
      %2783 = vmatpush1.bf16.msra.mxu0 %v2771
      %2784 = vmatprep.subr.bf16.mxu0 0
      %2785 = vmatpush1.bf16.msra.mxu0 0
      %2786 = vmatprep.subr.bf16.mxu0 0
      %2787 = vmatpush1.bf16.msra.mxu0 0
      %2788 = vmatprep.subr.bf16.mxu0 0
      %2789 = vmatpush1.bf16.msra.mxu0 0
      %2790 = vmatprep.subr.bf16.mxu0 0
      %2791 = vmatpush1.bf16.msra.mxu0 0
      %2792 = vmatprep.subr.bf16.mxu0 0
      %2793 = vmatpush1.bf16.msra.mxu0 0
      %2794 = vmatprep.subr.bf16.mxu0 0
      %2795 = vmatpush1.bf16.msra.mxu0 0
      %2796 = vmatprep.subr.bf16.mxu0 0
      %2797 = vmatpush1.bf16.msra.mxu0 0
      %2798 = vmatprep.subr.bf16.mxu0 0
      %2799 = vmatpush1.bf16.msra.mxu0 0
      %2800 = vmatprep.subr.bf16.mxu0 0
      %2801 = vmatpush1.bf16.msra.mxu0 0
      %2802 = vmatprep.subr.bf16.mxu0 0
      %2803 = vmatpush1.bf16.msra.mxu0 0
      %2804 = vmatprep.subr.bf16.mxu0 0
      %2805 = vmatpush1.bf16.msra.mxu0 0
      %2806 = vmatprep.subr.bf16.mxu0 0
      %2807 = vmatpush1.bf16.msra.mxu0 0
      %2808 = vmatprep.subr.bf16.mxu0 0
      %2809 = vmatpush1.bf16.msra.mxu0 0
      %2810 = vmatprep.subr.bf16.mxu0 0
      %2811 = vmatpush1.bf16.msra.mxu0 0
      %2812 = vmatprep.subr.bf16.mxu0 0
      %2813 = vmatpush1.bf16.msra.mxu0 0
      %2814 = vmatprep.mubr.bf16.mxu0 0
      %2815 = vmatmul.mubr.bf16.gmra.mrb[0].mxu0 %v2767
      %v2816 = vpop.f32.mrb[0].mxu0
      %v2817 = vadd.f32 0.0, %v2816
      %v2818 = vpop.f32.mrb[0].mxu0
      %v2819 = vadd.f32 0.0, %v2818
      %v2820 = vpop.f32.mrb[0].mxu0
      %v2821 = vpop.f32.mrb[0].mxu0
      %2822 = vdwg.mxu0
      %2823 = vmatprep.subr.bf16.mxu0 %v2780
      %2824 = vmatpush1.bf16.msra.mxu0 %v2777
      %2825 = vmatprep.subr.bf16.mxu0 0
      %2826 = vmatpush1.bf16.msra.mxu0 0
      %2827 = vmatprep.subr.bf16.mxu0 0
      %2828 = vmatpush1.bf16.msra.mxu0 0
      %2829 = vmatprep.subr.bf16.mxu0 0
      %2830 = vmatpush1.bf16.msra.mxu0 0
      %2831 = vmatprep.subr.bf16.mxu0 0
      %2832 = vmatpush1.bf16.msra.mxu0 0
      %2833 = vmatprep.subr.bf16.mxu0 0
      %2834 = vmatpush1.bf16.msra.mxu0 0
      %2835 = vmatprep.subr.bf16.mxu0 0
      %2836 = vmatpush1.bf16.msra.mxu0 0
      %2837 = vmatprep.subr.bf16.mxu0 0
      %2838 = vmatpush1.bf16.msra.mxu0 0
      %2839 = vmatprep.subr.bf16.mxu0 0
      %2840 = vmatpush1.bf16.msra.mxu0 0
      %2841 = vmatprep.subr.bf16.mxu0 0
      %2842 = vmatpush1.bf16.msra.mxu0 0
      %2843 = vmatprep.subr.bf16.mxu0 0
      %2844 = vmatpush1.bf16.msra.mxu0 0
      %2845 = vmatprep.subr.bf16.mxu0 0
      %2846 = vmatpush1.bf16.msra.mxu0 0
      %2847 = vmatprep.subr.bf16.mxu0 0
      %2848 = vmatpush1.bf16.msra.mxu0 0
      %2849 = vmatprep.subr.bf16.mxu0 0
      %2850 = vmatpush1.bf16.msra.mxu0 0
      %2851 = vmatprep.subr.bf16.mxu0 0
      %2852 = vmatpush1.bf16.msra.mxu0 0
      %2853 = vmatprep.subr.bf16.mxu0 0
      %2854 = vmatpush1.bf16.msra.mxu0 0
      %2855 = vmatprep.mubr.bf16.mxu0 0
      %2856 = vmatmul.mubr.bf16.gmra.mrb[0].mxu0 %v2767
      %v2857 = vpop.f32.mrb[0].mxu0
      %v2858 = vadd.f32 0.0, %v2857
      %v2859 = vpop.f32.mrb[0].mxu0
      %v2860 = vadd.f32 0.0, %v2859
      %v2861 = vpop.f32.mrb[0].mxu0
      %v2862 = vpop.f32.mrb[0].mxu0
      %2863 = vdwg.mxu0
      %v2865 = vsel %vm2765, %v2738, 0
      %v2868 = vsel %vm2769, %v2739, 0
      %v2871 = vsel %vm2769, %v2740, 0
      %v2874 = vsel %vm2769, %v2741, 0
      %v2877 = vsel %vm2769, %v2742, 0
      %2879 = vmatprep.subr.bf16.mxu0 %v2871
      %2880 = vmatpush1.bf16.msra.mxu0 %v2868
      %2881 = vmatprep.subr.bf16.mxu0 0
      %2882 = vmatpush1.bf16.msra.mxu0 0
      %2883 = vmatprep.subr.bf16.mxu0 0
      %2884 = vmatpush1.bf16.msra.mxu0 0
      %2885 = vmatprep.subr.bf16.mxu0 0
      %2886 = vmatpush1.bf16.msra.mxu0 0
      %2887 = vmatprep.subr.bf16.mxu0 0
      %2888 = vmatpush1.bf16.msra.mxu0 0
      %2889 = vmatprep.subr.bf16.mxu0 0
      %2890 = vmatpush1.bf16.msra.mxu0 0
      %2891 = vmatprep.subr.bf16.mxu0 0
      %2892 = vmatpush1.bf16.msra.mxu0 0
      %2893 = vmatprep.subr.bf16.mxu0 0
      %2894 = vmatpush1.bf16.msra.mxu0 0
      %2895 = vmatprep.subr.bf16.mxu0 0
      %2896 = vmatpush1.bf16.msra.mxu0 0
      %2897 = vmatprep.subr.bf16.mxu0 0
      %2898 = vmatpush1.bf16.msra.mxu0 0
      %2899 = vmatprep.subr.bf16.mxu0 0
      %2900 = vmatpush1.bf16.msra.mxu0 0
      %2901 = vmatprep.subr.bf16.mxu0 0
      %2902 = vmatpush1.bf16.msra.mxu0 0
      %2903 = vmatprep.subr.bf16.mxu0 0
      %2904 = vmatpush1.bf16.msra.mxu0 0
      %2905 = vmatprep.subr.bf16.mxu0 0
      %2906 = vmatpush1.bf16.msra.mxu0 0
      %2907 = vmatprep.subr.bf16.mxu0 0
      %2908 = vmatpush1.bf16.msra.mxu0 0
      %2909 = vmatprep.subr.bf16.mxu0 0
      %2910 = vmatpush1.bf16.msra.mxu0 0
      %2911 = vmatprep.mubr.bf16.mxu0 0
      %2912 = vmatmul.mubr.bf16.gmra.mrb[0].mxu0 %v2865
      %v2913 = vpop.f32.mrb[0].mxu0
      %v2914 = vadd.f32 %v2817, %v2913
      %v2915 = vpop.f32.mrb[0].mxu0
      %v2916 = vadd.f32 %v2819, %v2915
      %v2917 = vpop.f32.mrb[0].mxu0
      %v2918 = vpop.f32.mrb[0].mxu0
      %2919 = vdwg.mxu0
      %2920 = vmatprep.subr.bf16.mxu0 %v2877
      %2921 = vmatpush1.bf16.msra.mxu0 %v2874
      %2922 = vmatprep.subr.bf16.mxu0 0
      %2923 = vmatpush1.bf16.msra.mxu0 0
      %2924 = vmatprep.subr.bf16.mxu0 0
      %2925 = vmatpush1.bf16.msra.mxu0 0
      %2926 = vmatprep.subr.bf16.mxu0 0
      %2927 = vmatpush1.bf16.msra.mxu0 0
      %2928 = vmatprep.subr.bf16.mxu0 0
      %2929 = vmatpush1.bf16.msra.mxu0 0
      %2930 = vmatprep.subr.bf16.mxu0 0
      %2931 = vmatpush1.bf16.msra.mxu0 0
      %2932 = vmatprep.subr.bf16.mxu0 0
      %2933 = vmatpush1.bf16.msra.mxu0 0
      %2934 = vmatprep.subr.bf16.mxu0 0
      %2935 = vmatpush1.bf16.msra.mxu0 0
      %2936 = vmatprep.subr.bf16.mxu0 0
      %2937 = vmatpush1.bf16.msra.mxu0 0
      %2938 = vmatprep.subr.bf16.mxu0 0
      %2939 = vmatpush1.bf16.msra.mxu0 0
      %2940 = vmatprep.subr.bf16.mxu0 0
      %2941 = vmatpush1.bf16.msra.mxu0 0
      %2942 = vmatprep.subr.bf16.mxu0 0
      %2943 = vmatpush1.bf16.msra.mxu0 0
      %2944 = vmatprep.subr.bf16.mxu0 0
      %2945 = vmatpush1.bf16.msra.mxu0 0
      %2946 = vmatprep.subr.bf16.mxu0 0
      %2947 = vmatpush1.bf16.msra.mxu0 0
      %2948 = vmatprep.subr.bf16.mxu0 0
      %2949 = vmatpush1.bf16.msra.mxu0 0
      %2950 = vmatprep.subr.bf16.mxu0 0
      %2951 = vmatpush1.bf16.msra.mxu0 0
      %2952 = vmatprep.mubr.bf16.mxu0 0
      %2953 = vmatmul.mubr.bf16.gmra.mrb[0].mxu0 %v2865
      %v2954 = vpop.f32.mrb[0].mxu0
      %v2955 = vadd.f32 %v2858, %v2954
      %v2956 = vpop.f32.mrb[0].mxu0
      %v2957 = vadd.f32 %v2860, %v2956
      %v2958 = vpop.f32.mrb[0].mxu0
      %v2959 = vpop.f32.mrb[0].mxu0
      %2960 = vdwg.mxu0
      %2961 = vrot.lane.b32.xlu0 %v2718, 15
      %v2962 = vpop.permute.xlu0 %2961
      %2963 = vrot.lane.b32.xlu0 %v2719, 15
      %v2964 = vpop.permute.xlu0 %2963
      %2965 = vrot.lane.b32.xlu0 %v2720, 15
      %v2966 = vpop.permute.xlu0 %2965
      %2967 = vrot.lane.b32.xlu0 %v2721, 15
      %v2968 = vpop.permute.xlu0 %2967
      %v2969 = vsel %vm613, %v2966, %v2968
      %v2970 = vsel %vm613, %v2964, %v2966
      %v2971 = vsel %vm613, %v2962, %v2964
      %v2972 = vsel %vm613, %v2968, %v2962
      %v2973 = vmul.f32 %v2972, %v624
      %v2974 = vmul.f32 %v2971, %v628
      %v2975 = vmul.f32 %v2970, %v632
      %v2976 = vmul.f32 %v2969, %v636
      %s2977 = scalar_lea.vmem %s5, 8
      %v2978 = vld [vmem:[%s2977] sm:$0xf]
      %v2979 = vpack.c.bf16 %v2973, %v2973
      %v2980 = vpack.c.bf16 %v2974, %v2974
      %v2981 = vpack.c.bf16 %v2975, %v2975
      %v2982 = vpack.c.bf16 %v2976, %v2976
      %v2984 = vsel %vm2765, %v2978, 0
      %v2987 = vsel %vm2769, %v2979, 0
      %v2990 = vsel %vm2769, %v2980, 0
      %v2993 = vsel %vm2769, %v2981, 0
      %v2996 = vsel %vm2769, %v2982, 0
      %2998 = vmatprep.subr.bf16.mxu0 %v2990
      %2999 = vmatpush1.bf16.msra.mxu0 %v2987
      %3000 = vmatprep.subr.bf16.mxu0 0
      %3001 = vmatpush1.bf16.msra.mxu0 0
      %3002 = vmatprep.subr.bf16.mxu0 0
      %3003 = vmatpush1.bf16.msra.mxu0 0
      %3004 = vmatprep.subr.bf16.mxu0 0
      %3005 = vmatpush1.bf16.msra.mxu0 0
      %3006 = vmatprep.subr.bf16.mxu0 0
      %3007 = vmatpush1.bf16.msra.mxu0 0
      %3008 = vmatprep.subr.bf16.mxu0 0
      %3009 = vmatpush1.bf16.msra.mxu0 0
      %3010 = vmatprep.subr.bf16.mxu0 0
      %3011 = vmatpush1.bf16.msra.mxu0 0
      %3012 = vmatprep.subr.bf16.mxu0 0
      %3013 = vmatpush1.bf16.msra.mxu0 0
      %3014 = vmatprep.subr.bf16.mxu0 0
      %3015 = vmatpush1.bf16.msra.mxu0 0
      %3016 = vmatprep.subr.bf16.mxu0 0
      %3017 = vmatpush1.bf16.msra.mxu0 0
      %3018 = vmatprep.subr.bf16.mxu0 0
      %3019 = vmatpush1.bf16.msra.mxu0 0
      %3020 = vmatprep.subr.bf16.mxu0 0
      %3021 = vmatpush1.bf16.msra.mxu0 0
      %3022 = vmatprep.subr.bf16.mxu0 0
      %3023 = vmatpush1.bf16.msra.mxu0 0
      %3024 = vmatprep.subr.bf16.mxu0 0
      %3025 = vmatpush1.bf16.msra.mxu0 0
      %3026 = vmatprep.subr.bf16.mxu0 0
      %3027 = vmatpush1.bf16.msra.mxu0 0
      %3028 = vmatprep.subr.bf16.mxu0 0
      %3029 = vmatpush1.bf16.msra.mxu0 0
      %3030 = vmatprep.mubr.bf16.mxu0 0
      %3031 = vmatmul.mubr.bf16.gmra.mrb[0].mxu0 %v2984
      %v3032 = vpop.f32.mrb[0].mxu0
      %v3033 = vadd.f32 0.0, %v3032
      %v3034 = vpop.f32.mrb[0].mxu0
      %v3035 = vadd.f32 0.0, %v3034
      %v3036 = vpop.f32.mrb[0].mxu0
      %v3037 = vpop.f32.mrb[0].mxu0
      %3038 = vdwg.mxu0
      %3039 = vmatprep.subr.bf16.mxu0 %v2996
      %3040 = vmatpush1.bf16.msra.mxu0 %v2993
      %3041 = vmatprep.subr.bf16.mxu0 0
      %3042 = vmatpush1.bf16.msra.mxu0 0
      %3043 = vmatprep.subr.bf16.mxu0 0
      %3044 = vmatpush1.bf16.msra.mxu0 0
      %3045 = vmatprep.subr.bf16.mxu0 0
      %3046 = vmatpush1.bf16.msra.mxu0 0
      %3047 = vmatprep.subr.bf16.mxu0 0
      %3048 = vmatpush1.bf16.msra.mxu0 0
      %3049 = vmatprep.subr.bf16.mxu0 0
      %3050 = vmatpush1.bf16.msra.mxu0 0
      %3051 = vmatprep.subr.bf16.mxu0 0
      %3052 = vmatpush1.bf16.msra.mxu0 0
      %3053 = vmatprep.subr.bf16.mxu0 0
      %3054 = vmatpush1.bf16.msra.mxu0 0
      %3055 = vmatprep.subr.bf16.mxu0 0
      %3056 = vmatpush1.bf16.msra.mxu0 0
      %3057 = vmatprep.subr.bf16.mxu0 0
      %3058 = vmatpush1.bf16.msra.mxu0 0
      %3059 = vmatprep.subr.bf16.mxu0 0
      %3060 = vmatpush1.bf16.msra.mxu0 0
      %3061 = vmatprep.subr.bf16.mxu0 0
      %3062 = vmatpush1.bf16.msra.mxu0 0
      %3063 = vmatprep.subr.bf16.mxu0 0
      %3064 = vmatpush1.bf16.msra.mxu0 0
      %3065 = vmatprep.subr.bf16.mxu0 0
      %3066 = vmatpush1.bf16.msra.mxu0 0
      %3067 = vmatprep.subr.bf16.mxu0 0
      %3068 = vmatpush1.bf16.msra.mxu0 0
      %3069 = vmatprep.subr.bf16.mxu0 0
      %3070 = vmatpush1.bf16.msra.mxu0 0
      %3071 = vmatprep.mubr.bf16.mxu0 0
      %3072 = vmatmul.mubr.bf16.gmra.mrb[0].mxu0 %v2984
      %v3073 = vpop.f32.mrb[0].mxu0
      %v3074 = vadd.f32 0.0, %v3073
      %v3075 = vpop.f32.mrb[0].mxu0
      %v3076 = vadd.f32 0.0, %v3075
      %v3077 = vpop.f32.mrb[0].mxu0
      %v3078 = vpop.f32.mrb[0].mxu0
      %3079 = vdwg.mxu0
      %v3080 = vadd.f32 %v2914, %v3033
      %v3081 = vadd.f32 %v2916, %v3035
      %v3082 = vadd.f32 %v2955, %v3074
      %v3083 = vadd.f32 %v2957, %v3076
      %3084 = vrot.lane.b32.xlu0 %v2718, 1
      %v3085 = vpop.permute.xlu0 %3084
      %3086 = vrot.lane.b32.xlu0 %v2719, 1
      %v3087 = vpop.permute.xlu0 %3086
      %3088 = vrot.lane.b32.xlu0 %v2720, 1
      %v3089 = vpop.permute.xlu0 %3088
      %3090 = vrot.lane.b32.xlu0 %v2721, 1
      %v3091 = vpop.permute.xlu0 %3090
      %v3092 = vsel %vm760, %v3089, %v3091
      %v3093 = vsel %vm760, %v3087, %v3089
      %v3094 = vsel %vm760, %v3085, %v3087
      %v3095 = vsel %vm760, %v3091, %v3085
      %v3096 = vmul.f32 %v3095, %v771
      %v3097 = vmul.f32 %v3094, %v775
      %v3098 = vmul.f32 %v3093, %v779
      %v3099 = vmul.f32 %v3092, %v783
      %s3100 = scalar_lea.vmem %s5, 12
      %v3101 = vld [vmem:[%s3100] sm:$0xf]
      %v3102 = vpack.c.bf16 %v3096, %v3096
      %v3103 = vpack.c.bf16 %v3097, %v3097
      %v3104 = vpack.c.bf16 %v3098, %v3098
      %v3105 = vpack.c.bf16 %v3099, %v3099
      %v3107 = vsel %vm2765, %v3101, 0
      %v3110 = vsel %vm2769, %v3102, 0
      %v3113 = vsel %vm2769, %v3103, 0
      %v3116 = vsel %vm2769, %v3104, 0
      %v3119 = vsel %vm2769, %v3105, 0
      %3121 = vmatprep.subr.bf16.mxu0 %v3113
      %3122 = vmatpush1.bf16.msra.mxu0 %v3110
      %3123 = vmatprep.subr.bf16.mxu0 0
      %3124 = vmatpush1.bf16.msra.mxu0 0
      %3125 = vmatprep.subr.bf16.mxu0 0
      %3126 = vmatpush1.bf16.msra.mxu0 0
      %3127 = vmatprep.subr.bf16.mxu0 0
      %3128 = vmatpush1.bf16.msra.mxu0 0
      %3129 = vmatprep.subr.bf16.mxu0 0
      %3130 = vmatpush1.bf16.msra.mxu0 0
      %3131 = vmatprep.subr.bf16.mxu0 0
      %3132 = vmatpush1.bf16.msra.mxu0 0
      %3133 = vmatprep.subr.bf16.mxu0 0
      %3134 = vmatpush1.bf16.msra.mxu0 0
      %3135 = vmatprep.subr.bf16.mxu0 0
      %3136 = vmatpush1.bf16.msra.mxu0 0
      %3137 = vmatprep.subr.bf16.mxu0 0
      %3138 = vmatpush1.bf16.msra.mxu0 0
      %3139 = vmatprep.subr.bf16.mxu0 0
      %3140 = vmatpush1.bf16.msra.mxu0 0
      %3141 = vmatprep.subr.bf16.mxu0 0
      %3142 = vmatpush1.bf16.msra.mxu0 0
      %3143 = vmatprep.subr.bf16.mxu0 0
      %3144 = vmatpush1.bf16.msra.mxu0 0
      %3145 = vmatprep.subr.bf16.mxu0 0
      %3146 = vmatpush1.bf16.msra.mxu0 0
      %3147 = vmatprep.subr.bf16.mxu0 0
      %3148 = vmatpush1.bf16.msra.mxu0 0
      %3149 = vmatprep.subr.bf16.mxu0 0
      %3150 = vmatpush1.bf16.msra.mxu0 0
      %3151 = vmatprep.subr.bf16.mxu0 0
      %3152 = vmatpush1.bf16.msra.mxu0 0
      %3153 = vmatprep.mubr.bf16.mxu0 0
      %3154 = vmatmul.mubr.bf16.gmra.mrb[0].mxu0 %v3107
      %v3155 = vpop.f32.mrb[0].mxu0
      %v3156 = vadd.f32 0.0, %v3155
      %v3157 = vpop.f32.mrb[0].mxu0
      %v3158 = vadd.f32 0.0, %v3157
      %v3159 = vpop.f32.mrb[0].mxu0
      %v3160 = vpop.f32.mrb[0].mxu0
      %3161 = vdwg.mxu0
      %3162 = vmatprep.subr.bf16.mxu0 %v3119
      %3163 = vmatpush1.bf16.msra.mxu0 %v3116
      %3164 = vmatprep.subr.bf16.mxu0 0
      %3165 = vmatpush1.bf16.msra.mxu0 0
      %3166 = vmatprep.subr.bf16.mxu0 0
      %3167 = vmatpush1.bf16.msra.mxu0 0
      %3168 = vmatprep.subr.bf16.mxu0 0
      %3169 = vmatpush1.bf16.msra.mxu0 0
      %3170 = vmatprep.subr.bf16.mxu0 0
      %3171 = vmatpush1.bf16.msra.mxu0 0
      %3172 = vmatprep.subr.bf16.mxu0 0
      %3173 = vmatpush1.bf16.msra.mxu0 0
      %3174 = vmatprep.subr.bf16.mxu0 0
      %3175 = vmatpush1.bf16.msra.mxu0 0
      %3176 = vmatprep.subr.bf16.mxu0 0
      %3177 = vmatpush1.bf16.msra.mxu0 0
      %3178 = vmatprep.subr.bf16.mxu0 0
      %3179 = vmatpush1.bf16.msra.mxu0 0
      %3180 = vmatprep.subr.bf16.mxu0 0
      %3181 = vmatpush1.bf16.msra.mxu0 0
      %3182 = vmatprep.subr.bf16.mxu0 0
      %3183 = vmatpush1.bf16.msra.mxu0 0
      %3184 = vmatprep.subr.bf16.mxu0 0
      %3185 = vmatpush1.bf16.msra.mxu0 0
      %3186 = vmatprep.subr.bf16.mxu0 0
      %3187 = vmatpush1.bf16.msra.mxu0 0
      %3188 = vmatprep.subr.bf16.mxu0 0
      %3189 = vmatpush1.bf16.msra.mxu0 0
      %3190 = vmatprep.subr.bf16.mxu0 0
      %3191 = vmatpush1.bf16.msra.mxu0 0
      %3192 = vmatprep.subr.bf16.mxu0 0
      %3193 = vmatpush1.bf16.msra.mxu0 0
      %3194 = vmatprep.mubr.bf16.mxu0 0
      %3195 = vmatmul.mubr.bf16.gmra.mrb[0].mxu0 %v3107
      %v3196 = vpop.f32.mrb[0].mxu0
      %v3197 = vadd.f32 0.0, %v3196
      %v3198 = vpop.f32.mrb[0].mxu0
      %v3199 = vadd.f32 0.0, %v3198
      %v3200 = vpop.f32.mrb[0].mxu0
      %v3201 = vpop.f32.mrb[0].mxu0
      %3202 = vdwg.mxu0
      %v3203 = vadd.f32 %v3080, %v3156
      %v3204 = vadd.f32 %v3081, %v3158
      %v3205 = vadd.f32 %v3082, %v3197
      %v3206 = vadd.f32 %v3083, %v3199
      %s3207 = scalar_lea.vmem %s5, 16
      %v3208 = vld [vmem:[%s3207] sm:$0xf]
      %v3209 = vpack.c.bf16 %v2718, %v2718
      %v3210 = vpack.c.bf16 %v2719, %v2719
      %v3211 = vpack.c.bf16 %v2720, %v2720
      %v3212 = vpack.c.bf16 %v2721, %v2721
      %v3214 = vsel %vm2765, %v3208, 0
      %v3217 = vsel %vm2769, %v3209, 0
      %v3220 = vsel %vm2769, %v3210, 0
      %v3223 = vsel %vm2769, %v3211, 0
      %v3226 = vsel %vm2769, %v3212, 0
      %3228 = vmatprep.subr.bf16.mxu0 %v3220
      %3229 = vmatpush1.bf16.msra.mxu0 %v3217
      %3230 = vmatprep.subr.bf16.mxu0 0
      %3231 = vmatpush1.bf16.msra.mxu0 0
      %3232 = vmatprep.subr.bf16.mxu0 0
      %3233 = vmatpush1.bf16.msra.mxu0 0
      %3234 = vmatprep.subr.bf16.mxu0 0
      %3235 = vmatpush1.bf16.msra.mxu0 0
      %3236 = vmatprep.subr.bf16.mxu0 0
      %3237 = vmatpush1.bf16.msra.mxu0 0
      %3238 = vmatprep.subr.bf16.mxu0 0
      %3239 = vmatpush1.bf16.msra.mxu0 0
      %3240 = vmatprep.subr.bf16.mxu0 0
      %3241 = vmatpush1.bf16.msra.mxu0 0
      %3242 = vmatprep.subr.bf16.mxu0 0
      %3243 = vmatpush1.bf16.msra.mxu0 0
      %3244 = vmatprep.subr.bf16.mxu0 0
      %3245 = vmatpush1.bf16.msra.mxu0 0
      %3246 = vmatprep.subr.bf16.mxu0 0
      %3247 = vmatpush1.bf16.msra.mxu0 0
      %3248 = vmatprep.subr.bf16.mxu0 0
      %3249 = vmatpush1.bf16.msra.mxu0 0
      %3250 = vmatprep.subr.bf16.mxu0 0
      %3251 = vmatpush1.bf16.msra.mxu0 0
      %3252 = vmatprep.subr.bf16.mxu0 0
      %3253 = vmatpush1.bf16.msra.mxu0 0
      %3254 = vmatprep.subr.bf16.mxu0 0
      %3255 = vmatpush1.bf16.msra.mxu0 0
      %3256 = vmatprep.subr.bf16.mxu0 0
      %3257 = vmatpush1.bf16.msra.mxu0 0
      %3258 = vmatprep.subr.bf16.mxu0 0
      %3259 = vmatpush1.bf16.msra.mxu0 0
      %3260 = vmatprep.mubr.bf16.mxu0 0
      %3261 = vmatmul.mubr.bf16.gmra.mrb[0].mxu0 %v3214
      %v3262 = vpop.f32.mrb[0].mxu0
      %v3263 = vadd.f32 0.0, %v3262
      %v3264 = vpop.f32.mrb[0].mxu0
      %v3265 = vadd.f32 0.0, %v3264
      %v3266 = vpop.f32.mrb[0].mxu0
      %v3267 = vpop.f32.mrb[0].mxu0
      %3268 = vdwg.mxu0
      %3269 = vmatprep.subr.bf16.mxu0 %v3226
      %3270 = vmatpush1.bf16.msra.mxu0 %v3223
      %3271 = vmatprep.subr.bf16.mxu0 0
      %3272 = vmatpush1.bf16.msra.mxu0 0
      %3273 = vmatprep.subr.bf16.mxu0 0
      %3274 = vmatpush1.bf16.msra.mxu0 0
      %3275 = vmatprep.subr.bf16.mxu0 0
      %3276 = vmatpush1.bf16.msra.mxu0 0
      %3277 = vmatprep.subr.bf16.mxu0 0
      %3278 = vmatpush1.bf16.msra.mxu0 0
      %3279 = vmatprep.subr.bf16.mxu0 0
      %3280 = vmatpush1.bf16.msra.mxu0 0
      %3281 = vmatprep.subr.bf16.mxu0 0
      %3282 = vmatpush1.bf16.msra.mxu0 0
      %3283 = vmatprep.subr.bf16.mxu0 0
      %3284 = vmatpush1.bf16.msra.mxu0 0
      %3285 = vmatprep.subr.bf16.mxu0 0
      %3286 = vmatpush1.bf16.msra.mxu0 0
      %3287 = vmatprep.subr.bf16.mxu0 0
      %3288 = vmatpush1.bf16.msra.mxu0 0
      %3289 = vmatprep.subr.bf16.mxu0 0
      %3290 = vmatpush1.bf16.msra.mxu0 0
      %3291 = vmatprep.subr.bf16.mxu0 0
      %3292 = vmatpush1.bf16.msra.mxu0 0
      %3293 = vmatprep.subr.bf16.mxu0 0
      %3294 = vmatpush1.bf16.msra.mxu0 0
      %3295 = vmatprep.subr.bf16.mxu0 0
      %3296 = vmatpush1.bf16.msra.mxu0 0
      %3297 = vmatprep.subr.bf16.mxu0 0
      %3298 = vmatpush1.bf16.msra.mxu0 0
      %3299 = vmatprep.subr.bf16.mxu0 0
      %3300 = vmatpush1.bf16.msra.mxu0 0
      %3301 = vmatprep.mubr.bf16.mxu0 0
      %3302 = vmatmul.mubr.bf16.gmra.mrb[0].mxu0 %v3214
      %v3303 = vpop.f32.mrb[0].mxu0
      %v3304 = vadd.f32 0.0, %v3303
      %v3305 = vpop.f32.mrb[0].mxu0
      %v3306 = vadd.f32 0.0, %v3305
      %v3307 = vpop.f32.mrb[0].mxu0
      %v3308 = vpop.f32.mrb[0].mxu0
      %3309 = vdwg.mxu0
      %v3310 = vadd.f32 %v3203, %v3263
      %v3311 = vadd.f32 %v3204, %v3265
      %v3312 = vadd.f32 %v3205, %v3304
      %v3313 = vadd.f32 %v3206, %v3306
      %3314 = vrot.lane.b32.xlu0 %v2718, 127
      %v3315 = vpop.permute.xlu0 %3314
      %3316 = vrot.lane.b32.xlu0 %v2719, 127
      %v3317 = vpop.permute.xlu0 %3316
      %3318 = vrot.lane.b32.xlu0 %v2720, 127
      %v3319 = vpop.permute.xlu0 %3318
      %3320 = vrot.lane.b32.xlu0 %v2721, 127
      %v3321 = vpop.permute.xlu0 %3320
      %v3322 = vsel %vm1028, %v3319, %v3321
      %v3323 = vsel %vm1028, %v3317, %v3319
      %v3324 = vsel %vm1028, %v3315, %v3317
      %v3325 = vsel %vm1028, %v3321, %v3315
      %v3326 = vmul.f32 %v3324, %v1039
      %v3327 = vmul.f32 %v3323, %v1043
      %v3328 = vmul.f32 %v3322, %v1047
      %v3329 = vmul.f32 %v3325, %v1051
      %s3330 = scalar_lea.vmem %s5, 20
      %v3331 = vld [vmem:[%s3330] sm:$0xf]
      %v3332 = vpack.c.bf16 %v3326, %v3326
      %v3333 = vpack.c.bf16 %v3327, %v3327
      %v3334 = vpack.c.bf16 %v3328, %v3328
      %v3335 = vpack.c.bf16 %v3329, %v3329
      %v3337 = vsel %vm2765, %v3331, 0
      %v3340 = vsel %vm2769, %v3332, 0
      %v3343 = vsel %vm2769, %v3333, 0
      %v3346 = vsel %vm2769, %v3334, 0
      %v3349 = vsel %vm2769, %v3335, 0
      %3351 = vmatprep.subr.bf16.mxu0 %v3343
      %3352 = vmatpush1.bf16.msra.mxu0 %v3340
      %3353 = vmatprep.subr.bf16.mxu0 0
      %3354 = vmatpush1.bf16.msra.mxu0 0
      %3355 = vmatprep.subr.bf16.mxu0 0
      %3356 = vmatpush1.bf16.msra.mxu0 0
      %3357 = vmatprep.subr.bf16.mxu0 0
      %3358 = vmatpush1.bf16.msra.mxu0 0
      %3359 = vmatprep.subr.bf16.mxu0 0
      %3360 = vmatpush1.bf16.msra.mxu0 0
      %3361 = vmatprep.subr.bf16.mxu0 0
      %3362 = vmatpush1.bf16.msra.mxu0 0
      %3363 = vmatprep.subr.bf16.mxu0 0
      %3364 = vmatpush1.bf16.msra.mxu0 0
      %3365 = vmatprep.subr.bf16.mxu0 0
      %3366 = vmatpush1.bf16.msra.mxu0 0
      %3367 = vmatprep.subr.bf16.mxu0 0
      %3368 = vmatpush1.bf16.msra.mxu0 0
      %3369 = vmatprep.subr.bf16.mxu0 0
      %3370 = vmatpush1.bf16.msra.mxu0 0
      %3371 = vmatprep.subr.bf16.mxu0 0
      %3372 = vmatpush1.bf16.msra.mxu0 0
      %3373 = vmatprep.subr.bf16.mxu0 0
      %3374 = vmatpush1.bf16.msra.mxu0 0
      %3375 = vmatprep.subr.bf16.mxu0 0
      %3376 = vmatpush1.bf16.msra.mxu0 0
      %3377 = vmatprep.subr.bf16.mxu0 0
      %3378 = vmatpush1.bf16.msra.mxu0 0
      %3379 = vmatprep.subr.bf16.mxu0 0
      %3380 = vmatpush1.bf16.msra.mxu0 0
      %3381 = vmatprep.subr.bf16.mxu0 0
      %3382 = vmatpush1.bf16.msra.mxu0 0
      %3383 = vmatprep.mubr.bf16.mxu0 0
      %3384 = vmatmul.mubr.bf16.gmra.mrb[0].mxu0 %v3337
      %v3385 = vpop.f32.mrb[0].mxu0
      %v3386 = vadd.f32 0.0, %v3385
      %v3387 = vpop.f32.mrb[0].mxu0
      %v3388 = vadd.f32 0.0, %v3387
      %v3389 = vpop.f32.mrb[0].mxu0
      %v3390 = vpop.f32.mrb[0].mxu0
      %3391 = vdwg.mxu0
      %3392 = vmatprep.subr.bf16.mxu0 %v3349
      %3393 = vmatpush1.bf16.msra.mxu0 %v3346
      %3394 = vmatprep.subr.bf16.mxu0 0
      %3395 = vmatpush1.bf16.msra.mxu0 0
      %3396 = vmatprep.subr.bf16.mxu0 0
      %3397 = vmatpush1.bf16.msra.mxu0 0
      %3398 = vmatprep.subr.bf16.mxu0 0
      %3399 = vmatpush1.bf16.msra.mxu0 0
      %3400 = vmatprep.subr.bf16.mxu0 0
      %3401 = vmatpush1.bf16.msra.mxu0 0
      %3402 = vmatprep.subr.bf16.mxu0 0
      %3403 = vmatpush1.bf16.msra.mxu0 0
      %3404 = vmatprep.subr.bf16.mxu0 0
      %3405 = vmatpush1.bf16.msra.mxu0 0
      %3406 = vmatprep.subr.bf16.mxu0 0
      %3407 = vmatpush1.bf16.msra.mxu0 0
      %3408 = vmatprep.subr.bf16.mxu0 0
      %3409 = vmatpush1.bf16.msra.mxu0 0
      %3410 = vmatprep.subr.bf16.mxu0 0
      %3411 = vmatpush1.bf16.msra.mxu0 0
      %3412 = vmatprep.subr.bf16.mxu0 0
      %3413 = vmatpush1.bf16.msra.mxu0 0
      %3414 = vmatprep.subr.bf16.mxu0 0
      %3415 = vmatpush1.bf16.msra.mxu0 0
      %3416 = vmatprep.subr.bf16.mxu0 0
      %3417 = vmatpush1.bf16.msra.mxu0 0
      %3418 = vmatprep.subr.bf16.mxu0 0
      %3419 = vmatpush1.bf16.msra.mxu0 0
      %3420 = vmatprep.subr.bf16.mxu0 0
      %3421 = vmatpush1.bf16.msra.mxu0 0
      %3422 = vmatprep.subr.bf16.mxu0 0
      %3423 = vmatpush1.bf16.msra.mxu0 0
      %3424 = vmatprep.mubr.bf16.mxu0 0
      %3425 = vmatmul.mubr.bf16.gmra.mrb[0].mxu0 %v3337
      %v3426 = vpop.f32.mrb[0].mxu0
      %v3427 = vadd.f32 0.0, %v3426
      %v3428 = vpop.f32.mrb[0].mxu0
      %v3429 = vadd.f32 0.0, %v3428
      %v3430 = vpop.f32.mrb[0].mxu0
      %v3431 = vpop.f32.mrb[0].mxu0
      %3432 = vdwg.mxu0
      %v3433 = vadd.f32 %v3310, %v3386
      %v3434 = vadd.f32 %v3311, %v3388
      %v3435 = vadd.f32 %v3312, %v3427
      %v3436 = vadd.f32 %v3313, %v3429
      %3437 = vrot.lane.b32.xlu0 %v2718, 113
      %v3438 = vpop.permute.xlu0 %3437
      %3439 = vrot.lane.b32.xlu0 %v2719, 113
      %v3440 = vpop.permute.xlu0 %3439
      %3441 = vrot.lane.b32.xlu0 %v2720, 113
      %v3442 = vpop.permute.xlu0 %3441
      %3443 = vrot.lane.b32.xlu0 %v2721, 113
      %v3444 = vpop.permute.xlu0 %3443
      %v3445 = vsel %vm1175, %v3442, %v3444
      %v3446 = vsel %vm1175, %v3440, %v3442
      %v3447 = vsel %vm1175, %v3438, %v3440
      %v3448 = vsel %vm1175, %v3444, %v3438
      %v3449 = vmul.f32 %v3447, %v1186
      %v3450 = vmul.f32 %v3446, %v1190
      %v3451 = vmul.f32 %v3445, %v1194
      %v3452 = vmul.f32 %v3448, %v1198
      %s3453 = scalar_lea.vmem %s5, 24
      %v3454 = vld [vmem:[%s3453] sm:$0xf]
      %v3455 = vpack.c.bf16 %v3449, %v3449
      %v3456 = vpack.c.bf16 %v3450, %v3450
      %v3457 = vpack.c.bf16 %v3451, %v3451
      %v3458 = vpack.c.bf16 %v3452, %v3452
      %v3460 = vsel %vm2765, %v3454, 0
      %v3463 = vsel %vm2769, %v3455, 0
      %v3466 = vsel %vm2769, %v3456, 0
      %v3469 = vsel %vm2769, %v3457, 0
      %v3472 = vsel %vm2769, %v3458, 0
      %3474 = vmatprep.subr.bf16.mxu0 %v3466
      %3475 = vmatpush1.bf16.msra.mxu0 %v3463
      %3476 = vmatprep.subr.bf16.mxu0 0
      %3477 = vmatpush1.bf16.msra.mxu0 0
      %3478 = vmatprep.subr.bf16.mxu0 0
      %3479 = vmatpush1.bf16.msra.mxu0 0
      %3480 = vmatprep.subr.bf16.mxu0 0
      %3481 = vmatpush1.bf16.msra.mxu0 0
      %3482 = vmatprep.subr.bf16.mxu0 0
      %3483 = vmatpush1.bf16.msra.mxu0 0
      %3484 = vmatprep.subr.bf16.mxu0 0
      %3485 = vmatpush1.bf16.msra.mxu0 0
      %3486 = vmatprep.subr.bf16.mxu0 0
      %3487 = vmatpush1.bf16.msra.mxu0 0
      %3488 = vmatprep.subr.bf16.mxu0 0
      %3489 = vmatpush1.bf16.msra.mxu0 0
      %3490 = vmatprep.subr.bf16.mxu0 0
      %3491 = vmatpush1.bf16.msra.mxu0 0
      %3492 = vmatprep.subr.bf16.mxu0 0
      %3493 = vmatpush1.bf16.msra.mxu0 0
      %3494 = vmatprep.subr.bf16.mxu0 0
      %3495 = vmatpush1.bf16.msra.mxu0 0
      %3496 = vmatprep.subr.bf16.mxu0 0
      %3497 = vmatpush1.bf16.msra.mxu0 0
      %3498 = vmatprep.subr.bf16.mxu0 0
      %3499 = vmatpush1.bf16.msra.mxu0 0
      %3500 = vmatprep.subr.bf16.mxu0 0
      %3501 = vmatpush1.bf16.msra.mxu0 0
      %3502 = vmatprep.subr.bf16.mxu0 0
      %3503 = vmatpush1.bf16.msra.mxu0 0
      %3504 = vmatprep.subr.bf16.mxu0 0
      %3505 = vmatpush1.bf16.msra.mxu0 0
      %3506 = vmatprep.mubr.bf16.mxu0 0
      %3507 = vmatmul.mubr.bf16.gmra.mrb[0].mxu0 %v3460
      %v3508 = vpop.f32.mrb[0].mxu0
      %v3509 = vadd.f32 0.0, %v3508
      %v3510 = vpop.f32.mrb[0].mxu0
      %v3511 = vadd.f32 0.0, %v3510
      %v3512 = vpop.f32.mrb[0].mxu0
      %v3513 = vpop.f32.mrb[0].mxu0
      %3514 = vdwg.mxu0
      %3515 = vmatprep.subr.bf16.mxu0 %v3472
      %3516 = vmatpush1.bf16.msra.mxu0 %v3469
      %3517 = vmatprep.subr.bf16.mxu0 0
      %3518 = vmatpush1.bf16.msra.mxu0 0
      %3519 = vmatprep.subr.bf16.mxu0 0
      %3520 = vmatpush1.bf16.msra.mxu0 0
      %3521 = vmatprep.subr.bf16.mxu0 0
      %3522 = vmatpush1.bf16.msra.mxu0 0
      %3523 = vmatprep.subr.bf16.mxu0 0
      %3524 = vmatpush1.bf16.msra.mxu0 0
      %3525 = vmatprep.subr.bf16.mxu0 0
      %3526 = vmatpush1.bf16.msra.mxu0 0
      %3527 = vmatprep.subr.bf16.mxu0 0
      %3528 = vmatpush1.bf16.msra.mxu0 0
      %3529 = vmatprep.subr.bf16.mxu0 0
      %3530 = vmatpush1.bf16.msra.mxu0 0
      %3531 = vmatprep.subr.bf16.mxu0 0
      %3532 = vmatpush1.bf16.msra.mxu0 0
      %3533 = vmatprep.subr.bf16.mxu0 0
      %3534 = vmatpush1.bf16.msra.mxu0 0
      %3535 = vmatprep.subr.bf16.mxu0 0
      %3536 = vmatpush1.bf16.msra.mxu0 0
      %3537 = vmatprep.subr.bf16.mxu0 0
      %3538 = vmatpush1.bf16.msra.mxu0 0
      %3539 = vmatprep.subr.bf16.mxu0 0
      %3540 = vmatpush1.bf16.msra.mxu0 0
      %3541 = vmatprep.subr.bf16.mxu0 0
      %3542 = vmatpush1.bf16.msra.mxu0 0
      %3543 = vmatprep.subr.bf16.mxu0 0
      %3544 = vmatpush1.bf16.msra.mxu0 0
      %3545 = vmatprep.subr.bf16.mxu0 0
      %3546 = vmatpush1.bf16.msra.mxu0 0
      %3547 = vmatprep.mubr.bf16.mxu0 0
      %3548 = vmatmul.mubr.bf16.gmra.mrb[0].mxu0 %v3460
      %v3549 = vpop.f32.mrb[0].mxu0
      %v3550 = vadd.f32 0.0, %v3549
      %v3551 = vpop.f32.mrb[0].mxu0
      %v3552 = vadd.f32 0.0, %v3551
      %v3553 = vpop.f32.mrb[0].mxu0
      %v3554 = vpop.f32.mrb[0].mxu0
      %3555 = vdwg.mxu0
      %v3556 = vadd.f32 %v3433, %v3509
      %v3557 = vadd.f32 %v3434, %v3511
      %v3558 = vadd.f32 %v3435, %v3550
      %v3559 = vadd.f32 %v3436, %v3552
      %3560 = vrot.lane.b32.xlu0 %v2718, 112
      %v3561 = vpop.permute.xlu0 %3560
      %3562 = vrot.lane.b32.xlu0 %v2719, 112
      %v3563 = vpop.permute.xlu0 %3562
      %3564 = vrot.lane.b32.xlu0 %v2720, 112
      %v3565 = vpop.permute.xlu0 %3564
      %3566 = vrot.lane.b32.xlu0 %v2721, 112
      %v3567 = vpop.permute.xlu0 %3566
      %v3568 = vsel %vm1322, %v3565, %v3567
      %v3569 = vsel %vm1322, %v3563, %v3565
      %v3570 = vsel %vm1322, %v3561, %v3563
      %v3571 = vsel %vm1322, %v3567, %v3561
      %v3572 = vmul.f32 %v3570, %v1333
      %v3573 = vmul.f32 %v3569, %v1337
      %v3574 = vmul.f32 %v3568, %v1341
      %v3575 = vmul.f32 %v3571, %v1345
      %s3576 = scalar_lea.vmem %s5, 28
      %v3577 = vld [vmem:[%s3576] sm:$0xf]
      %v3578 = vpack.c.bf16 %v3572, %v3572
      %v3579 = vpack.c.bf16 %v3573, %v3573
      %v3580 = vpack.c.bf16 %v3574, %v3574
      %v3581 = vpack.c.bf16 %v3575, %v3575
      %v3583 = vsel %vm2765, %v3577, 0
      %v3586 = vsel %vm2769, %v3578, 0
      %v3589 = vsel %vm2769, %v3579, 0
      %v3592 = vsel %vm2769, %v3580, 0
      %v3595 = vsel %vm2769, %v3581, 0
      %3597 = vmatprep.subr.bf16.mxu0 %v3589
      %3598 = vmatpush1.bf16.msra.mxu0 %v3586
      %3599 = vmatprep.subr.bf16.mxu0 0
      %3600 = vmatpush1.bf16.msra.mxu0 0
      %3601 = vmatprep.subr.bf16.mxu0 0
      %3602 = vmatpush1.bf16.msra.mxu0 0
      %3603 = vmatprep.subr.bf16.mxu0 0
      %3604 = vmatpush1.bf16.msra.mxu0 0
      %3605 = vmatprep.subr.bf16.mxu0 0
      %3606 = vmatpush1.bf16.msra.mxu0 0
      %3607 = vmatprep.subr.bf16.mxu0 0
      %3608 = vmatpush1.bf16.msra.mxu0 0
      %3609 = vmatprep.subr.bf16.mxu0 0
      %3610 = vmatpush1.bf16.msra.mxu0 0
      %3611 = vmatprep.subr.bf16.mxu0 0
      %3612 = vmatpush1.bf16.msra.mxu0 0
      %3613 = vmatprep.subr.bf16.mxu0 0
      %3614 = vmatpush1.bf16.msra.mxu0 0
      %3615 = vmatprep.subr.bf16.mxu0 0
      %3616 = vmatpush1.bf16.msra.mxu0 0
      %3617 = vmatprep.subr.bf16.mxu0 0
      %3618 = vmatpush1.bf16.msra.mxu0 0
      %3619 = vmatprep.subr.bf16.mxu0 0
      %3620 = vmatpush1.bf16.msra.mxu0 0
      %3621 = vmatprep.subr.bf16.mxu0 0
      %3622 = vmatpush1.bf16.msra.mxu0 0
      %3623 = vmatprep.subr.bf16.mxu0 0
      %3624 = vmatpush1.bf16.msra.mxu0 0
      %3625 = vmatprep.subr.bf16.mxu0 0
      %3626 = vmatpush1.bf16.msra.mxu0 0
      %3627 = vmatprep.subr.bf16.mxu0 0
      %3628 = vmatpush1.bf16.msra.mxu0 0
      %3629 = vmatprep.mubr.bf16.mxu0 0
      %3630 = vmatmul.mubr.bf16.gmra.mrb[0].mxu0 %v3583
      %v3631 = vpop.f32.mrb[0].mxu0
      %v3632 = vadd.f32 0.0, %v3631
      %v3633 = vpop.f32.mrb[0].mxu0
      %v3634 = vadd.f32 0.0, %v3633
      %v3635 = vpop.f32.mrb[0].mxu0
      %v3636 = vpop.f32.mrb[0].mxu0
      %3637 = vdwg.mxu0
      %3638 = vmatprep.subr.bf16.mxu0 %v3595
      %3639 = vmatpush1.bf16.msra.mxu0 %v3592
      %3640 = vmatprep.subr.bf16.mxu0 0
      %3641 = vmatpush1.bf16.msra.mxu0 0
      %3642 = vmatprep.subr.bf16.mxu0 0
      %3643 = vmatpush1.bf16.msra.mxu0 0
      %3644 = vmatprep.subr.bf16.mxu0 0
      %3645 = vmatpush1.bf16.msra.mxu0 0
      %3646 = vmatprep.subr.bf16.mxu0 0
      %3647 = vmatpush1.bf16.msra.mxu0 0
      %3648 = vmatprep.subr.bf16.mxu0 0
      %3649 = vmatpush1.bf16.msra.mxu0 0
      %3650 = vmatprep.subr.bf16.mxu0 0
      %3651 = vmatpush1.bf16.msra.mxu0 0
      %3652 = vmatprep.subr.bf16.mxu0 0
      %3653 = vmatpush1.bf16.msra.mxu0 0
      %3654 = vmatprep.subr.bf16.mxu0 0
      %3655 = vmatpush1.bf16.msra.mxu0 0
      %3656 = vmatprep.subr.bf16.mxu0 0
      %3657 = vmatpush1.bf16.msra.mxu0 0
      %3658 = vmatprep.subr.bf16.mxu0 0
      %3659 = vmatpush1.bf16.msra.mxu0 0
      %3660 = vmatprep.subr.bf16.mxu0 0
      %3661 = vmatpush1.bf16.msra.mxu0 0
      %3662 = vmatprep.subr.bf16.mxu0 0
      %3663 = vmatpush1.bf16.msra.mxu0 0
      %3664 = vmatprep.subr.bf16.mxu0 0
      %3665 = vmatpush1.bf16.msra.mxu0 0
      %3666 = vmatprep.subr.bf16.mxu0 0
      %3667 = vmatpush1.bf16.msra.mxu0 0
      %3668 = vmatprep.subr.bf16.mxu0 0
      %3669 = vmatpush1.bf16.msra.mxu0 0
      %3670 = vmatprep.mubr.bf16.mxu0 0
      %3671 = vmatmul.mubr.bf16.gmra.mrb[0].mxu0 %v3583
      %v3672 = vpop.f32.mrb[0].mxu0
      %v3673 = vadd.f32 0.0, %v3672
      %v3674 = vpop.f32.mrb[0].mxu0
      %v3675 = vadd.f32 0.0, %v3674
      %v3676 = vpop.f32.mrb[0].mxu0
      %v3677 = vpop.f32.mrb[0].mxu0
      %3678 = vdwg.mxu0
      %v3679 = vadd.f32 %v3556, %v3632
      %v3680 = vadd.f32 %v3557, %v3634
      %v3681 = vadd.f32 %v3558, %v3673
      %v3682 = vadd.f32 %v3559, %v3675
      %3683 = vrot.lane.b32.xlu0 %v2718, 111
      %v3684 = vpop.permute.xlu0 %3683
      %3685 = vrot.lane.b32.xlu0 %v2719, 111
      %v3686 = vpop.permute.xlu0 %3685
      %3687 = vrot.lane.b32.xlu0 %v2720, 111
      %v3688 = vpop.permute.xlu0 %3687
      %3689 = vrot.lane.b32.xlu0 %v2721, 111
      %v3690 = vpop.permute.xlu0 %3689
      %v3691 = vsel %vm1469, %v3688, %v3690
      %v3692 = vsel %vm1469, %v3686, %v3688
      %v3693 = vsel %vm1469, %v3684, %v3686
      %v3694 = vsel %vm1469, %v3690, %v3684
      %v3695 = vmul.f32 %v3693, %v1480
      %v3696 = vmul.f32 %v3692, %v1484
      %v3697 = vmul.f32 %v3691, %v1488
      %v3698 = vmul.f32 %v3694, %v1492
      %s3699 = scalar_lea.vmem %s5, 32
      %v3700 = vld [vmem:[%s3699] sm:$0xf]
      %v3701 = vpack.c.bf16 %v3695, %v3695
      %v3702 = vpack.c.bf16 %v3696, %v3696
      %v3703 = vpack.c.bf16 %v3697, %v3697
      %v3704 = vpack.c.bf16 %v3698, %v3698
      %v3706 = vsel %vm2765, %v3700, 0
      %v3709 = vsel %vm2769, %v3701, 0
      %v3712 = vsel %vm2769, %v3702, 0
      %v3715 = vsel %vm2769, %v3703, 0
      %v3718 = vsel %vm2769, %v3704, 0
      %3720 = vmatprep.subr.bf16.mxu0 %v3712
      %3721 = vmatpush1.bf16.msra.mxu0 %v3709
      %3722 = vmatprep.subr.bf16.mxu0 0
      %3723 = vmatpush1.bf16.msra.mxu0 0
      %3724 = vmatprep.subr.bf16.mxu0 0
      %3725 = vmatpush1.bf16.msra.mxu0 0
      %3726 = vmatprep.subr.bf16.mxu0 0
      %3727 = vmatpush1.bf16.msra.mxu0 0
      %3728 = vmatprep.subr.bf16.mxu0 0
      %3729 = vmatpush1.bf16.msra.mxu0 0
      %3730 = vmatprep.subr.bf16.mxu0 0
      %3731 = vmatpush1.bf16.msra.mxu0 0
      %3732 = vmatprep.subr.bf16.mxu0 0
      %3733 = vmatpush1.bf16.msra.mxu0 0
      %3734 = vmatprep.subr.bf16.mxu0 0
      %3735 = vmatpush1.bf16.msra.mxu0 0
      %3736 = vmatprep.subr.bf16.mxu0 0
      %3737 = vmatpush1.bf16.msra.mxu0 0
      %3738 = vmatprep.subr.bf16.mxu0 0
      %3739 = vmatpush1.bf16.msra.mxu0 0
      %3740 = vmatprep.subr.bf16.mxu0 0
      %3741 = vmatpush1.bf16.msra.mxu0 0
      %3742 = vmatprep.subr.bf16.mxu0 0
      %3743 = vmatpush1.bf16.msra.mxu0 0
      %3744 = vmatprep.subr.bf16.mxu0 0
      %3745 = vmatpush1.bf16.msra.mxu0 0
      %3746 = vmatprep.subr.bf16.mxu0 0
      %3747 = vmatpush1.bf16.msra.mxu0 0
      %3748 = vmatprep.subr.bf16.mxu0 0
      %3749 = vmatpush1.bf16.msra.mxu0 0
      %3750 = vmatprep.subr.bf16.mxu0 0
      %3751 = vmatpush1.bf16.msra.mxu0 0
      %3752 = vmatprep.mubr.bf16.mxu0 0
      %3753 = vmatmul.mubr.bf16.gmra.mrb[0].mxu0 %v3706
      %v3754 = vpop.f32.mrb[0].mxu0
      %v3755 = vadd.f32 0.0, %v3754
      %v3756 = vpop.f32.mrb[0].mxu0
      %v3757 = vadd.f32 0.0, %v3756
      %v3758 = vpop.f32.mrb[0].mxu0
      %v3759 = vpop.f32.mrb[0].mxu0
      %3760 = vdwg.mxu0
      %3761 = vmatprep.subr.bf16.mxu0 %v3718
      %3762 = vmatpush1.bf16.msra.mxu0 %v3715
      %3763 = vmatprep.subr.bf16.mxu0 0
      %3764 = vmatpush1.bf16.msra.mxu0 0
      %3765 = vmatprep.subr.bf16.mxu0 0
      %3766 = vmatpush1.bf16.msra.mxu0 0
      %3767 = vmatprep.subr.bf16.mxu0 0
      %3768 = vmatpush1.bf16.msra.mxu0 0
      %3769 = vmatprep.subr.bf16.mxu0 0
      %3770 = vmatpush1.bf16.msra.mxu0 0
      %3771 = vmatprep.subr.bf16.mxu0 0
      %3772 = vmatpush1.bf16.msra.mxu0 0
      %3773 = vmatprep.subr.bf16.mxu0 0
      %3774 = vmatpush1.bf16.msra.mxu0 0
      %3775 = vmatprep.subr.bf16.mxu0 0
      %3776 = vmatpush1.bf16.msra.mxu0 0
      %3777 = vmatprep.subr.bf16.mxu0 0
      %3778 = vmatpush1.bf16.msra.mxu0 0
      %3779 = vmatprep.subr.bf16.mxu0 0
      %3780 = vmatpush1.bf16.msra.mxu0 0
      %3781 = vmatprep.subr.bf16.mxu0 0
      %3782 = vmatpush1.bf16.msra.mxu0 0
      %3783 = vmatprep.subr.bf16.mxu0 0
      %3784 = vmatpush1.bf16.msra.mxu0 0
      %3785 = vmatprep.subr.bf16.mxu0 0
      %3786 = vmatpush1.bf16.msra.mxu0 0
      %3787 = vmatprep.subr.bf16.mxu0 0
      %3788 = vmatpush1.bf16.msra.mxu0 0
      %3789 = vmatprep.subr.bf16.mxu0 0
      %3790 = vmatpush1.bf16.msra.mxu0 0
      %3791 = vmatprep.subr.bf16.mxu0 0
      %3792 = vmatpush1.bf16.msra.mxu0 0
      %3793 = vmatprep.mubr.bf16.mxu0 0
      %3794 = vmatmul.mubr.bf16.gmra.mrb[0].mxu0 %v3706
      %v3795 = vpop.f32.mrb[0].mxu0
      %v3796 = vadd.f32 0.0, %v3795
      %v3797 = vpop.f32.mrb[0].mxu0
      %v3798 = vadd.f32 0.0, %v3797
      %v3799 = vpop.f32.mrb[0].mxu0
      %v3800 = vpop.f32.mrb[0].mxu0
      %3801 = vdwg.mxu0
      %v3802 = vadd.f32 %v3679, %v3755
      %v3803 = vadd.f32 %v3680, %v3757
      %v3804 = vadd.f32 %v3681, %v3796
      %v3805 = vadd.f32 %v3682, %v3798
      %v3806 = vmax.f32 %v3802, 0.0
      %v3807 = vmax.f32 %v3803, 0.0
      %v3808 = vmax.f32 %v3804, 0.0
      %v3809 = vmax.f32 %v3805, 0.0
      %3810 = vrot.lane.b32.xlu0 %v3806, 17
      %v3811 = vpop.permute.xlu0 %3810
      %3812 = vrot.lane.b32.xlu0 %v3807, 17
      %v3813 = vpop.permute.xlu0 %3812
      %3814 = vrot.lane.b32.xlu0 %v3808, 17
      %v3815 = vpop.permute.xlu0 %3814
      %3816 = vrot.lane.b32.xlu0 %v3809, 17
      %v3817 = vpop.permute.xlu0 %3816
      %v3818 = vsel %vm327, %v3815, %v3817
      %v3819 = vsel %vm327, %v3813, %v3815
      %v3820 = vsel %vm327, %v3811, %v3813
      %v3821 = vsel %vm327, %v3817, %v3811
      %v3822 = vmul.f32 %v3821, %v337
      %v3823 = vmul.f32 %v3820, %v341
      %v3824 = vmul.f32 %v3819, %v345
      %v3825 = vmul.f32 %v3818, %v349
      %v3826 = vld [vmem:[%s6] sm:$0xf]
      %v3827 = vpack.c.bf16 %v3822, %v3822
      %v3828 = vpack.c.bf16 %v3823, %v3823
      %v3829 = vpack.c.bf16 %v3824, %v3824
      %v3830 = vpack.c.bf16 %v3825, %v3825
      %3831 = vrot.lane.b32.xlu0 %v3806, 16
      %v3832 = vpop.permute.xlu0 %3831
      %3833 = vrot.lane.b32.xlu0 %v3807, 16
      %v3834 = vpop.permute.xlu0 %3833
      %3835 = vrot.lane.b32.xlu0 %v3808, 16
      %v3836 = vpop.permute.xlu0 %3835
      %3837 = vrot.lane.b32.xlu0 %v3809, 16
      %v3838 = vpop.permute.xlu0 %3837
      %v3839 = vsel %vm371, %v3836, %v3838
      %v3840 = vsel %vm371, %v3834, %v3836
      %v3841 = vsel %vm371, %v3832, %v3834
      %v3842 = vsel %vm371, %v3838, %v3832
      %v3843 = vmul.f32 %v3842, %v382
      %v3844 = vmul.f32 %v3841, %v386
      %v3845 = vmul.f32 %v3840, %v390
      %v3846 = vmul.f32 %v3839, %v394
      %s3847 = scalar_lea.vmem %s6, 4
      %v3848 = vld [vmem:[%s3847] sm:$0xf]
      %v3849 = vpack.c.bf16 %v3843, %v3843
      %v3850 = vpack.c.bf16 %v3844, %v3844
      %v3851 = vpack.c.bf16 %v3845, %v3845
      %v3852 = vpack.c.bf16 %v3846, %v3846
      %v3854 = vsel %vm2765, %v3848, 0
      %v3857 = vsel %vm2769, %v3849, 0
      %v3860 = vsel %vm2769, %v3850, 0
      %v3863 = vsel %vm2769, %v3851, 0
      %v3866 = vsel %vm2769, %v3852, 0
      %3868 = vmatprep.subr.bf16.mxu0 %v3860
      %3869 = vmatpush1.bf16.msra.mxu0 %v3857
      %3870 = vmatprep.subr.bf16.mxu0 0
      %3871 = vmatpush1.bf16.msra.mxu0 0
      %3872 = vmatprep.subr.bf16.mxu0 0
      %3873 = vmatpush1.bf16.msra.mxu0 0
      %3874 = vmatprep.subr.bf16.mxu0 0
      %3875 = vmatpush1.bf16.msra.mxu0 0
      %3876 = vmatprep.subr.bf16.mxu0 0
      %3877 = vmatpush1.bf16.msra.mxu0 0
      %3878 = vmatprep.subr.bf16.mxu0 0
      %3879 = vmatpush1.bf16.msra.mxu0 0
      %3880 = vmatprep.subr.bf16.mxu0 0
      %3881 = vmatpush1.bf16.msra.mxu0 0
      %3882 = vmatprep.subr.bf16.mxu0 0
      %3883 = vmatpush1.bf16.msra.mxu0 0
      %3884 = vmatprep.subr.bf16.mxu0 0
      %3885 = vmatpush1.bf16.msra.mxu0 0
      %3886 = vmatprep.subr.bf16.mxu0 0
      %3887 = vmatpush1.bf16.msra.mxu0 0
      %3888 = vmatprep.subr.bf16.mxu0 0
      %3889 = vmatpush1.bf16.msra.mxu0 0
      %3890 = vmatprep.subr.bf16.mxu0 0
      %3891 = vmatpush1.bf16.msra.mxu0 0
      %3892 = vmatprep.subr.bf16.mxu0 0
      %3893 = vmatpush1.bf16.msra.mxu0 0
      %3894 = vmatprep.subr.bf16.mxu0 0
      %3895 = vmatpush1.bf16.msra.mxu0 0
      %3896 = vmatprep.subr.bf16.mxu0 0
      %3897 = vmatpush1.bf16.msra.mxu0 0
      %3898 = vmatprep.subr.bf16.mxu0 0
      %3899 = vmatpush1.bf16.msra.mxu0 0
      %3900 = vmatprep.mubr.bf16.mxu0 0
      %3901 = vmatmul.mubr.bf16.gmra.mrb[0].mxu0 %v3854
      %v3902 = vpop.f32.mrb[0].mxu0
      %v3903 = vadd.f32 0.0, %v3902
      %v3904 = vpop.f32.mrb[0].mxu0
      %v3905 = vadd.f32 0.0, %v3904
      %v3906 = vpop.f32.mrb[0].mxu0
      %v3907 = vpop.f32.mrb[0].mxu0
      %3908 = vdwg.mxu0
      %3909 = vmatprep.subr.bf16.mxu0 %v3866
      %3910 = vmatpush1.bf16.msra.mxu0 %v3863
      %3911 = vmatprep.subr.bf16.mxu0 0
      %3912 = vmatpush1.bf16.msra.mxu0 0
      %3913 = vmatprep.subr.bf16.mxu0 0
      %3914 = vmatpush1.bf16.msra.mxu0 0
      %3915 = vmatprep.subr.bf16.mxu0 0
      %3916 = vmatpush1.bf16.msra.mxu0 0
      %3917 = vmatprep.subr.bf16.mxu0 0
      %3918 = vmatpush1.bf16.msra.mxu0 0
      %3919 = vmatprep.subr.bf16.mxu0 0
      %3920 = vmatpush1.bf16.msra.mxu0 0
      %3921 = vmatprep.subr.bf16.mxu0 0
      %3922 = vmatpush1.bf16.msra.mxu0 0
      %3923 = vmatprep.subr.bf16.mxu0 0
      %3924 = vmatpush1.bf16.msra.mxu0 0
      %3925 = vmatprep.subr.bf16.mxu0 0
      %3926 = vmatpush1.bf16.msra.mxu0 0
      %3927 = vmatprep.subr.bf16.mxu0 0
      %3928 = vmatpush1.bf16.msra.mxu0 0
      %3929 = vmatprep.subr.bf16.mxu0 0
      %3930 = vmatpush1.bf16.msra.mxu0 0
      %3931 = vmatprep.subr.bf16.mxu0 0
      %3932 = vmatpush1.bf16.msra.mxu0 0
      %3933 = vmatprep.subr.bf16.mxu0 0
      %3934 = vmatpush1.bf16.msra.mxu0 0
      %3935 = vmatprep.subr.bf16.mxu0 0
      %3936 = vmatpush1.bf16.msra.mxu0 0
      %3937 = vmatprep.subr.bf16.mxu0 0
      %3938 = vmatpush1.bf16.msra.mxu0 0
      %3939 = vmatprep.subr.bf16.mxu0 0
      %3940 = vmatpush1.bf16.msra.mxu0 0
      %3941 = vmatprep.mubr.bf16.mxu0 0
      %3942 = vmatmul.mubr.bf16.gmra.mrb[0].mxu0 %v3854
      %v3943 = vpop.f32.mrb[0].mxu0
      %v3944 = vadd.f32 0.0, %v3943
      %v3945 = vpop.f32.mrb[0].mxu0
      %v3946 = vadd.f32 0.0, %v3945
      %v3947 = vpop.f32.mrb[0].mxu0
      %v3948 = vpop.f32.mrb[0].mxu0
      %3949 = vdwg.mxu0
      %v3951 = vsel %vm2765, %v3826, 0
      %v3954 = vsel %vm2769, %v3827, 0
      %v3957 = vsel %vm2769, %v3828, 0
      %v3960 = vsel %vm2769, %v3829, 0
      %v3963 = vsel %vm2769, %v3830, 0
      %3965 = vmatprep.subr.bf16.mxu0 %v3957
      %3966 = vmatpush1.bf16.msra.mxu0 %v3954
      %3967 = vmatprep.subr.bf16.mxu0 0
      %3968 = vmatpush1.bf16.msra.mxu0 0
      %3969 = vmatprep.subr.bf16.mxu0 0
      %3970 = vmatpush1.bf16.msra.mxu0 0
      %3971 = vmatprep.subr.bf16.mxu0 0
      %3972 = vmatpush1.bf16.msra.mxu0 0
      %3973 = vmatprep.subr.bf16.mxu0 0
      %3974 = vmatpush1.bf16.msra.mxu0 0
      %3975 = vmatprep.subr.bf16.mxu0 0
      %3976 = vmatpush1.bf16.msra.mxu0 0
      %3977 = vmatprep.subr.bf16.mxu0 0
      %3978 = vmatpush1.bf16.msra.mxu0 0
      %3979 = vmatprep.subr.bf16.mxu0 0
      %3980 = vmatpush1.bf16.msra.mxu0 0
      %3981 = vmatprep.subr.bf16.mxu0 0
      %3982 = vmatpush1.bf16.msra.mxu0 0
      %3983 = vmatprep.subr.bf16.mxu0 0
      %3984 = vmatpush1.bf16.msra.mxu0 0
      %3985 = vmatprep.subr.bf16.mxu0 0
      %3986 = vmatpush1.bf16.msra.mxu0 0
      %3987 = vmatprep.subr.bf16.mxu0 0
      %3988 = vmatpush1.bf16.msra.mxu0 0
      %3989 = vmatprep.subr.bf16.mxu0 0
      %3990 = vmatpush1.bf16.msra.mxu0 0
      %3991 = vmatprep.subr.bf16.mxu0 0
      %3992 = vmatpush1.bf16.msra.mxu0 0
      %3993 = vmatprep.subr.bf16.mxu0 0
      %3994 = vmatpush1.bf16.msra.mxu0 0
      %3995 = vmatprep.subr.bf16.mxu0 0
      %3996 = vmatpush1.bf16.msra.mxu0 0
      %3997 = vmatprep.mubr.bf16.mxu0 0
      %3998 = vmatmul.mubr.bf16.gmra.mrb[0].mxu0 %v3951
      %v3999 = vpop.f32.mrb[0].mxu0
      %v4000 = vadd.f32 %v3903, %v3999
      %v4001 = vpop.f32.mrb[0].mxu0
      %v4002 = vadd.f32 %v3905, %v4001
      %v4003 = vpop.f32.mrb[0].mxu0
      %v4004 = vpop.f32.mrb[0].mxu0
      %4005 = vdwg.mxu0
      %4006 = vmatprep.subr.bf16.mxu0 %v3963
      %4007 = vmatpush1.bf16.msra.mxu0 %v3960
      %4008 = vmatprep.subr.bf16.mxu0 0
      %4009 = vmatpush1.bf16.msra.mxu0 0
      %4010 = vmatprep.subr.bf16.mxu0 0
      %4011 = vmatpush1.bf16.msra.mxu0 0
      %4012 = vmatprep.subr.bf16.mxu0 0
      %4013 = vmatpush1.bf16.msra.mxu0 0
      %4014 = vmatprep.subr.bf16.mxu0 0
      %4015 = vmatpush1.bf16.msra.mxu0 0
      %4016 = vmatprep.subr.bf16.mxu0 0
      %4017 = vmatpush1.bf16.msra.mxu0 0
      %4018 = vmatprep.subr.bf16.mxu0 0
      %4019 = vmatpush1.bf16.msra.mxu0 0
      %4020 = vmatprep.subr.bf16.mxu0 0
      %4021 = vmatpush1.bf16.msra.mxu0 0
      %4022 = vmatprep.subr.bf16.mxu0 0
      %4023 = vmatpush1.bf16.msra.mxu0 0
      %4024 = vmatprep.subr.bf16.mxu0 0
      %4025 = vmatpush1.bf16.msra.mxu0 0
      %4026 = vmatprep.subr.bf16.mxu0 0
      %4027 = vmatpush1.bf16.msra.mxu0 0
      %4028 = vmatprep.subr.bf16.mxu0 0
      %4029 = vmatpush1.bf16.msra.mxu0 0
      %4030 = vmatprep.subr.bf16.mxu0 0
      %4031 = vmatpush1.bf16.msra.mxu0 0
      %4032 = vmatprep.subr.bf16.mxu0 0
      %4033 = vmatpush1.bf16.msra.mxu0 0
      %4034 = vmatprep.subr.bf16.mxu0 0
      %4035 = vmatpush1.bf16.msra.mxu0 0
      %4036 = vmatprep.subr.bf16.mxu0 0
      %4037 = vmatpush1.bf16.msra.mxu0 0
      %4038 = vmatprep.mubr.bf16.mxu0 0
      %4039 = vmatmul.mubr.bf16.gmra.mrb[0].mxu0 %v3951
      %v4040 = vpop.f32.mrb[0].mxu0
      %v4041 = vadd.f32 %v3944, %v4040
      %v4042 = vpop.f32.mrb[0].mxu0
      %v4043 = vadd.f32 %v3946, %v4042
      %v4044 = vpop.f32.mrb[0].mxu0
      %v4045 = vpop.f32.mrb[0].mxu0
      %4046 = vdwg.mxu0
      %4047 = vrot.lane.b32.xlu0 %v3806, 15
      %v4048 = vpop.permute.xlu0 %4047
      %4049 = vrot.lane.b32.xlu0 %v3807, 15
      %v4050 = vpop.permute.xlu0 %4049
      %4051 = vrot.lane.b32.xlu0 %v3808, 15
      %v4052 = vpop.permute.xlu0 %4051
      %4053 = vrot.lane.b32.xlu0 %v3809, 15
      %v4054 = vpop.permute.xlu0 %4053
      %v4055 = vsel %vm613, %v4052, %v4054
      %v4056 = vsel %vm613, %v4050, %v4052
      %v4057 = vsel %vm613, %v4048, %v4050
      %v4058 = vsel %vm613, %v4054, %v4048
      %v4059 = vmul.f32 %v4058, %v624
      %v4060 = vmul.f32 %v4057, %v628
      %v4061 = vmul.f32 %v4056, %v632
      %v4062 = vmul.f32 %v4055, %v636
      %s4063 = scalar_lea.vmem %s6, 8
      %v4064 = vld [vmem:[%s4063] sm:$0xf]
      %v4065 = vpack.c.bf16 %v4059, %v4059
      %v4066 = vpack.c.bf16 %v4060, %v4060
      %v4067 = vpack.c.bf16 %v4061, %v4061
      %v4068 = vpack.c.bf16 %v4062, %v4062
      %v4070 = vsel %vm2765, %v4064, 0
      %v4073 = vsel %vm2769, %v4065, 0
      %v4076 = vsel %vm2769, %v4066, 0
      %v4079 = vsel %vm2769, %v4067, 0
      %v4082 = vsel %vm2769, %v4068, 0
      %4084 = vmatprep.subr.bf16.mxu0 %v4076
      %4085 = vmatpush1.bf16.msra.mxu0 %v4073
      %4086 = vmatprep.subr.bf16.mxu0 0
      %4087 = vmatpush1.bf16.msra.mxu0 0
      %4088 = vmatprep.subr.bf16.mxu0 0
      %4089 = vmatpush1.bf16.msra.mxu0 0
      %4090 = vmatprep.subr.bf16.mxu0 0
      %4091 = vmatpush1.bf16.msra.mxu0 0
      %4092 = vmatprep.subr.bf16.mxu0 0
      %4093 = vmatpush1.bf16.msra.mxu0 0
      %4094 = vmatprep.subr.bf16.mxu0 0
      %4095 = vmatpush1.bf16.msra.mxu0 0
      %4096 = vmatprep.subr.bf16.mxu0 0
      %4097 = vmatpush1.bf16.msra.mxu0 0
      %4098 = vmatprep.subr.bf16.mxu0 0
      %4099 = vmatpush1.bf16.msra.mxu0 0
      %4100 = vmatprep.subr.bf16.mxu0 0
      %4101 = vmatpush1.bf16.msra.mxu0 0
      %4102 = vmatprep.subr.bf16.mxu0 0
      %4103 = vmatpush1.bf16.msra.mxu0 0
      %4104 = vmatprep.subr.bf16.mxu0 0
      %4105 = vmatpush1.bf16.msra.mxu0 0
      %4106 = vmatprep.subr.bf16.mxu0 0
      %4107 = vmatpush1.bf16.msra.mxu0 0
      %4108 = vmatprep.subr.bf16.mxu0 0
      %4109 = vmatpush1.bf16.msra.mxu0 0
      %4110 = vmatprep.subr.bf16.mxu0 0
      %4111 = vmatpush1.bf16.msra.mxu0 0
      %4112 = vmatprep.subr.bf16.mxu0 0
      %4113 = vmatpush1.bf16.msra.mxu0 0
      %4114 = vmatprep.subr.bf16.mxu0 0
      %4115 = vmatpush1.bf16.msra.mxu0 0
      %4116 = vmatprep.mubr.bf16.mxu0 0
      %4117 = vmatmul.mubr.bf16.gmra.mrb[0].mxu0 %v4070
      %v4118 = vpop.f32.mrb[0].mxu0
      %v4119 = vadd.f32 0.0, %v4118
      %v4120 = vpop.f32.mrb[0].mxu0
      %v4121 = vadd.f32 0.0, %v4120
      %v4122 = vpop.f32.mrb[0].mxu0
      %v4123 = vpop.f32.mrb[0].mxu0
      %4124 = vdwg.mxu0
      %4125 = vmatprep.subr.bf16.mxu0 %v4082
      %4126 = vmatpush1.bf16.msra.mxu0 %v4079
      %4127 = vmatprep.subr.bf16.mxu0 0
      %4128 = vmatpush1.bf16.msra.mxu0 0
      %4129 = vmatprep.subr.bf16.mxu0 0
      %4130 = vmatpush1.bf16.msra.mxu0 0
      %4131 = vmatprep.subr.bf16.mxu0 0
      %4132 = vmatpush1.bf16.msra.mxu0 0
      %4133 = vmatprep.subr.bf16.mxu0 0
      %4134 = vmatpush1.bf16.msra.mxu0 0
      %4135 = vmatprep.subr.bf16.mxu0 0
      %4136 = vmatpush1.bf16.msra.mxu0 0
      %4137 = vmatprep.subr.bf16.mxu0 0
      %4138 = vmatpush1.bf16.msra.mxu0 0
      %4139 = vmatprep.subr.bf16.mxu0 0
      %4140 = vmatpush1.bf16.msra.mxu0 0
      %4141 = vmatprep.subr.bf16.mxu0 0
      %4142 = vmatpush1.bf16.msra.mxu0 0
      %4143 = vmatprep.subr.bf16.mxu0 0
      %4144 = vmatpush1.bf16.msra.mxu0 0
      %4145 = vmatprep.subr.bf16.mxu0 0
      %4146 = vmatpush1.bf16.msra.mxu0 0
      %4147 = vmatprep.subr.bf16.mxu0 0
      %4148 = vmatpush1.bf16.msra.mxu0 0
      %4149 = vmatprep.subr.bf16.mxu0 0
      %4150 = vmatpush1.bf16.msra.mxu0 0
      %4151 = vmatprep.subr.bf16.mxu0 0
      %4152 = vmatpush1.bf16.msra.mxu0 0
      %4153 = vmatprep.subr.bf16.mxu0 0
      %4154 = vmatpush1.bf16.msra.mxu0 0
      %4155 = vmatprep.subr.bf16.mxu0 0
      %4156 = vmatpush1.bf16.msra.mxu0 0
      %4157 = vmatprep.mubr.bf16.mxu0 0
      %4158 = vmatmul.mubr.bf16.gmra.mrb[0].mxu0 %v4070
      %v4159 = vpop.f32.mrb[0].mxu0
      %v4160 = vadd.f32 0.0, %v4159
      %v4161 = vpop.f32.mrb[0].mxu0
      %v4162 = vadd.f32 0.0, %v4161
      %v4163 = vpop.f32.mrb[0].mxu0
      %v4164 = vpop.f32.mrb[0].mxu0
      %4165 = vdwg.mxu0
      %v4166 = vadd.f32 %v4000, %v4119
      %v4167 = vadd.f32 %v4002, %v4121
      %v4168 = vadd.f32 %v4041, %v4160
      %v4169 = vadd.f32 %v4043, %v4162
      %4170 = vrot.lane.b32.xlu0 %v3806, 1
      %v4171 = vpop.permute.xlu0 %4170
      %4172 = vrot.lane.b32.xlu0 %v3807, 1
      %v4173 = vpop.permute.xlu0 %4172
      %4174 = vrot.lane.b32.xlu0 %v3808, 1
      %v4175 = vpop.permute.xlu0 %4174
      %4176 = vrot.lane.b32.xlu0 %v3809, 1
      %v4177 = vpop.permute.xlu0 %4176
      %v4178 = vsel %vm760, %v4175, %v4177
      %v4179 = vsel %vm760, %v4173, %v4175
      %v4180 = vsel %vm760, %v4171, %v4173
      %v4181 = vsel %vm760, %v4177, %v4171
      %v4182 = vmul.f32 %v4181, %v771
      %v4183 = vmul.f32 %v4180, %v775
      %v4184 = vmul.f32 %v4179, %v779
      %v4185 = vmul.f32 %v4178, %v783
      %s4186 = scalar_lea.vmem %s6, 12
      %v4187 = vld [vmem:[%s4186] sm:$0xf]
      %v4188 = vpack.c.bf16 %v4182, %v4182
      %v4189 = vpack.c.bf16 %v4183, %v4183
      %v4190 = vpack.c.bf16 %v4184, %v4184
      %v4191 = vpack.c.bf16 %v4185, %v4185
      %v4193 = vsel %vm2765, %v4187, 0
      %v4196 = vsel %vm2769, %v4188, 0
      %v4199 = vsel %vm2769, %v4189, 0
      %v4202 = vsel %vm2769, %v4190, 0
      %v4205 = vsel %vm2769, %v4191, 0
      %4207 = vmatprep.subr.bf16.mxu0 %v4199
      %4208 = vmatpush1.bf16.msra.mxu0 %v4196
      %4209 = vmatprep.subr.bf16.mxu0 0
      %4210 = vmatpush1.bf16.msra.mxu0 0
      %4211 = vmatprep.subr.bf16.mxu0 0
      %4212 = vmatpush1.bf16.msra.mxu0 0
      %4213 = vmatprep.subr.bf16.mxu0 0
      %4214 = vmatpush1.bf16.msra.mxu0 0
      %4215 = vmatprep.subr.bf16.mxu0 0
      %4216 = vmatpush1.bf16.msra.mxu0 0
      %4217 = vmatprep.subr.bf16.mxu0 0
      %4218 = vmatpush1.bf16.msra.mxu0 0
      %4219 = vmatprep.subr.bf16.mxu0 0
      %4220 = vmatpush1.bf16.msra.mxu0 0
      %4221 = vmatprep.subr.bf16.mxu0 0
      %4222 = vmatpush1.bf16.msra.mxu0 0
      %4223 = vmatprep.subr.bf16.mxu0 0
      %4224 = vmatpush1.bf16.msra.mxu0 0
      %4225 = vmatprep.subr.bf16.mxu0 0
      %4226 = vmatpush1.bf16.msra.mxu0 0
      %4227 = vmatprep.subr.bf16.mxu0 0
      %4228 = vmatpush1.bf16.msra.mxu0 0
      %4229 = vmatprep.subr.bf16.mxu0 0
      %4230 = vmatpush1.bf16.msra.mxu0 0
      %4231 = vmatprep.subr.bf16.mxu0 0
      %4232 = vmatpush1.bf16.msra.mxu0 0
      %4233 = vmatprep.subr.bf16.mxu0 0
      %4234 = vmatpush1.bf16.msra.mxu0 0
      %4235 = vmatprep.subr.bf16.mxu0 0
      %4236 = vmatpush1.bf16.msra.mxu0 0
      %4237 = vmatprep.subr.bf16.mxu0 0
      %4238 = vmatpush1.bf16.msra.mxu0 0
      %4239 = vmatprep.mubr.bf16.mxu0 0
      %4240 = vmatmul.mubr.bf16.gmra.mrb[0].mxu0 %v4193
      %v4241 = vpop.f32.mrb[0].mxu0
      %v4242 = vadd.f32 0.0, %v4241
      %v4243 = vpop.f32.mrb[0].mxu0
      %v4244 = vadd.f32 0.0, %v4243
      %v4245 = vpop.f32.mrb[0].mxu0
      %v4246 = vpop.f32.mrb[0].mxu0
      %4247 = vdwg.mxu0
      %4248 = vmatprep.subr.bf16.mxu0 %v4205
      %4249 = vmatpush1.bf16.msra.mxu0 %v4202
      %4250 = vmatprep.subr.bf16.mxu0 0
      %4251 = vmatpush1.bf16.msra.mxu0 0
      %4252 = vmatprep.subr.bf16.mxu0 0
      %4253 = vmatpush1.bf16.msra.mxu0 0
      %4254 = vmatprep.subr.bf16.mxu0 0
      %4255 = vmatpush1.bf16.msra.mxu0 0
      %4256 = vmatprep.subr.bf16.mxu0 0
      %4257 = vmatpush1.bf16.msra.mxu0 0
      %4258 = vmatprep.subr.bf16.mxu0 0
      %4259 = vmatpush1.bf16.msra.mxu0 0
      %4260 = vmatprep.subr.bf16.mxu0 0
      %4261 = vmatpush1.bf16.msra.mxu0 0
      %4262 = vmatprep.subr.bf16.mxu0 0
      %4263 = vmatpush1.bf16.msra.mxu0 0
      %4264 = vmatprep.subr.bf16.mxu0 0
      %4265 = vmatpush1.bf16.msra.mxu0 0
      %4266 = vmatprep.subr.bf16.mxu0 0
      %4267 = vmatpush1.bf16.msra.mxu0 0
      %4268 = vmatprep.subr.bf16.mxu0 0
      %4269 = vmatpush1.bf16.msra.mxu0 0
      %4270 = vmatprep.subr.bf16.mxu0 0
      %4271 = vmatpush1.bf16.msra.mxu0 0
      %4272 = vmatprep.subr.bf16.mxu0 0
      %4273 = vmatpush1.bf16.msra.mxu0 0
      %4274 = vmatprep.subr.bf16.mxu0 0
      %4275 = vmatpush1.bf16.msra.mxu0 0
      %4276 = vmatprep.subr.bf16.mxu0 0
      %4277 = vmatpush1.bf16.msra.mxu0 0
      %4278 = vmatprep.subr.bf16.mxu0 0
      %4279 = vmatpush1.bf16.msra.mxu0 0
      %4280 = vmatprep.mubr.bf16.mxu0 0
      %4281 = vmatmul.mubr.bf16.gmra.mrb[0].mxu0 %v4193
      %v4282 = vpop.f32.mrb[0].mxu0
      %v4283 = vadd.f32 0.0, %v4282
      %v4284 = vpop.f32.mrb[0].mxu0
      %v4285 = vadd.f32 0.0, %v4284
      %v4286 = vpop.f32.mrb[0].mxu0
      %v4287 = vpop.f32.mrb[0].mxu0
      %4288 = vdwg.mxu0
      %v4289 = vadd.f32 %v4166, %v4242
      %v4290 = vadd.f32 %v4167, %v4244
      %v4291 = vadd.f32 %v4168, %v4283
      %v4292 = vadd.f32 %v4169, %v4285
      %s4293 = scalar_lea.vmem %s6, 16
      %v4294 = vld [vmem:[%s4293] sm:$0xf]
      %v4295 = vpack.c.bf16 %v3806, %v3806
      %v4296 = vpack.c.bf16 %v3807, %v3807
      %v4297 = vpack.c.bf16 %v3808, %v3808
      %v4298 = vpack.c.bf16 %v3809, %v3809
      %v4300 = vsel %vm2765, %v4294, 0
      %v4303 = vsel %vm2769, %v4295, 0
      %v4306 = vsel %vm2769, %v4296, 0
      %v4309 = vsel %vm2769, %v4297, 0
      %v4312 = vsel %vm2769, %v4298, 0
      %4314 = vmatprep.subr.bf16.mxu0 %v4306
      %4315 = vmatpush1.bf16.msra.mxu0 %v4303
      %4316 = vmatprep.subr.bf16.mxu0 0
      %4317 = vmatpush1.bf16.msra.mxu0 0
      %4318 = vmatprep.subr.bf16.mxu0 0
      %4319 = vmatpush1.bf16.msra.mxu0 0
      %4320 = vmatprep.subr.bf16.mxu0 0
      %4321 = vmatpush1.bf16.msra.mxu0 0
      %4322 = vmatprep.subr.bf16.mxu0 0
      %4323 = vmatpush1.bf16.msra.mxu0 0
      %4324 = vmatprep.subr.bf16.mxu0 0
      %4325 = vmatpush1.bf16.msra.mxu0 0
      %4326 = vmatprep.subr.bf16.mxu0 0
      %4327 = vmatpush1.bf16.msra.mxu0 0
      %4328 = vmatprep.subr.bf16.mxu0 0
      %4329 = vmatpush1.bf16.msra.mxu0 0
      %4330 = vmatprep.subr.bf16.mxu0 0
      %4331 = vmatpush1.bf16.msra.mxu0 0
      %4332 = vmatprep.subr.bf16.mxu0 0
      %4333 = vmatpush1.bf16.msra.mxu0 0
      %4334 = vmatprep.subr.bf16.mxu0 0
      %4335 = vmatpush1.bf16.msra.mxu0 0
      %4336 = vmatprep.subr.bf16.mxu0 0
      %4337 = vmatpush1.bf16.msra.mxu0 0
      %4338 = vmatprep.subr.bf16.mxu0 0
      %4339 = vmatpush1.bf16.msra.mxu0 0
      %4340 = vmatprep.subr.bf16.mxu0 0
      %4341 = vmatpush1.bf16.msra.mxu0 0
      %4342 = vmatprep.subr.bf16.mxu0 0
      %4343 = vmatpush1.bf16.msra.mxu0 0
      %4344 = vmatprep.subr.bf16.mxu0 0
      %4345 = vmatpush1.bf16.msra.mxu0 0
      %4346 = vmatprep.mubr.bf16.mxu0 0
      %4347 = vmatmul.mubr.bf16.gmra.mrb[0].mxu0 %v4300
      %v4348 = vpop.f32.mrb[0].mxu0
      %v4349 = vadd.f32 0.0, %v4348
      %v4350 = vpop.f32.mrb[0].mxu0
      %v4351 = vadd.f32 0.0, %v4350
      %v4352 = vpop.f32.mrb[0].mxu0
      %v4353 = vpop.f32.mrb[0].mxu0
      %4354 = vdwg.mxu0
      %4355 = vmatprep.subr.bf16.mxu0 %v4312
      %4356 = vmatpush1.bf16.msra.mxu0 %v4309
      %4357 = vmatprep.subr.bf16.mxu0 0
      %4358 = vmatpush1.bf16.msra.mxu0 0
      %4359 = vmatprep.subr.bf16.mxu0 0
      %4360 = vmatpush1.bf16.msra.mxu0 0
      %4361 = vmatprep.subr.bf16.mxu0 0
      %4362 = vmatpush1.bf16.msra.mxu0 0
      %4363 = vmatprep.subr.bf16.mxu0 0
      %4364 = vmatpush1.bf16.msra.mxu0 0
      %4365 = vmatprep.subr.bf16.mxu0 0
      %4366 = vmatpush1.bf16.msra.mxu0 0
      %4367 = vmatprep.subr.bf16.mxu0 0
      %4368 = vmatpush1.bf16.msra.mxu0 0
      %4369 = vmatprep.subr.bf16.mxu0 0
      %4370 = vmatpush1.bf16.msra.mxu0 0
      %4371 = vmatprep.subr.bf16.mxu0 0
      %4372 = vmatpush1.bf16.msra.mxu0 0
      %4373 = vmatprep.subr.bf16.mxu0 0
      %4374 = vmatpush1.bf16.msra.mxu0 0
      %4375 = vmatprep.subr.bf16.mxu0 0
      %4376 = vmatpush1.bf16.msra.mxu0 0
      %4377 = vmatprep.subr.bf16.mxu0 0
      %4378 = vmatpush1.bf16.msra.mxu0 0
      %4379 = vmatprep.subr.bf16.mxu0 0
      %4380 = vmatpush1.bf16.msra.mxu0 0
      %4381 = vmatprep.subr.bf16.mxu0 0
      %4382 = vmatpush1.bf16.msra.mxu0 0
      %4383 = vmatprep.subr.bf16.mxu0 0
      %4384 = vmatpush1.bf16.msra.mxu0 0
      %4385 = vmatprep.subr.bf16.mxu0 0
      %4386 = vmatpush1.bf16.msra.mxu0 0
      %4387 = vmatprep.mubr.bf16.mxu0 0
      %4388 = vmatmul.mubr.bf16.gmra.mrb[0].mxu0 %v4300
      %v4389 = vpop.f32.mrb[0].mxu0
      %v4390 = vadd.f32 0.0, %v4389
      %v4391 = vpop.f32.mrb[0].mxu0
      %v4392 = vadd.f32 0.0, %v4391
      %v4393 = vpop.f32.mrb[0].mxu0
      %v4394 = vpop.f32.mrb[0].mxu0
      %4395 = vdwg.mxu0
      %v4396 = vadd.f32 %v4289, %v4349
      %v4397 = vadd.f32 %v4290, %v4351
      %v4398 = vadd.f32 %v4291, %v4390
      %v4399 = vadd.f32 %v4292, %v4392
      %4400 = vrot.lane.b32.xlu0 %v3806, 127
      %v4401 = vpop.permute.xlu0 %4400
      %4402 = vrot.lane.b32.xlu0 %v3807, 127
      %v4403 = vpop.permute.xlu0 %4402
      %4404 = vrot.lane.b32.xlu0 %v3808, 127
      %v4405 = vpop.permute.xlu0 %4404
      %4406 = vrot.lane.b32.xlu0 %v3809, 127
      %v4407 = vpop.permute.xlu0 %4406
      %v4408 = vsel %vm1028, %v4405, %v4407
      %v4409 = vsel %vm1028, %v4403, %v4405
      %v4410 = vsel %vm1028, %v4401, %v4403
      %v4411 = vsel %vm1028, %v4407, %v4401
      %v4412 = vmul.f32 %v4410, %v1039
      %v4413 = vmul.f32 %v4409, %v1043
      %v4414 = vmul.f32 %v4408, %v1047
      %v4415 = vmul.f32 %v4411, %v1051
      %s4416 = scalar_lea.vmem %s6, 20
      %v4417 = vld [vmem:[%s4416] sm:$0xf]
      %v4418 = vpack.c.bf16 %v4412, %v4412
      %v4419 = vpack.c.bf16 %v4413, %v4413
      %v4420 = vpack.c.bf16 %v4414, %v4414
      %v4421 = vpack.c.bf16 %v4415, %v4415
      %v4423 = vsel %vm2765, %v4417, 0
      %v4426 = vsel %vm2769, %v4418, 0
      %v4429 = vsel %vm2769, %v4419, 0
      %v4432 = vsel %vm2769, %v4420, 0
      %v4435 = vsel %vm2769, %v4421, 0
      %4437 = vmatprep.subr.bf16.mxu0 %v4429
      %4438 = vmatpush1.bf16.msra.mxu0 %v4426
      %4439 = vmatprep.subr.bf16.mxu0 0
      %4440 = vmatpush1.bf16.msra.mxu0 0
      %4441 = vmatprep.subr.bf16.mxu0 0
      %4442 = vmatpush1.bf16.msra.mxu0 0
      %4443 = vmatprep.subr.bf16.mxu0 0
      %4444 = vmatpush1.bf16.msra.mxu0 0
      %4445 = vmatprep.subr.bf16.mxu0 0
      %4446 = vmatpush1.bf16.msra.mxu0 0
      %4447 = vmatprep.subr.bf16.mxu0 0
      %4448 = vmatpush1.bf16.msra.mxu0 0
      %4449 = vmatprep.subr.bf16.mxu0 0
      %4450 = vmatpush1.bf16.msra.mxu0 0
      %4451 = vmatprep.subr.bf16.mxu0 0
      %4452 = vmatpush1.bf16.msra.mxu0 0
      %4453 = vmatprep.subr.bf16.mxu0 0
      %4454 = vmatpush1.bf16.msra.mxu0 0
      %4455 = vmatprep.subr.bf16.mxu0 0
      %4456 = vmatpush1.bf16.msra.mxu0 0
      %4457 = vmatprep.subr.bf16.mxu0 0
      %4458 = vmatpush1.bf16.msra.mxu0 0
      %4459 = vmatprep.subr.bf16.mxu0 0
      %4460 = vmatpush1.bf16.msra.mxu0 0
      %4461 = vmatprep.subr.bf16.mxu0 0
      %4462 = vmatpush1.bf16.msra.mxu0 0
      %4463 = vmatprep.subr.bf16.mxu0 0
      %4464 = vmatpush1.bf16.msra.mxu0 0
      %4465 = vmatprep.subr.bf16.mxu0 0
      %4466 = vmatpush1.bf16.msra.mxu0 0
      %4467 = vmatprep.subr.bf16.mxu0 0
      %4468 = vmatpush1.bf16.msra.mxu0 0
      %4469 = vmatprep.mubr.bf16.mxu0 0
      %4470 = vmatmul.mubr.bf16.gmra.mrb[0].mxu0 %v4423
      %v4471 = vpop.f32.mrb[0].mxu0
      %v4472 = vadd.f32 0.0, %v4471
      %v4473 = vpop.f32.mrb[0].mxu0
      %v4474 = vadd.f32 0.0, %v4473
      %v4475 = vpop.f32.mrb[0].mxu0
      %v4476 = vpop.f32.mrb[0].mxu0
      %4477 = vdwg.mxu0
      %4478 = vmatprep.subr.bf16.mxu0 %v4435
      %4479 = vmatpush1.bf16.msra.mxu0 %v4432
      %4480 = vmatprep.subr.bf16.mxu0 0
      %4481 = vmatpush1.bf16.msra.mxu0 0
      %4482 = vmatprep.subr.bf16.mxu0 0
      %4483 = vmatpush1.bf16.msra.mxu0 0
      %4484 = vmatprep.subr.bf16.mxu0 0
      %4485 = vmatpush1.bf16.msra.mxu0 0
      %4486 = vmatprep.subr.bf16.mxu0 0
      %4487 = vmatpush1.bf16.msra.mxu0 0
      %4488 = vmatprep.subr.bf16.mxu0 0
      %4489 = vmatpush1.bf16.msra.mxu0 0
      %4490 = vmatprep.subr.bf16.mxu0 0
      %4491 = vmatpush1.bf16.msra.mxu0 0
      %4492 = vmatprep.subr.bf16.mxu0 0
      %4493 = vmatpush1.bf16.msra.mxu0 0
      %4494 = vmatprep.subr.bf16.mxu0 0
      %4495 = vmatpush1.bf16.msra.mxu0 0
      %4496 = vmatprep.subr.bf16.mxu0 0
      %4497 = vmatpush1.bf16.msra.mxu0 0
      %4498 = vmatprep.subr.bf16.mxu0 0
      %4499 = vmatpush1.bf16.msra.mxu0 0
      %4500 = vmatprep.subr.bf16.mxu0 0
      %4501 = vmatpush1.bf16.msra.mxu0 0
      %4502 = vmatprep.subr.bf16.mxu0 0
      %4503 = vmatpush1.bf16.msra.mxu0 0
      %4504 = vmatprep.subr.bf16.mxu0 0
      %4505 = vmatpush1.bf16.msra.mxu0 0
      %4506 = vmatprep.subr.bf16.mxu0 0
      %4507 = vmatpush1.bf16.msra.mxu0 0
      %4508 = vmatprep.subr.bf16.mxu0 0
      %4509 = vmatpush1.bf16.msra.mxu0 0
      %4510 = vmatprep.mubr.bf16.mxu0 0
      %4511 = vmatmul.mubr.bf16.gmra.mrb[0].mxu0 %v4423
      %v4512 = vpop.f32.mrb[0].mxu0
      %v4513 = vadd.f32 0.0, %v4512
      %v4514 = vpop.f32.mrb[0].mxu0
      %v4515 = vadd.f32 0.0, %v4514
      %v4516 = vpop.f32.mrb[0].mxu0
      %v4517 = vpop.f32.mrb[0].mxu0
      %4518 = vdwg.mxu0
      %v4519 = vadd.f32 %v4396, %v4472
      %v4520 = vadd.f32 %v4397, %v4474
      %v4521 = vadd.f32 %v4398, %v4513
      %v4522 = vadd.f32 %v4399, %v4515
      %4523 = vrot.lane.b32.xlu0 %v3806, 113
      %v4524 = vpop.permute.xlu0 %4523
      %4525 = vrot.lane.b32.xlu0 %v3807, 113
      %v4526 = vpop.permute.xlu0 %4525
      %4527 = vrot.lane.b32.xlu0 %v3808, 113
      %v4528 = vpop.permute.xlu0 %4527
      %4529 = vrot.lane.b32.xlu0 %v3809, 113
      %v4530 = vpop.permute.xlu0 %4529
      %v4531 = vsel %vm1175, %v4528, %v4530
      %v4532 = vsel %vm1175, %v4526, %v4528
      %v4533 = vsel %vm1175, %v4524, %v4526
      %v4534 = vsel %vm1175, %v4530, %v4524
      %v4535 = vmul.f32 %v4533, %v1186
      %v4536 = vmul.f32 %v4532, %v1190
      %v4537 = vmul.f32 %v4531, %v1194
      %v4538 = vmul.f32 %v4534, %v1198
      %s4539 = scalar_lea.vmem %s6, 24
      %v4540 = vld [vmem:[%s4539] sm:$0xf]
      %v4541 = vpack.c.bf16 %v4535, %v4535
      %v4542 = vpack.c.bf16 %v4536, %v4536
      %v4543 = vpack.c.bf16 %v4537, %v4537
      %v4544 = vpack.c.bf16 %v4538, %v4538
      %v4546 = vsel %vm2765, %v4540, 0
      %v4549 = vsel %vm2769, %v4541, 0
      %v4552 = vsel %vm2769, %v4542, 0
      %v4555 = vsel %vm2769, %v4543, 0
      %v4558 = vsel %vm2769, %v4544, 0
      %4560 = vmatprep.subr.bf16.mxu0 %v4552
      %4561 = vmatpush1.bf16.msra.mxu0 %v4549
      %4562 = vmatprep.subr.bf16.mxu0 0
      %4563 = vmatpush1.bf16.msra.mxu0 0
      %4564 = vmatprep.subr.bf16.mxu0 0
      %4565 = vmatpush1.bf16.msra.mxu0 0
      %4566 = vmatprep.subr.bf16.mxu0 0
      %4567 = vmatpush1.bf16.msra.mxu0 0
      %4568 = vmatprep.subr.bf16.mxu0 0
      %4569 = vmatpush1.bf16.msra.mxu0 0
      %4570 = vmatprep.subr.bf16.mxu0 0
      %4571 = vmatpush1.bf16.msra.mxu0 0
      %4572 = vmatprep.subr.bf16.mxu0 0
      %4573 = vmatpush1.bf16.msra.mxu0 0
      %4574 = vmatprep.subr.bf16.mxu0 0
      %4575 = vmatpush1.bf16.msra.mxu0 0
      %4576 = vmatprep.subr.bf16.mxu0 0
      %4577 = vmatpush1.bf16.msra.mxu0 0
      %4578 = vmatprep.subr.bf16.mxu0 0
      %4579 = vmatpush1.bf16.msra.mxu0 0
      %4580 = vmatprep.subr.bf16.mxu0 0
      %4581 = vmatpush1.bf16.msra.mxu0 0
      %4582 = vmatprep.subr.bf16.mxu0 0
      %4583 = vmatpush1.bf16.msra.mxu0 0
      %4584 = vmatprep.subr.bf16.mxu0 0
      %4585 = vmatpush1.bf16.msra.mxu0 0
      %4586 = vmatprep.subr.bf16.mxu0 0
      %4587 = vmatpush1.bf16.msra.mxu0 0
      %4588 = vmatprep.subr.bf16.mxu0 0
      %4589 = vmatpush1.bf16.msra.mxu0 0
      %4590 = vmatprep.subr.bf16.mxu0 0
      %4591 = vmatpush1.bf16.msra.mxu0 0
      %4592 = vmatprep.mubr.bf16.mxu0 0
      %4593 = vmatmul.mubr.bf16.gmra.mrb[0].mxu0 %v4546
      %v4594 = vpop.f32.mrb[0].mxu0
      %v4595 = vadd.f32 0.0, %v4594
      %v4596 = vpop.f32.mrb[0].mxu0
      %v4597 = vadd.f32 0.0, %v4596
      %v4598 = vpop.f32.mrb[0].mxu0
      %v4599 = vpop.f32.mrb[0].mxu0
      %4600 = vdwg.mxu0
      %4601 = vmatprep.subr.bf16.mxu0 %v4558
      %4602 = vmatpush1.bf16.msra.mxu0 %v4555
      %4603 = vmatprep.subr.bf16.mxu0 0
      %4604 = vmatpush1.bf16.msra.mxu0 0
      %4605 = vmatprep.subr.bf16.mxu0 0
      %4606 = vmatpush1.bf16.msra.mxu0 0
      %4607 = vmatprep.subr.bf16.mxu0 0
      %4608 = vmatpush1.bf16.msra.mxu0 0
      %4609 = vmatprep.subr.bf16.mxu0 0
      %4610 = vmatpush1.bf16.msra.mxu0 0
      %4611 = vmatprep.subr.bf16.mxu0 0
      %4612 = vmatpush1.bf16.msra.mxu0 0
      %4613 = vmatprep.subr.bf16.mxu0 0
      %4614 = vmatpush1.bf16.msra.mxu0 0
      %4615 = vmatprep.subr.bf16.mxu0 0
      %4616 = vmatpush1.bf16.msra.mxu0 0
      %4617 = vmatprep.subr.bf16.mxu0 0
      %4618 = vmatpush1.bf16.msra.mxu0 0
      %4619 = vmatprep.subr.bf16.mxu0 0
      %4620 = vmatpush1.bf16.msra.mxu0 0
      %4621 = vmatprep.subr.bf16.mxu0 0
      %4622 = vmatpush1.bf16.msra.mxu0 0
      %4623 = vmatprep.subr.bf16.mxu0 0
      %4624 = vmatpush1.bf16.msra.mxu0 0
      %4625 = vmatprep.subr.bf16.mxu0 0
      %4626 = vmatpush1.bf16.msra.mxu0 0
      %4627 = vmatprep.subr.bf16.mxu0 0
      %4628 = vmatpush1.bf16.msra.mxu0 0
      %4629 = vmatprep.subr.bf16.mxu0 0
      %4630 = vmatpush1.bf16.msra.mxu0 0
      %4631 = vmatprep.subr.bf16.mxu0 0
      %4632 = vmatpush1.bf16.msra.mxu0 0
      %4633 = vmatprep.mubr.bf16.mxu0 0
      %4634 = vmatmul.mubr.bf16.gmra.mrb[0].mxu0 %v4546
      %v4635 = vpop.f32.mrb[0].mxu0
      %v4636 = vadd.f32 0.0, %v4635
      %v4637 = vpop.f32.mrb[0].mxu0
      %v4638 = vadd.f32 0.0, %v4637
      %v4639 = vpop.f32.mrb[0].mxu0
      %v4640 = vpop.f32.mrb[0].mxu0
      %4641 = vdwg.mxu0
      %v4642 = vadd.f32 %v4519, %v4595
      %v4643 = vadd.f32 %v4520, %v4597
      %v4644 = vadd.f32 %v4521, %v4636
      %v4645 = vadd.f32 %v4522, %v4638
      %4646 = vrot.lane.b32.xlu0 %v3806, 112
      %v4647 = vpop.permute.xlu0 %4646
      %4648 = vrot.lane.b32.xlu0 %v3807, 112
      %v4649 = vpop.permute.xlu0 %4648
      %4650 = vrot.lane.b32.xlu0 %v3808, 112
      %v4651 = vpop.permute.xlu0 %4650
      %4652 = vrot.lane.b32.xlu0 %v3809, 112
      %v4653 = vpop.permute.xlu0 %4652
      %v4654 = vsel %vm1322, %v4651, %v4653
      %v4655 = vsel %vm1322, %v4649, %v4651
      %v4656 = vsel %vm1322, %v4647, %v4649
      %v4657 = vsel %vm1322, %v4653, %v4647
      %v4658 = vmul.f32 %v4656, %v1333
      %v4659 = vmul.f32 %v4655, %v1337
      %v4660 = vmul.f32 %v4654, %v1341
      %v4661 = vmul.f32 %v4657, %v1345
      %s4662 = scalar_lea.vmem %s6, 28
      %v4663 = vld [vmem:[%s4662] sm:$0xf]
      %v4664 = vpack.c.bf16 %v4658, %v4658
      %v4665 = vpack.c.bf16 %v4659, %v4659
      %v4666 = vpack.c.bf16 %v4660, %v4660
      %v4667 = vpack.c.bf16 %v4661, %v4661
      %v4669 = vsel %vm2765, %v4663, 0
      %v4672 = vsel %vm2769, %v4664, 0
      %v4675 = vsel %vm2769, %v4665, 0
      %v4678 = vsel %vm2769, %v4666, 0
      %v4681 = vsel %vm2769, %v4667, 0
      %4683 = vmatprep.subr.bf16.mxu0 %v4675
      %4684 = vmatpush1.bf16.msra.mxu0 %v4672
      %4685 = vmatprep.subr.bf16.mxu0 0
      %4686 = vmatpush1.bf16.msra.mxu0 0
      %4687 = vmatprep.subr.bf16.mxu0 0
      %4688 = vmatpush1.bf16.msra.mxu0 0
      %4689 = vmatprep.subr.bf16.mxu0 0
      %4690 = vmatpush1.bf16.msra.mxu0 0
      %4691 = vmatprep.subr.bf16.mxu0 0
      %4692 = vmatpush1.bf16.msra.mxu0 0
      %4693 = vmatprep.subr.bf16.mxu0 0
      %4694 = vmatpush1.bf16.msra.mxu0 0
      %4695 = vmatprep.subr.bf16.mxu0 0
      %4696 = vmatpush1.bf16.msra.mxu0 0
      %4697 = vmatprep.subr.bf16.mxu0 0
      %4698 = vmatpush1.bf16.msra.mxu0 0
      %4699 = vmatprep.subr.bf16.mxu0 0
      %4700 = vmatpush1.bf16.msra.mxu0 0
      %4701 = vmatprep.subr.bf16.mxu0 0
      %4702 = vmatpush1.bf16.msra.mxu0 0
      %4703 = vmatprep.subr.bf16.mxu0 0
      %4704 = vmatpush1.bf16.msra.mxu0 0
      %4705 = vmatprep.subr.bf16.mxu0 0
      %4706 = vmatpush1.bf16.msra.mxu0 0
      %4707 = vmatprep.subr.bf16.mxu0 0
      %4708 = vmatpush1.bf16.msra.mxu0 0
      %4709 = vmatprep.subr.bf16.mxu0 0
      %4710 = vmatpush1.bf16.msra.mxu0 0
      %4711 = vmatprep.subr.bf16.mxu0 0
      %4712 = vmatpush1.bf16.msra.mxu0 0
      %4713 = vmatprep.subr.bf16.mxu0 0
      %4714 = vmatpush1.bf16.msra.mxu0 0
      %4715 = vmatprep.mubr.bf16.mxu0 0
      %4716 = vmatmul.mubr.bf16.gmra.mrb[0].mxu0 %v4669
      %v4717 = vpop.f32.mrb[0].mxu0
      %v4718 = vadd.f32 0.0, %v4717
      %v4719 = vpop.f32.mrb[0].mxu0
      %v4720 = vadd.f32 0.0, %v4719
      %v4721 = vpop.f32.mrb[0].mxu0
      %v4722 = vpop.f32.mrb[0].mxu0
      %4723 = vdwg.mxu0
      %4724 = vmatprep.subr.bf16.mxu0 %v4681
      %4725 = vmatpush1.bf16.msra.mxu0 %v4678
      %4726 = vmatprep.subr.bf16.mxu0 0
      %4727 = vmatpush1.bf16.msra.mxu0 0
      %4728 = vmatprep.subr.bf16.mxu0 0
      %4729 = vmatpush1.bf16.msra.mxu0 0
      %4730 = vmatprep.subr.bf16.mxu0 0
      %4731 = vmatpush1.bf16.msra.mxu0 0
      %4732 = vmatprep.subr.bf16.mxu0 0
      %4733 = vmatpush1.bf16.msra.mxu0 0
      %4734 = vmatprep.subr.bf16.mxu0 0
      %4735 = vmatpush1.bf16.msra.mxu0 0
      %4736 = vmatprep.subr.bf16.mxu0 0
      %4737 = vmatpush1.bf16.msra.mxu0 0
      %4738 = vmatprep.subr.bf16.mxu0 0
      %4739 = vmatpush1.bf16.msra.mxu0 0
      %4740 = vmatprep.subr.bf16.mxu0 0
      %4741 = vmatpush1.bf16.msra.mxu0 0
      %4742 = vmatprep.subr.bf16.mxu0 0
      %4743 = vmatpush1.bf16.msra.mxu0 0
      %4744 = vmatprep.subr.bf16.mxu0 0
      %4745 = vmatpush1.bf16.msra.mxu0 0
      %4746 = vmatprep.subr.bf16.mxu0 0
      %4747 = vmatpush1.bf16.msra.mxu0 0
      %4748 = vmatprep.subr.bf16.mxu0 0
      %4749 = vmatpush1.bf16.msra.mxu0 0
      %4750 = vmatprep.subr.bf16.mxu0 0
      %4751 = vmatpush1.bf16.msra.mxu0 0
      %4752 = vmatprep.subr.bf16.mxu0 0
      %4753 = vmatpush1.bf16.msra.mxu0 0
      %4754 = vmatprep.subr.bf16.mxu0 0
      %4755 = vmatpush1.bf16.msra.mxu0 0
      %4756 = vmatprep.mubr.bf16.mxu0 0
      %4757 = vmatmul.mubr.bf16.gmra.mrb[0].mxu0 %v4669
      %v4758 = vpop.f32.mrb[0].mxu0
      %v4759 = vadd.f32 0.0, %v4758
      %v4760 = vpop.f32.mrb[0].mxu0
      %v4761 = vadd.f32 0.0, %v4760
      %v4762 = vpop.f32.mrb[0].mxu0
      %v4763 = vpop.f32.mrb[0].mxu0
      %4764 = vdwg.mxu0
      %v4765 = vadd.f32 %v4642, %v4718
      %v4766 = vadd.f32 %v4643, %v4720
      %v4767 = vadd.f32 %v4644, %v4759
      %v4768 = vadd.f32 %v4645, %v4761
      %4769 = vrot.lane.b32.xlu0 %v3806, 111
      %v4770 = vpop.permute.xlu0 %4769
      %4771 = vrot.lane.b32.xlu0 %v3807, 111
      %v4772 = vpop.permute.xlu0 %4771
      %4773 = vrot.lane.b32.xlu0 %v3808, 111
      %v4774 = vpop.permute.xlu0 %4773
      %4775 = vrot.lane.b32.xlu0 %v3809, 111
      %v4776 = vpop.permute.xlu0 %4775
      %v4777 = vsel %vm1469, %v4774, %v4776
      %v4778 = vsel %vm1469, %v4772, %v4774
      %v4779 = vsel %vm1469, %v4770, %v4772
      %v4780 = vsel %vm1469, %v4776, %v4770
      %v4781 = vmul.f32 %v4779, %v1480
      %v4782 = vmul.f32 %v4778, %v1484
      %v4783 = vmul.f32 %v4777, %v1488
      %v4784 = vmul.f32 %v4780, %v1492
      %s4785 = scalar_lea.vmem %s6, 32
      %v4786 = vld [vmem:[%s4785] sm:$0xf]
      %v4787 = vpack.c.bf16 %v4781, %v4781
      %v4788 = vpack.c.bf16 %v4782, %v4782
      %v4789 = vpack.c.bf16 %v4783, %v4783
      %v4790 = vpack.c.bf16 %v4784, %v4784
      %v4792 = vsel %vm2765, %v4786, 0
      %v4795 = vsel %vm2769, %v4787, 0
      %v4798 = vsel %vm2769, %v4788, 0
      %v4801 = vsel %vm2769, %v4789, 0
      %v4804 = vsel %vm2769, %v4790, 0
      %4806 = vmatprep.subr.bf16.mxu0 %v4798
      %4807 = vmatpush1.bf16.msra.mxu0 %v4795
      %4808 = vmatprep.subr.bf16.mxu0 0
      %4809 = vmatpush1.bf16.msra.mxu0 0
      %4810 = vmatprep.subr.bf16.mxu0 0
      %4811 = vmatpush1.bf16.msra.mxu0 0
      %4812 = vmatprep.subr.bf16.mxu0 0
      %4813 = vmatpush1.bf16.msra.mxu0 0
      %4814 = vmatprep.subr.bf16.mxu0 0
      %4815 = vmatpush1.bf16.msra.mxu0 0
      %4816 = vmatprep.subr.bf16.mxu0 0
      %4817 = vmatpush1.bf16.msra.mxu0 0
      %4818 = vmatprep.subr.bf16.mxu0 0
      %4819 = vmatpush1.bf16.msra.mxu0 0
      %4820 = vmatprep.subr.bf16.mxu0 0
      %4821 = vmatpush1.bf16.msra.mxu0 0
      %4822 = vmatprep.subr.bf16.mxu0 0
      %4823 = vmatpush1.bf16.msra.mxu0 0
      %4824 = vmatprep.subr.bf16.mxu0 0
      %4825 = vmatpush1.bf16.msra.mxu0 0
      %4826 = vmatprep.subr.bf16.mxu0 0
      %4827 = vmatpush1.bf16.msra.mxu0 0
      %4828 = vmatprep.subr.bf16.mxu0 0
      %4829 = vmatpush1.bf16.msra.mxu0 0
      %4830 = vmatprep.subr.bf16.mxu0 0
      %4831 = vmatpush1.bf16.msra.mxu0 0
      %4832 = vmatprep.subr.bf16.mxu0 0
      %4833 = vmatpush1.bf16.msra.mxu0 0
      %4834 = vmatprep.subr.bf16.mxu0 0
      %4835 = vmatpush1.bf16.msra.mxu0 0
      %4836 = vmatprep.subr.bf16.mxu0 0
      %4837 = vmatpush1.bf16.msra.mxu0 0
      %4838 = vmatprep.mubr.bf16.mxu0 0
      %4839 = vmatmul.mubr.bf16.gmra.mrb[0].mxu0 %v4792
      %v4840 = vpop.f32.mrb[0].mxu0
      %v4841 = vadd.f32 0.0, %v4840
      %v4842 = vpop.f32.mrb[0].mxu0
      %v4843 = vadd.f32 0.0, %v4842
      %v4844 = vpop.f32.mrb[0].mxu0
      %v4845 = vpop.f32.mrb[0].mxu0
      %4846 = vdwg.mxu0
      %4847 = vmatprep.subr.bf16.mxu0 %v4804
      %4848 = vmatpush1.bf16.msra.mxu0 %v4801
      %4849 = vmatprep.subr.bf16.mxu0 0
      %4850 = vmatpush1.bf16.msra.mxu0 0
      %4851 = vmatprep.subr.bf16.mxu0 0
      %4852 = vmatpush1.bf16.msra.mxu0 0
      %4853 = vmatprep.subr.bf16.mxu0 0
      %4854 = vmatpush1.bf16.msra.mxu0 0
      %4855 = vmatprep.subr.bf16.mxu0 0
      %4856 = vmatpush1.bf16.msra.mxu0 0
      %4857 = vmatprep.subr.bf16.mxu0 0
      %4858 = vmatpush1.bf16.msra.mxu0 0
      %4859 = vmatprep.subr.bf16.mxu0 0
      %4860 = vmatpush1.bf16.msra.mxu0 0
      %4861 = vmatprep.subr.bf16.mxu0 0
      %4862 = vmatpush1.bf16.msra.mxu0 0
      %4863 = vmatprep.subr.bf16.mxu0 0
      %4864 = vmatpush1.bf16.msra.mxu0 0
      %4865 = vmatprep.subr.bf16.mxu0 0
      %4866 = vmatpush1.bf16.msra.mxu0 0
      %4867 = vmatprep.subr.bf16.mxu0 0
      %4868 = vmatpush1.bf16.msra.mxu0 0
      %4869 = vmatprep.subr.bf16.mxu0 0
      %4870 = vmatpush1.bf16.msra.mxu0 0
      %4871 = vmatprep.subr.bf16.mxu0 0
      %4872 = vmatpush1.bf16.msra.mxu0 0
      %4873 = vmatprep.subr.bf16.mxu0 0
      %4874 = vmatpush1.bf16.msra.mxu0 0
      %4875 = vmatprep.subr.bf16.mxu0 0
      %4876 = vmatpush1.bf16.msra.mxu0 0
      %4877 = vmatprep.subr.bf16.mxu0 0
      %4878 = vmatpush1.bf16.msra.mxu0 0
      %4879 = vmatprep.mubr.bf16.mxu0 0
      %4880 = vmatmul.mubr.bf16.gmra.mrb[0].mxu0 %v4792
      %v4881 = vpop.f32.mrb[0].mxu0
      %v4882 = vadd.f32 0.0, %v4881
      %v4883 = vpop.f32.mrb[0].mxu0
      %v4884 = vadd.f32 0.0, %v4883
      %v4885 = vpop.f32.mrb[0].mxu0
      %v4886 = vpop.f32.mrb[0].mxu0
      %4887 = vdwg.mxu0
      %v4888 = vadd.f32 %v4765, %v4841
      %v4889 = vadd.f32 %v4766, %v4843
      %v4890 = vadd.f32 %v4767, %v4882
      %v4891 = vadd.f32 %v4768, %v4884
      %v4892 = vadd.f32 %v4888, %v2718
      %v4893 = vadd.f32 %v4889, %v2719
      %v4894 = vadd.f32 %v4890, %v2720
      %v4895 = vadd.f32 %v4891, %v2721
      %v4896 = vmax.f32 %v4892, 0.0
      %v4897 = vmax.f32 %v4893, 0.0
      %v4898 = vmax.f32 %v4894, 0.0
      %v4899 = vmax.f32 %v4895, 0.0
      %4900 = vst [vmem:[%s302] sm:$0xff] %v4896
      %4901 = vst [vmem:[%s302 + $0x8] sm:$0xff] %v4897
      %4902 = vst [vmem:[%s302 + $0x10] sm:$0xff] %v4898
      %4903 = vst [vmem:[%s302 + $0x18] sm:$0xff] %v4899
      %s4904 = smul.u32 4, %s18
      %p4905 = scmp.lt.s32.totalorder %s4904, 7
      %s4906 = scalar_select %p4905, %s4904, 7
      %s4907 = smul.addr %s4906, 8
      %s4908 = scalar_lea.vmem %s7, %s4907
      // Predicated region
      $region49: #{res_stack_decoder_forward.1} parent=47 // pred_check
        %p4909 = pneg %p193
      $region50: #{res_stack_decoder_forward.1} parent=47 // pred_check_branch
        %4911 = sbr.rel (%p4909) target = $region52
      $region51: #{res_stack_decoder_forward.1} parent=47 // pred_region
        %s4912 = smul.u32 4, %s18
      $region52: #{res_stack_decoder_forward.1} parent=47 // pred_fallthru
        _
    $region48: #{res_stack_decoder_forward.1} parent=5 // pred_fallthru
      _
    %p4913 = scmp.le.s32.totalorder 2, %s13
    // Predicated region
    $region53: #{res_stack_decoder_forward.1} parent=5 // pred_check
      %p4914 = pneg %p4913
    $region54: #{res_stack_decoder_forward.1} parent=5 // pred_check_branch
      %4916 = sbr.rel (%p4914) target = $region56
    $region55: #{res_stack_decoder_forward.1} parent=5 // pred_region
      %s4917 = ssub.s32 %s13, 2
      // Predicated region
      $region57: #{res_stack_decoder_forward.1} parent=55 // pred_check
        %p4918 = pneg %p199
      $region58: #{res_stack_decoder_forward.1} parent=55 // pred_check_branch
        %4920 = sbr.rel (%p4918) target = $region60
      $region59: #{res_stack_decoder_forward.1} parent=55 // pred_region
        %s4921 = smul.u32 4, %s19
        %p4922 = scmp.lt.s32.totalorder %s4921, 7
        %s4923 = scalar_select %p4922, %s4921, 7
        %s4924 = smul.addr %s4923, 8
        %s4925 = scalar_lea.vmem %s7, %s4924
      $region60: #{res_stack_decoder_forward.1} parent=55 // pred_fallthru
        _
    $region56: #{res_stack_decoder_forward.1} parent=5 // pred_fallthru
      _
  $region6: #{res_stack_decoder_forward.1} parent=0 // loop_footer
    %s17 = sadd.s32 1, %s13
  $region7: #{res_stack_decoder_forward.1} parent=0 // loop_footer_branch
    %12 = sbr.rel target = $region3
  $region8: #{res_stack_decoder_forward.1} parent=0 // loop_exit
    _

</llo_original>
